<compile_context>
chip_gen: v7x
topology: tpu7x:2x2x1
jax: 0.10.0
libtpu: 0.0.40
codegen_flags: <defaults>
</compile_context>

<pallas_src>
import functools

import numpy as np
import jax
import jax.numpy as jnp
from jax.experimental import pallas as pl
from jax.experimental.pallas import tpu as pltpu


def _round_up(x, m):
    return (x + m - 1) // m * m


def _multi_tensorcore():
    """Best-effort: does this chip expose >1 TensorCore to one program?"""
    try:
        kind = jax.devices()[0].device_kind.lower()
    except Exception:
        return False
    return any(tok in kind for tok in ("v7", "7x", "v4", "v5p"))


# ---------------------------------------------------------------------------
# Pallas kernel 1: matmul + bias (bf16 MXU operands, f32 accumulation)
# ---------------------------------------------------------------------------

def _matmul_bias_kernel(a_ref, b_ref, bias_ref, o_ref):
    o_ref[...] = (
        jnp.dot(a_ref[...], b_ref[...], preferred_element_type=jnp.float32)
        + bias_ref[...]
    )


def matmul_bias(a, b, bias, *, tm=None):
    """(M, K) @ (K, N) + bias -> (M, N) f32.

    M stays un-padded: a full-extent row block is legal even when M % 8 != 0.
    K must be lane-aligned (multiple of 128) -- the caller folds the zero tail
    into its im2col concatenate so no extra pad pass over A is needed.
    """
    M, K = a.shape
    K2, N = b.shape
    assert K == K2 and K % 128 == 0, "pad K (contraction dim) to 128 upstream"
    if tm is None:
        if _multi_tensorcore() and M > 64:
            tm = _round_up(-(-M // 2), 8)   # balanced 2-way split (e.g. 162 -> 88/74)
        else:
            tm = M                          # single block: no grid-step overhead
    grid_m = pl.cdiv(M, tm)
    bias2d = bias.reshape(1, N).astype(jnp.float32)

    return pl.pallas_call(
        _matmul_bias_kernel,
        out_shape=jax.ShapeDtypeStruct((M, N), jnp.float32),
        grid=(grid_m,),
        in_specs=[
            pl.BlockSpec((tm, K), lambda i: (i, 0)),
            pl.BlockSpec((K, N), lambda i: (0, 0)),    # B stays resident
            pl.BlockSpec((1, N), lambda i: (0, 0)),    # bias stays resident
        ],
        out_specs=pl.BlockSpec((tm, N), lambda i: (i, 0)),
        compiler_params=pltpu.CompilerParams(
            dimension_semantics=("parallel",)),
        cost_estimate=pl.CostEstimate(
            flops=2 * M * K * N,
            transcendentals=0,
            bytes_accessed=M * K * 2 + K * N * 2 + N * 4 + M * N * 4),
    )(a, b, bias2d)


# ---------------------------------------------------------------------------
# Pallas kernel 2: fused at3-conv matmul + bilinear-upsample matmul + sigmoid
#                  + attn-mul + residual + BatchNorm2d (batch stats) + ReLU
# ---------------------------------------------------------------------------

def _fused_attn_bn_relu_kernel(iden_ref, patches_ref, w_ref, bias_ref, u_ref,
                               gamma_ref, beta_ref, o_ref, *, inv_count):
    n_b, p_pad, c_dim = iden_ref.shape           # (N, 88, 128); rows >=81 are zero
    kc = u_ref.shape[1]                          # 16 pooled positions (4x4)

    # at3 3x3 conv (padding=1) as ONE MXU matmul over host-built im2col rows.
    conv = jnp.dot(patches_ref[...], w_ref[...],
                   preferred_element_type=jnp.float32) + bias_ref[...]  # (N*16, C)
    u = u_ref[...]                                                      # (88, 16)

    row_sum = jnp.zeros((1, c_dim), jnp.float32)
    row_sumsq = jnp.zeros((1, c_dim), jnp.float32)
    ys = []
    for n in range(n_b):                         # static unroll (batch is tiny)
        c_n = conv[n * kc:(n + 1) * kc, :]                              # (16, C)
        # 4x4 -> 9x9 bilinear upsample as a tiny MXU matmul.
        up = jnp.dot(u, c_n, preferred_element_type=jnp.float32)        # (88, C)
        sig = pl.reciprocal(1.0 + jnp.exp(-up), approx=True)            # sigmoid
        y = iden_ref[n] * (1.0 + sig)            # identity3 + identity3*sigmoid
        ys.append(y)
        row_sum = row_sum + jnp.sum(y, axis=0, keepdims=True)
        row_sumsq = row_sumsq + jnp.sum(y * y, axis=0, keepdims=True)

    # BatchNorm2d, training-mode batch statistics (biased var), single pass.
    mean = row_sum * inv_count
    var = row_sumsq * inv_count - mean * mean
    scale = gamma_ref[...] * jax.lax.rsqrt(var + 1e-5)
    shift = beta_ref[...] - mean * scale
    for n in range(n_b):
        o_ref[n] = jnp.maximum(ys[n] * scale + shift, 0.0)              # ReLU


def fused_attn_bn_relu(iden, patches, w2, bias2, u_mat, gamma, beta, *, n_valid):
    n_b, p_pad, c_dim = iden.shape
    rows, k2 = patches.shape
    kc = u_mat.shape[1]
    bias2 = bias2.reshape(1, c_dim).astype(jnp.float32)
    gamma = gamma.reshape(1, c_dim).astype(jnp.float32)
    beta = beta.reshape(1, c_dim).astype(jnp.float32)
    kernel = functools.partial(_fused_attn_bn_relu_kernel,
                               inv_count=1.0 / float(n_valid))

    return pl.pallas_call(
        kernel,
        out_shape=jax.ShapeDtypeStruct((n_b, p_pad, c_dim), jnp.float32),
        grid=(1,),   # BN batch stats need the whole tensor; it is ~0.5 MB total
        in_specs=[
            pl.BlockSpec((n_b, p_pad, c_dim), lambda i: (0, 0, 0)),
            pl.BlockSpec((rows, k2), lambda i: (0, 0)),
            pl.BlockSpec((k2, c_dim), lambda i: (0, 0)),
            pl.BlockSpec((1, c_dim), lambda i: (0, 0)),
            pl.BlockSpec((p_pad, kc), lambda i: (0, 0)),
            pl.BlockSpec((1, c_dim), lambda i: (0, 0)),
            pl.BlockSpec((1, c_dim), lambda i: (0, 0)),
        ],
        out_specs=pl.BlockSpec((n_b, p_pad, c_dim), lambda i: (0, 0, 0)),
        compiler_params=pltpu.CompilerParams(
            dimension_semantics=("arbitrary",)),
        cost_estimate=pl.CostEstimate(
            flops=2 * rows * k2 * c_dim + 2 * n_b * p_pad * kc * c_dim
                  + 16 * n_b * p_pad * c_dim,
            transcendentals=n_b * p_pad * c_dim,
            bytes_accessed=4 * (2 * n_b * p_pad * c_dim)
                           + 2 * (rows * k2 + k2 * c_dim)
                           + 4 * (p_pad * kc + 4 * c_dim)),
    )(iden, patches, w2, bias2, u_mat, gamma, beta)


# ---------------------------------------------------------------------------
# Host-side glue (max-pool, im2col gathers, bilinear matrix) in plain JAX/numpy
# ---------------------------------------------------------------------------

def maxpool2x2(x):
    # nn.MaxPool2d(2, 2), floor mode (9 -> 4)
    n, h, w, c = x.shape
    ho, wo = h // 2, w // 2
    x = x[:, :ho * 2, :wo * 2, :].reshape(n, ho, 2, wo, 2, c)
    return jnp.max(x, axis=(2, 4))


def _bilinear_coeffs(out_size, in_size):
    # PyTorch nn.Upsample(mode='bilinear', align_corners=False)
    scale = in_size / out_size
    src = (np.arange(out_size, dtype=np.float64) + 0.5) * scale - 0.5
    src = np.maximum(src, 0.0)
    i0 = np.clip(np.floor(src).astype(np.int64), 0, in_size - 1)
    i1 = np.minimum(i0 + 1, in_size - 1)
    frac = (src - i0).astype(np.float32)
    return i0, i1, (1.0 - frac).astype(np.float32), frac


def _bilinear_axis_matrix(out_size, in_size):
    i0, i1, w0, w1 = _bilinear_coeffs(out_size, in_size)
    m = np.zeros((out_size, in_size), dtype=np.float32)
    for p in range(out_size):
        m[p, i0[p]] += w0[p]
        m[p, i1[p]] += w1[p]
    return m


def bilinear_upsample_matrix(out_size, in_size):
    """Dense (out_size^2, in_size^2) linear map equal to bilinear upsampling."""
    wh = _bilinear_axis_matrix(out_size, in_size)
    ww = _bilinear_axis_matrix(out_size, in_size)
    u = np.einsum("pi,qj->pqij", wh, ww).reshape(out_size * out_size,
                                                 in_size * in_size)
    return jnp.asarray(u, dtype=jnp.float32)


# ---------------------------------------------------------------------------
# Full forward pass (res_addNet.forward)
# ---------------------------------------------------------------------------

def res_addnet_forward(x_nchw, params):
    n_b = x_nchw.shape[0]
    x = jnp.transpose(x_nchw, (0, 2, 3, 1)).astype(jnp.bfloat16)    # NCHW -> NHWC

    # -------- conv3: Conv2d(64, 128, 5), valid padding: 13x13 -> 9x9 --------
    kh = kw = 5
    c_in = x.shape[-1]
    h_out = x.shape[1] - kh + 1
    w_out = x.shape[2] - kw + 1
    c_out = params["conv3_w"].shape[0]
    k_raw = kh * kw * c_in                          # 1600
    k_pad = _round_up(k_raw, 128)                   # 1664 (lane-aligned MXU feed)
    pieces = [x[:, i:i + h_out, j:j + w_out, :]
              for i in range(kh) for j in range(kw)]
    if k_pad != k_raw:                              # zero tail fused into the concat
        pieces.append(jnp.zeros((n_b, h_out, w_out, k_pad - k_raw), jnp.bfloat16))
    a1 = jnp.concatenate(pieces, axis=-1).reshape(n_b * h_out * w_out, k_pad)
    b1 = jnp.transpose(params["conv3_w"], (2, 3, 1, 0)).reshape(k_raw, c_out)
    b1 = jnp.pad(b1, ((0, k_pad - k_raw), (0, 0))).astype(jnp.bfloat16)
    identity = matmul_bias(a1, b1, params["conv3_b"])   # (N*81, 128) f32

    # ------ at3 + residual + BatchNorm + ReLU (one fused Pallas kernel) ------
    iden_nhwc = identity.reshape(n_b, h_out, w_out, c_out)
    pooled = maxpool2x2(iden_nhwc).astype(jnp.bfloat16)      # (N, 4, 4, 128)
    hp = pooled.shape[1]
    pooled_pad = jnp.pad(pooled, ((0, 0), (1, 1), (1, 1), (0, 0)))   # conv pad=1
    patches = jnp.concatenate(
        [pooled_pad[:, i:i + hp, j:j + hp, :] for i in range(3) for j in range(3)],
        axis=-1).reshape(n_b * hp * hp, 9 * c_out)           # (32, 1152) bf16
    w2 = jnp.transpose(params["at3_w"], (2, 3, 1, 0)).reshape(9 * c_out, c_out)
    w2 = w2.astype(jnp.bfloat16)

    p_true = h_out * w_out                                   # 81 output positions
    p_pad = _round_up(p_true, 8)                             # 88: explicit zero rows
    iden_p = jnp.pad(identity.reshape(n_b, p_true, c_out),
                     ((0, 0), (0, p_pad - p_true), (0, 0)))
    u_mat = bilinear_upsample_matrix(h_out, hp)              # (81, 16), const
    u_mat = jnp.pad(u_mat, ((0, p_pad - p_true), (0, 0)))    # (88, 16)

    out = fused_attn_bn_relu(iden_p, patches, w2, params["at3_b"], u_mat,
                             params["bn3_gamma"], params["bn3_beta"],
                             n_valid=n_b * p_true)           # (N, 88, 128)
    out = out[:, :p_true, :].reshape(n_b, h_out, w_out, c_out)
    return jnp.transpose(out, (0, 3, 1, 2))                  # NHWC -> NCHW


# ---------------------------------------------------------------------------

def make_params(key):
    k1, k2, k3, k4 = jax.random.split(key, 4)
    return {
        "conv3_w": jax.random.normal(k1, (128, 64, 5, 5), jnp.float32) * 0.02,
        "conv3_b": jax.random.normal(k2, (128,), jnp.float32) * 0.02,
        "at3_w": jax.random.normal(k3, (128, 128, 3, 3), jnp.float32) * 0.02,
        "at3_b": jax.random.normal(k4, (128,), jnp.float32) * 0.02,
        "bn3_gamma": jnp.ones((128,), jnp.float32),
        "bn3_beta": jnp.zeros((128,), jnp.float32),
    }


if __name__ == "__main__":
    key = jax.random.PRNGKey(0)
    kp, kx = jax.random.split(key)
    params = make_params(kp)
    # Input must be 13x13 so conv3's output is 9x9 (matching at3's up_size=9).
    x = jax.random.normal(kx, (2, 64, 13, 13), jnp.float32)

    fwd = jax.jit(lambda xx: res_addnet_forward(xx, params))
    out = jax.block_until_ready(fwd(x))
    assert out.shape == (2, 128, 9, 9)
    assert bool(jnp.all(jnp.isfinite(out)))
    print("KERNEL_OK")
</pallas_src>

<mosaic_0001>
module attributes {stable_mosaic.version = 11 : i64} {
  func.func @_matmul_bias_kernel(%arg0: i32, %arg1: memref<162x1664xbf16, #tpu.memory_space<vmem>>, %arg2: memref<1664x128xbf16, #tpu.memory_space<vmem>>, %arg3: memref<1x128xf32, #tpu.memory_space<vmem>>, %arg4: memref<162x128xf32, #tpu.memory_space<vmem>>) attributes {dimension_semantics = [#tpu.dimension_semantics<parallel>], iteration_bounds = array<i64: 1>, scalar_prefetch = 0 : i64, scratch_operands = 0 : i64, tpu.core_type = #tpu.core_type<tc>, window_params = [{transform_indices = @transform_0, window_bounds = array<i64: 162, 1664>}, {pipeline_mode = #tpu.pipeline_mode<synchronous>, transform_indices = @transform_1, window_bounds = array<i64: 1664, 128>}, {pipeline_mode = #tpu.pipeline_mode<synchronous>, transform_indices = @transform_2, window_bounds = array<i64: 1, 128>}, {transform_indices = @transform_3, window_bounds = array<i64: 162, 128>}]} {
    %c0 = arith.constant 0 : index
    %c0_0 = arith.constant 0 : index
    %0 = vector.load %arg1[%c0, %c0_0] : memref<162x1664xbf16, #tpu.memory_space<vmem>>, vector<162x1664xbf16>
    %c0_1 = arith.constant 0 : index
    %c0_2 = arith.constant 0 : index
    %1 = vector.load %arg2[%c0_1, %c0_2] : memref<1664x128xbf16, #tpu.memory_space<vmem>>, vector<1664x128xbf16>
    %cst = arith.constant dense<0.000000e+00> : vector<162x128xf32>
    %2 = tpu.matmul %0, %1, %cst {dimension_numbers = #tpu.dot_dimension_numbers<[1], [0], [0], [1], [0, 0, 1, 1], [], []>} : vector<162x1664xbf16>, vector<1664x128xbf16>, vector<162x128xf32> -> vector<162x128xf32>
    %c0_3 = arith.constant 0 : index
    %c0_4 = arith.constant 0 : index
    %3 = vector.load %arg3[%c0_3, %c0_4] : memref<1x128xf32, #tpu.memory_space<vmem>>, vector<1x128xf32>
    %4 = vector.broadcast %3 : vector<1x128xf32> to vector<162x128xf32>
    %5 = arith.addf %2, %4 : vector<162x128xf32>
    %c0_5 = arith.constant 0 : index
    %c0_6 = arith.constant 0 : index
    %6 = vector.load %arg4[%c0_5, %c0_6] : memref<162x128xf32, #tpu.memory_space<vmem>>, vector<162x128xf32>
    tpu.vector_store %arg4[%c0_5, %c0_6], %5 {strides = array<i32>} : memref<162x128xf32, #tpu.memory_space<vmem>>, vector<162x128xf32>,
    return
  }
  func.func @transform_0(%arg0: i32) -> (i32, i32) {
    %c0_i32 = arith.constant 0 : i32
    %c0_i32_0 = arith.constant 0 : i32
    return %arg0, %c0_i32 : i32, i32
  }
  func.func @transform_1(%arg0: i32) -> (i32, i32) {
    %c0_i32 = arith.constant 0 : i32
    %c0_i32_0 = arith.constant 0 : i32
    %c0_i32_1 = arith.constant 0 : i32
    return %c0_i32, %c0_i32_0 : i32, i32
  }
  func.func @transform_2(%arg0: i32) -> (i32, i32) {
    %c0_i32 = arith.constant 0 : i32
    %c0_i32_0 = arith.constant 0 : i32
    %c0_i32_1 = arith.constant 0 : i32
    return %c0_i32, %c0_i32_0 : i32, i32
  }
  func.func @transform_3(%arg0: i32) -> (i32, i32) {
    %c0_i32 = arith.constant 0 : i32
    %c0_i32_0 = arith.constant 0 : i32
    return %arg0, %c0_i32 : i32, i32
  }
}

module attributes {stable_mosaic.version = 11 : i64} {
  func.func @_fused_attn_bn_relu_kernel(%arg0: i32, %arg1: memref<2x88x128xf32, #tpu.memory_space<vmem>>, %arg2: memref<32x1152xbf16, #tpu.memory_space<vmem>>, %arg3: memref<1152x128xbf16, #tpu.memory_space<vmem>>, %arg4: memref<1x128xf32, #tpu.memory_space<vmem>>, %arg5: memref<88x16xf32, #tpu.memory_space<vmem>>, %arg6: memref<1x128xf32, #tpu.memory_space<vmem>>, %arg7: memref<1x128xf32, #tpu.memory_space<vmem>>, %arg8: memref<2x88x128xf32, #tpu.memory_space<vmem>>) attributes {dimension_semantics = [#tpu.dimension_semantics<arbitrary>], iteration_bounds = array<i64: 1>, scalar_prefetch = 0 : i64, scratch_operands = 0 : i64, tpu.core_type = #tpu.core_type<tc>, window_params = [{pipeline_mode = #tpu.pipeline_mode<synchronous>, transform_indices = @transform_0, window_bounds = array<i64: 2, 88, 128>}, {pipeline_mode = #tpu.pipeline_mode<synchronous>, transform_indices = @transform_1, window_bounds = array<i64: 32, 1152>}, {pipeline_mode = #tpu.pipeline_mode<synchronous>, transform_indices = @transform_2, window_bounds = array<i64: 1152, 128>}, {pipeline_mode = #tpu.pipeline_mode<synchronous>, transform_indices = @transform_3, window_bounds = array<i64: 1, 128>}, {pipeline_mode = #tpu.pipeline_mode<synchronous>, transform_indices = @transform_4, window_bounds = array<i64: 88, 16>}, {pipeline_mode = #tpu.pipeline_mode<synchronous>, transform_indices = @transform_5, window_bounds = array<i64: 1, 128>}, {pipeline_mode = #tpu.pipeline_mode<synchronous>, transform_indices = @transform_6, window_bounds = array<i64: 1, 128>}, {pipeline_mode = #tpu.pipeline_mode<synchronous>, transform_indices = @transform_7, window_bounds = array<i64: 2, 88, 128>}]} {
    %c0 = arith.constant 0 : index
    %c0_0 = arith.constant 0 : index
    %0 = vector.load %arg2[%c0, %c0_0] : memref<32x1152xbf16, #tpu.memory_space<vmem>>, vector<32x1152xbf16>
    %c0_1 = arith.constant 0 : index
    %c0_2 = arith.constant 0 : index
    %1 = vector.load %arg3[%c0_1, %c0_2] : memref<1152x128xbf16, #tpu.memory_space<vmem>>, vector<1152x128xbf16>
    %cst = arith.constant dense<0.000000e+00> : vector<32x128xf32>
    %2 = tpu.matmul %0, %1, %cst {dimension_numbers = #tpu.dot_dimension_numbers<[1], [0], [0], [1], [0, 0, 1, 1], [], []>} : vector<32x1152xbf16>, vector<1152x128xbf16>, vector<32x128xf32> -> vector<32x128xf32>
    %c0_3 = arith.constant 0 : index
    %c0_4 = arith.constant 0 : index
    %3 = vector.load %arg4[%c0_3, %c0_4] : memref<1x128xf32, #tpu.memory_space<vmem>>, vector<1x128xf32>
    %4 = vector.broadcast %3 : vector<1x128xf32> to vector<32x128xf32>
    %5 = arith.addf %2, %4 : vector<32x128xf32>
    %c0_5 = arith.constant 0 : index
    %c0_6 = arith.constant 0 : index
    %6 = vector.load %arg5[%c0_5, %c0_6] : memref<88x16xf32, #tpu.memory_space<vmem>>, vector<88x16xf32>
    %cst_7 = arith.constant 0.000000e+00 : f32
    %7 = vector.broadcast %cst_7 : f32 to vector<1x128xf32>
    %cst_8 = arith.constant 0.000000e+00 : f32
    %8 = vector.broadcast %cst_8 : f32 to vector<1x128xf32>
    %9 = vector.extract_strided_slice %5 {offsets = [0, 0], sizes = [16, 128], strides = [1, 1]} : vector<32x128xf32> to vector<16x128xf32>
    %cst_9 = arith.constant dense<0.000000e+00> : vector<88x128xf32>
    %10 = tpu.matmul %6, %9, %cst_9 {dimension_numbers = #tpu.dot_dimension_numbers<[1], [0], [0], [1], [0, 0, 1, 1], [], []>} : vector<88x16xf32>, vector<16x128xf32>, vector<88x128xf32> -> vector<88x128xf32>
    %cst_10 = arith.constant 0.000000e+00 : f32
    %11 = vector.broadcast %cst_10 : f32 to vector<88x128xf32>
    %12 = arith.subf %11, %10 : vector<88x128xf32>
    %13 = math.exp %12 : vector<88x128xf32>
    %cst_11 = arith.constant 1.000000e+00 : f32
    %14 = vector.broadcast %cst_11 : f32 to vector<88x128xf32>
    %15 = arith.addf %14, %13 : vector<88x128xf32>
    %16 = tpu.reciprocal %15 {approx = true} : vector<88x128xf32> -> vector<88x128xf32>
    %c0_12 = arith.constant 0 : index
    %c0_13 = arith.constant 0 : index
    %c0_14 = arith.constant 0 : index
    %17 = vector.load %arg1[%c0_12, %c0_13, %c0_14] : memref<2x88x128xf32, #tpu.memory_space<vmem>>, vector<1x88x128xf32>
    %18 = vector.shape_cast %17 : vector<1x88x128xf32> to vector<88x128xf32>
    %cst_15 = arith.constant 1.000000e+00 : f32
    %19 = vector.broadcast %cst_15 : f32 to vector<88x128xf32>
    %20 = arith.addf %19, %16 : vector<88x128xf32>
    %21 = arith.mulf %18, %20 : vector<88x128xf32>
    %cst_16 = arith.constant dense<0.000000e+00> : vector<128xf32>
    %22 = vector.multi_reduction <add>, %21, %cst_16 [0] : vector<88x128xf32> to vector<128xf32>
    %23 = vector.shape_cast %22 : vector<128xf32> to vector<1x128xf32>
    %24 = arith.addf %7, %23 : vector<1x128xf32>
    %25 = arith.mulf %21, %21 : vector<88x128xf32>
    %cst_17 = arith.constant dense<0.000000e+00> : vector<128xf32>
    %26 = vector.multi_reduction <add>, %25, %cst_17 [0] : vector<88x128xf32> to vector<128xf32>
    %27 = vector.shape_cast %26 : vector<128xf32> to vector<1x128xf32>
    %28 = arith.addf %8, %27 : vector<1x128xf32>
    %29 = vector.extract_strided_slice %5 {offsets = [16, 0], sizes = [16, 128], strides = [1, 1]} : vector<32x128xf32> to vector<16x128xf32>
    %cst_18 = arith.constant dense<0.000000e+00> : vector<88x128xf32>
    %30 = tpu.matmul %6, %29, %cst_18 {dimension_numbers = #tpu.dot_dimension_numbers<[1], [0], [0], [1], [0, 0, 1, 1], [], []>} : vector<88x16xf32>, vector<16x128xf32>, vector<88x128xf32> -> vector<88x128xf32>
    %cst_19 = arith.constant 0.000000e+00 : f32
    %31 = vector.broadcast %cst_19 : f32 to vector<88x128xf32>
    %32 = arith.subf %31, %30 : vector<88x128xf32>
    %33 = math.exp %32 : vector<88x128xf32>
    %cst_20 = arith.constant 1.000000e+00 : f32
    %34 = vector.broadcast %cst_20 : f32 to vector<88x128xf32>
    %35 = arith.addf %34, %33 : vector<88x128xf32>
    %36 = tpu.reciprocal %35 {approx = true} : vector<88x128xf32> -> vector<88x128xf32>
    %c1 = arith.constant 1 : index
    %c0_21 = arith.constant 0 : index
    %c0_22 = arith.constant 0 : index
    %37 = vector.load %arg1[%c1, %c0_21, %c0_22] : memref<2x88x128xf32, #tpu.memory_space<vmem>>, vector<1x88x128xf32>
    %38 = vector.shape_cast %37 : vector<1x88x128xf32> to vector<88x128xf32>
    %cst_23 = arith.constant 1.000000e+00 : f32
    %39 = vector.broadcast %cst_23 : f32 to vector<88x128xf32>
    %40 = arith.addf %39, %36 : vector<88x128xf32>
    %41 = arith.mulf %38, %40 : vector<88x128xf32>
    %cst_24 = arith.constant dense<0.000000e+00> : vector<128xf32>
    %42 = vector.multi_reduction <add>, %41, %cst_24 [0] : vector<88x128xf32> to vector<128xf32>
    %43 = vector.shape_cast %42 : vector<128xf32> to vector<1x128xf32>
    %44 = arith.addf %24, %43 : vector<1x128xf32>
    %45 = arith.mulf %41, %41 : vector<88x128xf32>
    %cst_25 = arith.constant dense<0.000000e+00> : vector<128xf32>
    %46 = vector.multi_reduction <add>, %45, %cst_25 [0] : vector<88x128xf32> to vector<128xf32>
    %47 = vector.shape_cast %46 : vector<128xf32> to vector<1x128xf32>
    %48 = arith.addf %28, %47 : vector<1x128xf32>
    %cst_26 = arith.constant 0.00617283955 : f32
    %49 = vector.broadcast %cst_26 : f32 to vector<1x128xf32>
    %50 = arith.mulf %44, %49 : vector<1x128xf32>
    %cst_27 = arith.constant 0.00617283955 : f32
    %51 = vector.broadcast %cst_27 : f32 to vector<1x128xf32>
    %52 = arith.mulf %48, %51 : vector<1x128xf32>
    %53 = arith.mulf %50, %50 : vector<1x128xf32>
    %54 = arith.subf %52, %53 : vector<1x128xf32>
    %c0_28 = arith.constant 0 : index
    %c0_29 = arith.constant 0 : index
    %55 = vector.load %arg6[%c0_28, %c0_29] : memref<1x128xf32, #tpu.memory_space<vmem>>, vector<1x128xf32>
    %cst_30 = arith.constant 9.99999974E-6 : f32
    %56 = vector.broadcast %cst_30 : f32 to vector<1x128xf32>
    %57 = arith.addf %54, %56 : vector<1x128xf32>
    %58 = math.rsqrt %57 : vector<1x128xf32>
    %59 = arith.mulf %55, %58 : vector<1x128xf32>
    %c0_31 = arith.constant 0 : index
    %c0_32 = arith.constant 0 : index
    %60 = vector.load %arg7[%c0_31, %c0_32] : memref<1x128xf32, #tpu.memory_space<vmem>>, vector<1x128xf32>
    %61 = arith.mulf %50, %59 : vector<1x128xf32>
    %62 = arith.subf %60, %61 : vector<1x128xf32>
    %63 = vector.broadcast %59 : vector<1x128xf32> to vector<88x128xf32>
    %64 = arith.mulf %21, %63 : vector<88x128xf32>
    %65 = vector.broadcast %62 : vector<1x128xf32> to vector<88x128xf32>
    %66 = arith.addf %64, %65 : vector<88x128xf32>
    %cst_33 = arith.constant 0.000000e+00 : f32
    %67 = vector.broadcast %cst_33 : f32 to vector<88x128xf32>
    %68 = arith.maximumf %66, %67 : vector<88x128xf32>
    %c0_34 = arith.constant 0 : index
    %c0_35 = arith.constant 0 : index
    %c0_36 = arith.constant 0 : index
    %69 = vector.load %arg8[%c0_34, %c0_35, %c0_36] : memref<2x88x128xf32, #tpu.memory_space<vmem>>, vector<1x88x128xf32>
    %70 = vector.shape_cast %69 : vector<1x88x128xf32> to vector<88x128xf32>
    %71 = vector.shape_cast %68 : vector<88x128xf32> to vector<1x88x128xf32>
    tpu.vector_store %arg8[%c0_34, %c0_35, %c0_36], %71 {strides = array<i32>} : memref<2x88x128xf32, #tpu.memory_space<vmem>>, vector<1x88x128xf32>,
    %72 = vector.broadcast %59 : vector<1x128xf32> to vector<88x128xf32>
    %73 = arith.mulf %41, %72 : vector<88x128xf32>
    %74 = vector.broadcast %62 : vector<1x128xf32> to vector<88x128xf32>
    %75 = arith.addf %73, %74 : vector<88x128xf32>
    %cst_37 = arith.constant 0.000000e+00 : f32
    %76 = vector.broadcast %cst_37 : f32 to vector<88x128xf32>
    %77 = arith.maximumf %75, %76 : vector<88x128xf32>
    %c1_38 = arith.constant 1 : index
    %c0_39 = arith.constant 0 : index
    %c0_40 = arith.constant 0 : index
    %78 = vector.load %arg8[%c1_38, %c0_39, %c0_40] : memref<2x88x128xf32, #tpu.memory_space<vmem>>, vector<1x88x128xf32>
    %79 = vector.shape_cast %78 : vector<1x88x128xf32> to vector<88x128xf32>
    %80 = vector.shape_cast %77 : vector<88x128xf32> to vector<1x88x128xf32>
    tpu.vector_store %arg8[%c1_38, %c0_39, %c0_40], %80 {strides = array<i32>} : memref<2x88x128xf32, #tpu.memory_space<vmem>>, vector<1x88x128xf32>,
    return
  }
  func.func @transform_0(%arg0: i32) -> (i32, i32, i32) {
    %c0_i32 = arith.constant 0 : i32
    %c0_i32_0 = arith.constant 0 : i32
    %c0_i32_1 = arith.constant 0 : i32
    %c0_i32_2 = arith.constant 0 : i32
    return %c0_i32, %c0_i32_0, %c0_i32_1 : i32, i32, i32
  }
  func.func @transform_1(%arg0: i32) -> (i32, i32) {
    %c0_i32 = arith.constant 0 : i32
    %c0_i32_0 = arith.constant 0 : i32
    %c0_i32_1 = arith.constant 0 : i32
    return %c0_i32, %c0_i32_0 : i32, i32
  }
  func.func @transform_2(%arg0: i32) -> (i32, i32) {
    %c0_i32 = arith.constant 0 : i32
    %c0_i32_0 = arith.constant 0 : i32
    %c0_i32_1 = arith.constant 0 : i32
    return %c0_i32, %c0_i32_0 : i32, i32
  }
  func.func @transform_3(%arg0: i32) -> (i32, i32) {
    %c0_i32 = arith.constant 0 : i32
    %c0_i32_0 = arith.constant 0 : i32
    %c0_i32_1 = arith.constant 0 : i32
    return %c0_i32, %c0_i32_0 : i32, i32
  }
  func.func @transform_4(%arg0: i32) -> (i32, i32) {
    %c0_i32 = arith.constant 0 : i32
    %c0_i32_0 = arith.constant 0 : i32
    %c0_i32_1 = arith.constant 0 : i32
    return %c0_i32, %c0_i32_0 : i32, i32
  }
  func.func @transform_5(%arg0: i32) -> (i32, i32) {
    %c0_i32 = arith.constant 0 : i32
    %c0_i32_0 = arith.constant 0 : i32
    %c0_i32_1 = arith.constant 0 : i32
    return %c0_i32, %c0_i32_0 : i32, i32
  }
  func.func @transform_6(%arg0: i32) -> (i32, i32) {
    %c0_i32 = arith.constant 0 : i32
    %c0_i32_0 = arith.constant 0 : i32
    %c0_i32_1 = arith.constant 0 : i32
    return %c0_i32, %c0_i32_0 : i32, i32
  }
  func.func @transform_7(%arg0: i32) -> (i32, i32, i32) {
    %c0_i32 = arith.constant 0 : i32
    %c0_i32_0 = arith.constant 0 : i32
    %c0_i32_1 = arith.constant 0 : i32
    %c0_i32_2 = arith.constant 0 : i32
    return %c0_i32, %c0_i32_0, %c0_i32_1 : i32, i32, i32
  }
}

</mosaic_0001>

<llo_original>
// kernel: _lambda_.2
$region0: #{_lambda_.2}
  #allocation0 [shape = 'u32[]', space=smem, size = 0x4, offset = 0x4, fixed_abs, tag = 'smem constant byte address 0x4 - core index']
  #allocation1 [shape = 'u32[144,128]{1,0:T(1,128)}', space=vmem, size = 0x12000, scoped, tag = 'internal scratch']
  %s0 = inlined_call_operand.vmem [shape: bf16[162,1664], index: 0, kind: input, shape index: {}]
  %s1 = inlined_call_operand.vmem [shape: bf16[1664,128], index: 1, kind: input, shape index: {}]
  %s2 = inlined_call_operand.vmem [shape: f32[1,128], index: 2, kind: input, shape index: {}]
  %s3 = inlined_call_operand.vmem [shape: f32[162,128], index: 3, kind: output, shape index: {}]
  %s4 = sld [smem:[#allocation0]]
  $region22: #{_lambda_.2} parent=0
    _
  %s6 = ssub.s32 1, %s4
  %s7 = scalar_select 0, %s6, %s4
  // Predicated region
  $region2: #{_lambda_.2} parent=0 // pred_check
    _
  $region3: #{_lambda_.2} parent=0 // pred_check_branch
    %9 = sbr.rel (0) target = $region5
  $region4: #{_lambda_.2} parent=0 // pred_region
    _
  $region5: #{_lambda_.2} parent=0 // pred_fallthru
    _
  // Predicated region
  $region6: #{_lambda_.2} parent=0 // pred_check
    _
  $region7: #{_lambda_.2} parent=0 // pred_check_branch
    %11 = sbr.rel (0) target = $region9
  $region8: #{_lambda_.2} parent=0 // pred_region
    _
  $region9: #{_lambda_.2} parent=0 // pred_fallthru
    _
  // Predicated region
  $region10: #{_lambda_.2} parent=0 // pred_check
    _
  $region11: #{_lambda_.2} parent=0 // pred_check_branch
    %13 = sbr.rel (0) target = $region13
  $region12: #{_lambda_.2} parent=0 // pred_region
    _
  $region13: #{_lambda_.2} parent=0 // pred_fallthru
    _
  %v15 = vld [vmem:[%s0] sm:$0xff]
  %v16 = vld [vmem:[%s0 + $0x8] sm:$0xff]
  %v17 = vld [vmem:[%s0 + $0x10] sm:$0xff]
  %v18 = vld [vmem:[%s0 + $0x18] sm:$0xff]
  %v19 = vld [vmem:[%s0 + $0x20] sm:$0xff]
  %v20 = vld [vmem:[%s0 + $0x28] sm:$0xff]
  %v21 = vld [vmem:[%s0 + $0x30] sm:$0xf]
  %v22 = vld [vmem:[%s0 + $0x34] sm:$0xff]
  %v23 = vld [vmem:[%s0 + $0x3c] sm:$0xff]
  %v24 = vld [vmem:[%s0 + $0x44] sm:$0xff]
  %v25 = vld [vmem:[%s0 + $0x4c] sm:$0xff]
  %v26 = vld [vmem:[%s0 + $0x54] sm:$0xff]
  %v27 = vld [vmem:[%s0 + $0x5c] sm:$0xff]
  %v28 = vld [vmem:[%s0 + $0x64] sm:$0xf]
  %v29 = vld [vmem:[%s0 + $0x68] sm:$0xff]
  %v30 = vld [vmem:[%s0 + $0x70] sm:$0xff]
  %v31 = vld [vmem:[%s0 + $0x78] sm:$0xff]
  %v32 = vld [vmem:[%s0 + $0x80] sm:$0xff]
  %v33 = vld [vmem:[%s0 + $0x88] sm:$0xff]
  %v34 = vld [vmem:[%s0 + $0x90] sm:$0xff]
  %v35 = vld [vmem:[%s0 + $0x98] sm:$0xf]
  %v36 = vld [vmem:[%s0 + $0x9c] sm:$0xff]
  %v37 = vld [vmem:[%s0 + $0xa4] sm:$0xff]
  %v38 = vld [vmem:[%s0 + $0xac] sm:$0xff]
  %v39 = vld [vmem:[%s0 + $0xb4] sm:$0xff]
  %v40 = vld [vmem:[%s0 + $0xbc] sm:$0xff]
  %v41 = vld [vmem:[%s0 + $0xc4] sm:$0xff]
  %v42 = vld [vmem:[%s0 + $0xcc] sm:$0xf]
  %v43 = vld [vmem:[%s0 + $0xd0] sm:$0xff]
  %v44 = vld [vmem:[%s0 + $0xd8] sm:$0xff]
  %v45 = vld [vmem:[%s0 + $0xe0] sm:$0xff]
  %v46 = vld [vmem:[%s0 + $0xe8] sm:$0xff]
  %v47 = vld [vmem:[%s0 + $0xf0] sm:$0xff]
  %v48 = vld [vmem:[%s0 + $0xf8] sm:$0xff]
  %v49 = vld [vmem:[%s0 + $0x100] sm:$0xf]
  %v50 = vld [vmem:[%s0 + $0x104] sm:$0xff]
  %v51 = vld [vmem:[%s0 + $0x10c] sm:$0xff]
  %v52 = vld [vmem:[%s0 + $0x114] sm:$0xff]
  %v53 = vld [vmem:[%s0 + $0x11c] sm:$0xff]
  %v54 = vld [vmem:[%s0 + $0x124] sm:$0xff]
  %v55 = vld [vmem:[%s0 + $0x12c] sm:$0xff]
  %v56 = vld [vmem:[%s0 + $0x134] sm:$0xf]
  %v57 = vld [vmem:[%s0 + $0x138] sm:$0xff]
  %v58 = vld [vmem:[%s0 + $0x140] sm:$0xff]
  %v59 = vld [vmem:[%s0 + $0x148] sm:$0xff]
  %v60 = vld [vmem:[%s0 + $0x150] sm:$0xff]
  %v61 = vld [vmem:[%s0 + $0x158] sm:$0xff]
  %v62 = vld [vmem:[%s0 + $0x160] sm:$0xff]
  %v63 = vld [vmem:[%s0 + $0x168] sm:$0xf]
  %v64 = vld [vmem:[%s0 + $0x16c] sm:$0xff]
  %v65 = vld [vmem:[%s0 + $0x174] sm:$0xff]
  %v66 = vld [vmem:[%s0 + $0x17c] sm:$0xff]
  %v67 = vld [vmem:[%s0 + $0x184] sm:$0xff]
  %v68 = vld [vmem:[%s0 + $0x18c] sm:$0xff]
  %v69 = vld [vmem:[%s0 + $0x194] sm:$0xff]
  %v70 = vld [vmem:[%s0 + $0x19c] sm:$0xf]
  %v71 = vld [vmem:[%s0 + $0x1a0] sm:$0xff]
  %v72 = vld [vmem:[%s0 + $0x1a8] sm:$0xff]
  %v73 = vld [vmem:[%s0 + $0x1b0] sm:$0xff]
  %v74 = vld [vmem:[%s0 + $0x1b8] sm:$0xff]
  %v75 = vld [vmem:[%s0 + $0x1c0] sm:$0xff]
  %v76 = vld [vmem:[%s0 + $0x1c8] sm:$0xff]
  %v77 = vld [vmem:[%s0 + $0x1d0] sm:$0xf]
  %v78 = vld [vmem:[%s0 + $0x1d4] sm:$0xff]
  %v79 = vld [vmem:[%s0 + $0x1dc] sm:$0xff]
  %v80 = vld [vmem:[%s0 + $0x1e4] sm:$0xff]
  %v81 = vld [vmem:[%s0 + $0x1ec] sm:$0xff]
  %v82 = vld [vmem:[%s0 + $0x1f4] sm:$0xff]
  %v83 = vld [vmem:[%s0 + $0x1fc] sm:$0xff]
  %v84 = vld [vmem:[%s0 + $0x204] sm:$0xf]
  %v85 = vld [vmem:[%s0 + $0x208] sm:$0xff]
  %v86 = vld [vmem:[%s0 + $0x210] sm:$0xff]
  %v87 = vld [vmem:[%s0 + $0x218] sm:$0xff]
  %v88 = vld [vmem:[%s0 + $0x220] sm:$0xff]
  %v89 = vld [vmem:[%s0 + $0x228] sm:$0xff]
  %v90 = vld [vmem:[%s0 + $0x230] sm:$0xff]
  %v91 = vld [vmem:[%s0 + $0x238] sm:$0xf]
  %v92 = vld [vmem:[%s0 + $0x23c] sm:$0xff]
  %v93 = vld [vmem:[%s0 + $0x244] sm:$0xff]
  %v94 = vld [vmem:[%s0 + $0x24c] sm:$0xff]
  %v95 = vld [vmem:[%s0 + $0x254] sm:$0xff]
  %v96 = vld [vmem:[%s0 + $0x25c] sm:$0xff]
  %v97 = vld [vmem:[%s0 + $0x264] sm:$0xff]
  %v98 = vld [vmem:[%s0 + $0x26c] sm:$0xf]
  %v99 = vld [vmem:[%s0 + $0x270] sm:$0xff]
  %v100 = vld [vmem:[%s0 + $0x278] sm:$0xff]
  %v101 = vld [vmem:[%s0 + $0x280] sm:$0xff]
  %v102 = vld [vmem:[%s0 + $0x288] sm:$0xff]
  %v103 = vld [vmem:[%s0 + $0x290] sm:$0xff]
  %v104 = vld [vmem:[%s0 + $0x298] sm:$0xff]
  %v105 = vld [vmem:[%s0 + $0x2a0] sm:$0xf]
  %v106 = vld [vmem:[%s0 + $0x2a4] sm:$0xff]
  %v107 = vld [vmem:[%s0 + $0x2ac] sm:$0xff]
  %v108 = vld [vmem:[%s0 + $0x2b4] sm:$0xff]
  %v109 = vld [vmem:[%s0 + $0x2bc] sm:$0xff]
  %v110 = vld [vmem:[%s0 + $0x2c4] sm:$0xff]
  %v111 = vld [vmem:[%s0 + $0x2cc] sm:$0xff]
  %v112 = vld [vmem:[%s0 + $0x2d4] sm:$0xf]
  %v113 = vld [vmem:[%s0 + $0x2d8] sm:$0xff]
  %v114 = vld [vmem:[%s0 + $0x2e0] sm:$0xff]
  %v115 = vld [vmem:[%s0 + $0x2e8] sm:$0xff]
  %v116 = vld [vmem:[%s0 + $0x2f0] sm:$0xff]
  %v117 = vld [vmem:[%s0 + $0x2f8] sm:$0xff]
  %v118 = vld [vmem:[%s0 + $0x300] sm:$0xff]
  %v119 = vld [vmem:[%s0 + $0x308] sm:$0xf]
  %v120 = vld [vmem:[%s0 + $0x30c] sm:$0xff]
  %v121 = vld [vmem:[%s0 + $0x314] sm:$0xff]
  %v122 = vld [vmem:[%s0 + $0x31c] sm:$0xff]
  %v123 = vld [vmem:[%s0 + $0x324] sm:$0xff]
  %v124 = vld [vmem:[%s0 + $0x32c] sm:$0xff]
  %v125 = vld [vmem:[%s0 + $0x334] sm:$0xff]
  %v126 = vld [vmem:[%s0 + $0x33c] sm:$0xf]
  %v127 = vld [vmem:[%s0 + $0x340] sm:$0xff]
  %v128 = vld [vmem:[%s0 + $0x348] sm:$0xff]
  %v129 = vld [vmem:[%s0 + $0x350] sm:$0xff]
  %v130 = vld [vmem:[%s0 + $0x358] sm:$0xff]
  %v131 = vld [vmem:[%s0 + $0x360] sm:$0xff]
  %v132 = vld [vmem:[%s0 + $0x368] sm:$0xff]
  %v133 = vld [vmem:[%s0 + $0x370] sm:$0xf]
  %v134 = vld [vmem:[%s0 + $0x374] sm:$0xff]
  %v135 = vld [vmem:[%s0 + $0x37c] sm:$0xff]
  %v136 = vld [vmem:[%s0 + $0x384] sm:$0xff]
  %v137 = vld [vmem:[%s0 + $0x38c] sm:$0xff]
  %v138 = vld [vmem:[%s0 + $0x394] sm:$0xff]
  %v139 = vld [vmem:[%s0 + $0x39c] sm:$0xff]
  %v140 = vld [vmem:[%s0 + $0x3a4] sm:$0xf]
  %v141 = vld [vmem:[%s0 + $0x3a8] sm:$0xff]
  %v142 = vld [vmem:[%s0 + $0x3b0] sm:$0xff]
  %v143 = vld [vmem:[%s0 + $0x3b8] sm:$0xff]
  %v144 = vld [vmem:[%s0 + $0x3c0] sm:$0xff]
  %v145 = vld [vmem:[%s0 + $0x3c8] sm:$0xff]
  %v146 = vld [vmem:[%s0 + $0x3d0] sm:$0xff]
  %v147 = vld [vmem:[%s0 + $0x3d8] sm:$0xf]
  %v148 = vld [vmem:[%s0 + $0x3dc] sm:$0xff]
  %v149 = vld [vmem:[%s0 + $0x3e4] sm:$0xff]
  %v150 = vld [vmem:[%s0 + $0x3ec] sm:$0xff]
  %v151 = vld [vmem:[%s0 + $0x3f4] sm:$0xff]
  %v152 = vld [vmem:[%s0 + $0x3fc] sm:$0xff]
  %v153 = vld [vmem:[%s0 + $0x404] sm:$0xff]
  %v154 = vld [vmem:[%s0 + $0x40c] sm:$0xf]
  %v155 = vld [vmem:[%s0 + $0x410] sm:$0x11]
  %v156 = vld [vmem:[%s0 + $0x418] sm:$0x11]
  %v157 = vld [vmem:[%s0 + $0x420] sm:$0x11]
  %v158 = vld [vmem:[%s0 + $0x428] sm:$0x11]
  %v159 = vld [vmem:[%s0 + $0x430] sm:$0x11]
  %v160 = vld [vmem:[%s0 + $0x438] sm:$0x11]
  %v161 = vld [vmem:[%s0 + $0x440] sm:$0x1]
  %v162 = vld [vmem:[%s1] sm:$0xf]
  %v163 = vld [vmem:[%s1 + $0x4] sm:$0xf]
  %v164 = vld [vmem:[%s1 + $0x8] sm:$0xf]
  %v165 = vld [vmem:[%s1 + $0xc] sm:$0xf]
  %v166 = vld [vmem:[%s1 + $0x10] sm:$0xf]
  %v167 = vld [vmem:[%s1 + $0x14] sm:$0xf]
  %v168 = vld [vmem:[%s1 + $0x18] sm:$0xf]
  %v169 = vld [vmem:[%s1 + $0x1c] sm:$0xf]
  %v170 = vld [vmem:[%s1 + $0x20] sm:$0xf]
  %v171 = vld [vmem:[%s1 + $0x24] sm:$0xf]
  %v172 = vld [vmem:[%s1 + $0x28] sm:$0xf]
  %v173 = vld [vmem:[%s1 + $0x2c] sm:$0xf]
  %v174 = vld [vmem:[%s1 + $0x30] sm:$0xf]
  %v175 = vld [vmem:[%s1 + $0x34] sm:$0xf]
  %v176 = vld [vmem:[%s1 + $0x38] sm:$0xf]
  %v177 = vld [vmem:[%s1 + $0x3c] sm:$0xf]
  %v178 = vld [vmem:[%s1 + $0x40] sm:$0xf]
  %v179 = vld [vmem:[%s1 + $0x44] sm:$0xf]
  %v180 = vld [vmem:[%s1 + $0x48] sm:$0xf]
  %v181 = vld [vmem:[%s1 + $0x4c] sm:$0xf]
  %v182 = vld [vmem:[%s1 + $0x50] sm:$0xf]
  %v183 = vld [vmem:[%s1 + $0x54] sm:$0xf]
  %v184 = vld [vmem:[%s1 + $0x58] sm:$0xf]
  %v185 = vld [vmem:[%s1 + $0x5c] sm:$0xf]
  %v186 = vld [vmem:[%s1 + $0x60] sm:$0xf]
  %v187 = vld [vmem:[%s1 + $0x64] sm:$0xf]
  %v188 = vld [vmem:[%s1 + $0x68] sm:$0xf]
  %v189 = vld [vmem:[%s1 + $0x6c] sm:$0xf]
  %v190 = vld [vmem:[%s1 + $0x70] sm:$0xf]
  %v191 = vld [vmem:[%s1 + $0x74] sm:$0xf]
  %v192 = vld [vmem:[%s1 + $0x78] sm:$0xf]
  %v193 = vld [vmem:[%s1 + $0x7c] sm:$0xf]
  %v194 = vld [vmem:[%s1 + $0x80] sm:$0xf]
  %v195 = vld [vmem:[%s1 + $0x84] sm:$0xf]
  %v196 = vld [vmem:[%s1 + $0x88] sm:$0xf]
  %v197 = vld [vmem:[%s1 + $0x8c] sm:$0xf]
  %v198 = vld [vmem:[%s1 + $0x90] sm:$0xf]
  %v199 = vld [vmem:[%s1 + $0x94] sm:$0xf]
  %v200 = vld [vmem:[%s1 + $0x98] sm:$0xf]
  %v201 = vld [vmem:[%s1 + $0x9c] sm:$0xf]
  %v202 = vld [vmem:[%s1 + $0xa0] sm:$0xf]
  %v203 = vld [vmem:[%s1 + $0xa4] sm:$0xf]
  %v204 = vld [vmem:[%s1 + $0xa8] sm:$0xf]
  %v205 = vld [vmem:[%s1 + $0xac] sm:$0xf]
  %v206 = vld [vmem:[%s1 + $0xb0] sm:$0xf]
  %v207 = vld [vmem:[%s1 + $0xb4] sm:$0xf]
  %v208 = vld [vmem:[%s1 + $0xb8] sm:$0xf]
  %v209 = vld [vmem:[%s1 + $0xbc] sm:$0xf]
  %v210 = vld [vmem:[%s1 + $0xc0] sm:$0xf]
  %v211 = vld [vmem:[%s1 + $0xc4] sm:$0xf]
  %v212 = vld [vmem:[%s1 + $0xc8] sm:$0xf]
  %v213 = vld [vmem:[%s1 + $0xcc] sm:$0xf]
  %v214 = vld [vmem:[%s1 + $0xd0] sm:$0xf]
  %v215 = vld [vmem:[%s1 + $0xd4] sm:$0xf]
  %v216 = vld [vmem:[%s1 + $0xd8] sm:$0xf]
  %v217 = vld [vmem:[%s1 + $0xdc] sm:$0xf]
  %v218 = vld [vmem:[%s1 + $0xe0] sm:$0xf]
  %v219 = vld [vmem:[%s1 + $0xe4] sm:$0xf]
  %v220 = vld [vmem:[%s1 + $0xe8] sm:$0xf]
  %v221 = vld [vmem:[%s1 + $0xec] sm:$0xf]
  %v222 = vld [vmem:[%s1 + $0xf0] sm:$0xf]
  %v223 = vld [vmem:[%s1 + $0xf4] sm:$0xf]
  %v224 = vld [vmem:[%s1 + $0xf8] sm:$0xf]
  %v225 = vld [vmem:[%s1 + $0xfc] sm:$0xf]
  %v226 = vld [vmem:[%s1 + $0x100] sm:$0xf]
  %v227 = vld [vmem:[%s1 + $0x104] sm:$0xf]
  %v228 = vld [vmem:[%s1 + $0x108] sm:$0xf]
  %v229 = vld [vmem:[%s1 + $0x10c] sm:$0xf]
  %v230 = vld [vmem:[%s1 + $0x110] sm:$0xf]
  %v231 = vld [vmem:[%s1 + $0x114] sm:$0xf]
  %v232 = vld [vmem:[%s1 + $0x118] sm:$0xf]
  %v233 = vld [vmem:[%s1 + $0x11c] sm:$0xf]
  %v234 = vld [vmem:[%s1 + $0x120] sm:$0xf]
  %v235 = vld [vmem:[%s1 + $0x124] sm:$0xf]
  %v236 = vld [vmem:[%s1 + $0x128] sm:$0xf]
  %v237 = vld [vmem:[%s1 + $0x12c] sm:$0xf]
  %v238 = vld [vmem:[%s1 + $0x130] sm:$0xf]
  %v239 = vld [vmem:[%s1 + $0x134] sm:$0xf]
  %v240 = vld [vmem:[%s1 + $0x138] sm:$0xf]
  %v241 = vld [vmem:[%s1 + $0x13c] sm:$0xf]
  %v242 = vld [vmem:[%s1 + $0x140] sm:$0xf]
  %v243 = vld [vmem:[%s1 + $0x144] sm:$0xf]
  %v244 = vld [vmem:[%s1 + $0x148] sm:$0xf]
  %v245 = vld [vmem:[%s1 + $0x14c] sm:$0xf]
  %v246 = vld [vmem:[%s1 + $0x150] sm:$0xf]
  %v247 = vld [vmem:[%s1 + $0x154] sm:$0xf]
  %v248 = vld [vmem:[%s1 + $0x158] sm:$0xf]
  %v249 = vld [vmem:[%s1 + $0x15c] sm:$0xf]
  %v250 = vld [vmem:[%s1 + $0x160] sm:$0xf]
  %v251 = vld [vmem:[%s1 + $0x164] sm:$0xf]
  %v252 = vld [vmem:[%s1 + $0x168] sm:$0xf]
  %v253 = vld [vmem:[%s1 + $0x16c] sm:$0xf]
  %v254 = vld [vmem:[%s1 + $0x170] sm:$0xf]
  %v255 = vld [vmem:[%s1 + $0x174] sm:$0xf]
  %v256 = vld [vmem:[%s1 + $0x178] sm:$0xf]
  %v257 = vld [vmem:[%s1 + $0x17c] sm:$0xf]
  %v258 = vld [vmem:[%s1 + $0x180] sm:$0xf]
  %v259 = vld [vmem:[%s1 + $0x184] sm:$0xf]
  %v260 = vld [vmem:[%s1 + $0x188] sm:$0xf]
  %v261 = vld [vmem:[%s1 + $0x18c] sm:$0xf]
  %v262 = vld [vmem:[%s1 + $0x190] sm:$0xf]
  %v263 = vld [vmem:[%s1 + $0x194] sm:$0xf]
  %v264 = vld [vmem:[%s1 + $0x198] sm:$0xf]
  %v265 = vld [vmem:[%s1 + $0x19c] sm:$0xf]
  %v266 = vld [vmem:[%s1 + $0x1a0] sm:$0xf]
  %v267 = vld [vmem:[%s1 + $0x1a4] sm:$0xf]
  %v268 = vld [vmem:[%s1 + $0x1a8] sm:$0xf]
  %v269 = vld [vmem:[%s1 + $0x1ac] sm:$0xf]
  %v270 = vld [vmem:[%s1 + $0x1b0] sm:$0xf]
  %v271 = vld [vmem:[%s1 + $0x1b4] sm:$0xf]
  %v272 = vld [vmem:[%s1 + $0x1b8] sm:$0xf]
  %v273 = vld [vmem:[%s1 + $0x1bc] sm:$0xf]
  %v274 = vld [vmem:[%s1 + $0x1c0] sm:$0xf]
  %v275 = vld [vmem:[%s1 + $0x1c4] sm:$0xf]
  %v276 = vld [vmem:[%s1 + $0x1c8] sm:$0xf]
  %v277 = vld [vmem:[%s1 + $0x1cc] sm:$0xf]
  %v278 = vld [vmem:[%s1 + $0x1d0] sm:$0xf]
  %v279 = vld [vmem:[%s1 + $0x1d4] sm:$0xf]
  %v280 = vld [vmem:[%s1 + $0x1d8] sm:$0xf]
  %v281 = vld [vmem:[%s1 + $0x1dc] sm:$0xf]
  %v282 = vld [vmem:[%s1 + $0x1e0] sm:$0xf]
  %v283 = vld [vmem:[%s1 + $0x1e4] sm:$0xf]
  %v284 = vld [vmem:[%s1 + $0x1e8] sm:$0xf]
  %v285 = vld [vmem:[%s1 + $0x1ec] sm:$0xf]
  %v286 = vld [vmem:[%s1 + $0x1f0] sm:$0xf]
  %v287 = vld [vmem:[%s1 + $0x1f4] sm:$0xf]
  %v288 = vld [vmem:[%s1 + $0x1f8] sm:$0xf]
  %v289 = vld [vmem:[%s1 + $0x1fc] sm:$0xf]
  %v290 = vld [vmem:[%s1 + $0x200] sm:$0xf]
  %v291 = vld [vmem:[%s1 + $0x204] sm:$0xf]
  %v292 = vld [vmem:[%s1 + $0x208] sm:$0xf]
  %v293 = vld [vmem:[%s1 + $0x20c] sm:$0xf]
  %v294 = vld [vmem:[%s1 + $0x210] sm:$0xf]
  %v295 = vld [vmem:[%s1 + $0x214] sm:$0xf]
  %v296 = vld [vmem:[%s1 + $0x218] sm:$0xf]
  %v297 = vld [vmem:[%s1 + $0x21c] sm:$0xf]
  %v298 = vld [vmem:[%s1 + $0x220] sm:$0xf]
  %v299 = vld [vmem:[%s1 + $0x224] sm:$0xf]
  %v300 = vld [vmem:[%s1 + $0x228] sm:$0xf]
  %v301 = vld [vmem:[%s1 + $0x22c] sm:$0xf]
  %v302 = vld [vmem:[%s1 + $0x230] sm:$0xf]
  %v303 = vld [vmem:[%s1 + $0x234] sm:$0xf]
  %v304 = vld [vmem:[%s1 + $0x238] sm:$0xf]
  %v305 = vld [vmem:[%s1 + $0x23c] sm:$0xf]
  %v306 = vld [vmem:[%s1 + $0x240] sm:$0xf]
  %v307 = vld [vmem:[%s1 + $0x244] sm:$0xf]
  %v308 = vld [vmem:[%s1 + $0x248] sm:$0xf]
  %v309 = vld [vmem:[%s1 + $0x24c] sm:$0xf]
  %v310 = vld [vmem:[%s1 + $0x250] sm:$0xf]
  %v311 = vld [vmem:[%s1 + $0x254] sm:$0xf]
  %v312 = vld [vmem:[%s1 + $0x258] sm:$0xf]
  %v313 = vld [vmem:[%s1 + $0x25c] sm:$0xf]
  %v314 = vld [vmem:[%s1 + $0x260] sm:$0xf]
  %v315 = vld [vmem:[%s1 + $0x264] sm:$0xf]
  %v316 = vld [vmem:[%s1 + $0x268] sm:$0xf]
  %v317 = vld [vmem:[%s1 + $0x26c] sm:$0xf]
  %v318 = vld [vmem:[%s1 + $0x270] sm:$0xf]
  %v319 = vld [vmem:[%s1 + $0x274] sm:$0xf]
  %v320 = vld [vmem:[%s1 + $0x278] sm:$0xf]
  %v321 = vld [vmem:[%s1 + $0x27c] sm:$0xf]
  %v322 = vld [vmem:[%s1 + $0x280] sm:$0xf]
  %v323 = vld [vmem:[%s1 + $0x284] sm:$0xf]
  %v324 = vld [vmem:[%s1 + $0x288] sm:$0xf]
  %v325 = vld [vmem:[%s1 + $0x28c] sm:$0xf]
  %v326 = vld [vmem:[%s1 + $0x290] sm:$0xf]
  %v327 = vld [vmem:[%s1 + $0x294] sm:$0xf]
  %v328 = vld [vmem:[%s1 + $0x298] sm:$0xf]
  %v329 = vld [vmem:[%s1 + $0x29c] sm:$0xf]
  %v330 = vld [vmem:[%s1 + $0x2a0] sm:$0xf]
  %v331 = vld [vmem:[%s1 + $0x2a4] sm:$0xf]
  %v332 = vld [vmem:[%s1 + $0x2a8] sm:$0xf]
  %v333 = vld [vmem:[%s1 + $0x2ac] sm:$0xf]
  %v334 = vld [vmem:[%s1 + $0x2b0] sm:$0xf]
  %v335 = vld [vmem:[%s1 + $0x2b4] sm:$0xf]
  %v336 = vld [vmem:[%s1 + $0x2b8] sm:$0xf]
  %v337 = vld [vmem:[%s1 + $0x2bc] sm:$0xf]
  %v338 = vld [vmem:[%s1 + $0x2c0] sm:$0xf]
  %v339 = vld [vmem:[%s1 + $0x2c4] sm:$0xf]
  %v340 = vld [vmem:[%s1 + $0x2c8] sm:$0xf]
  %v341 = vld [vmem:[%s1 + $0x2cc] sm:$0xf]
  %v342 = vld [vmem:[%s1 + $0x2d0] sm:$0xf]
  %v343 = vld [vmem:[%s1 + $0x2d4] sm:$0xf]
  %v344 = vld [vmem:[%s1 + $0x2d8] sm:$0xf]
  %v345 = vld [vmem:[%s1 + $0x2dc] sm:$0xf]
  %v346 = vld [vmem:[%s1 + $0x2e0] sm:$0xf]
  %v347 = vld [vmem:[%s1 + $0x2e4] sm:$0xf]
  %v348 = vld [vmem:[%s1 + $0x2e8] sm:$0xf]
  %v349 = vld [vmem:[%s1 + $0x2ec] sm:$0xf]
  %v350 = vld [vmem:[%s1 + $0x2f0] sm:$0xf]
  %v351 = vld [vmem:[%s1 + $0x2f4] sm:$0xf]
  %v352 = vld [vmem:[%s1 + $0x2f8] sm:$0xf]
  %v353 = vld [vmem:[%s1 + $0x2fc] sm:$0xf]
  %v354 = vld [vmem:[%s1 + $0x300] sm:$0xf]
  %v355 = vld [vmem:[%s1 + $0x304] sm:$0xf]
  %v356 = vld [vmem:[%s1 + $0x308] sm:$0xf]
  %v357 = vld [vmem:[%s1 + $0x30c] sm:$0xf]
  %v358 = vld [vmem:[%s1 + $0x310] sm:$0xf]
  %v359 = vld [vmem:[%s1 + $0x314] sm:$0xf]
  %v360 = vld [vmem:[%s1 + $0x318] sm:$0xf]
  %v361 = vld [vmem:[%s1 + $0x31c] sm:$0xf]
  %v362 = vld [vmem:[%s1 + $0x320] sm:$0xf]
  %v363 = vld [vmem:[%s1 + $0x324] sm:$0xf]
  %v364 = vld [vmem:[%s1 + $0x328] sm:$0xf]
  %v365 = vld [vmem:[%s1 + $0x32c] sm:$0xf]
  %v366 = vld [vmem:[%s1 + $0x330] sm:$0xf]
  %v367 = vld [vmem:[%s1 + $0x334] sm:$0xf]
  %v368 = vld [vmem:[%s1 + $0x338] sm:$0xf]
  %v369 = vld [vmem:[%s1 + $0x33c] sm:$0xf]
  %v370 = vld [vmem:[%s2] sm:$0x1]
  %v372 = vlaneseq
  %v373 = vshrl.u32 %v372, 7
  %v374 = vsub.s32 0, %v373
  %v375 = vrot.slane %v370, %v374
  %v524 = vunpack.c.l.b16 %v15
  %v525 = vunpack.c.h.b16 %v15
  %v526 = vunpack.c.l.b16 %v16
  %v527 = vunpack.c.h.b16 %v16
  %v528 = vunpack.c.l.b16 %v17
  %v529 = vunpack.c.h.b16 %v17
  %v530 = vunpack.c.l.b16 %v18
  %v531 = vunpack.c.h.b16 %v18
  %v532 = vunpack.c.l.b16 %v19
  %v533 = vunpack.c.h.b16 %v19
  %v534 = vunpack.c.l.b16 %v20
  %v535 = vunpack.c.h.b16 %v20
  %v536 = vunpack.c.l.b16 %v21
  %v537 = vunpack.c.l.b16 %v22
  %v538 = vunpack.c.h.b16 %v22
  %v539 = vunpack.c.l.b16 %v23
  %v540 = vunpack.c.h.b16 %v23
  %v541 = vunpack.c.l.b16 %v24
  %v542 = vunpack.c.h.b16 %v24
  %v543 = vunpack.c.l.b16 %v25
  %v544 = vunpack.c.h.b16 %v25
  %v545 = vunpack.c.l.b16 %v26
  %v546 = vunpack.c.h.b16 %v26
  %v547 = vunpack.c.l.b16 %v27
  %v548 = vunpack.c.h.b16 %v27
  %v549 = vunpack.c.l.b16 %v28
  %v550 = vunpack.c.l.b16 %v29
  %v551 = vunpack.c.h.b16 %v29
  %v552 = vunpack.c.l.b16 %v30
  %v553 = vunpack.c.h.b16 %v30
  %v554 = vunpack.c.l.b16 %v31
  %v555 = vunpack.c.h.b16 %v31
  %v556 = vunpack.c.l.b16 %v32
  %v557 = vunpack.c.h.b16 %v32
  %v558 = vunpack.c.l.b16 %v33
  %v559 = vunpack.c.h.b16 %v33
  %v560 = vunpack.c.l.b16 %v34
  %v561 = vunpack.c.h.b16 %v34
  %v562 = vunpack.c.l.b16 %v35
  %v563 = vunpack.c.l.b16 %v36
  %v564 = vunpack.c.h.b16 %v36
  %v565 = vunpack.c.l.b16 %v37
  %v566 = vunpack.c.h.b16 %v37
  %v567 = vunpack.c.l.b16 %v38
  %v568 = vunpack.c.h.b16 %v38
  %v569 = vunpack.c.l.b16 %v39
  %v570 = vunpack.c.h.b16 %v39
  %v571 = vunpack.c.l.b16 %v40
  %v572 = vunpack.c.h.b16 %v40
  %v573 = vunpack.c.l.b16 %v41
  %v574 = vunpack.c.h.b16 %v41
  %v575 = vunpack.c.l.b16 %v42
  %v576 = vunpack.c.l.b16 %v43
  %v577 = vunpack.c.h.b16 %v43
  %v578 = vunpack.c.l.b16 %v44
  %v579 = vunpack.c.h.b16 %v44
  %v580 = vunpack.c.l.b16 %v45
  %v581 = vunpack.c.h.b16 %v45
  %v582 = vunpack.c.l.b16 %v46
  %v583 = vunpack.c.h.b16 %v46
  %v584 = vunpack.c.l.b16 %v47
  %v585 = vunpack.c.h.b16 %v47
  %v586 = vunpack.c.l.b16 %v48
  %v587 = vunpack.c.h.b16 %v48
  %v588 = vunpack.c.l.b16 %v49
  %v589 = vunpack.c.l.b16 %v50
  %v590 = vunpack.c.h.b16 %v50
  %v591 = vunpack.c.l.b16 %v51
  %v592 = vunpack.c.h.b16 %v51
  %v593 = vunpack.c.l.b16 %v52
  %v594 = vunpack.c.h.b16 %v52
  %v595 = vunpack.c.l.b16 %v53
  %v596 = vunpack.c.h.b16 %v53
  %v597 = vunpack.c.l.b16 %v54
  %v598 = vunpack.c.h.b16 %v54
  %v599 = vunpack.c.l.b16 %v55
  %v600 = vunpack.c.h.b16 %v55
  %v601 = vunpack.c.l.b16 %v56
  %v602 = vunpack.c.l.b16 %v57
  %v603 = vunpack.c.h.b16 %v57
  %v604 = vunpack.c.l.b16 %v58
  %v605 = vunpack.c.h.b16 %v58
  %v606 = vunpack.c.l.b16 %v59
  %v607 = vunpack.c.h.b16 %v59
  %v608 = vunpack.c.l.b16 %v60
  %v609 = vunpack.c.h.b16 %v60
  %v610 = vunpack.c.l.b16 %v61
  %v611 = vunpack.c.h.b16 %v61
  %v612 = vunpack.c.l.b16 %v62
  %v613 = vunpack.c.h.b16 %v62
  %v614 = vunpack.c.l.b16 %v63
  %v615 = vunpack.c.l.b16 %v64
  %v616 = vunpack.c.h.b16 %v64
  %v617 = vunpack.c.l.b16 %v65
  %v618 = vunpack.c.h.b16 %v65
  %v619 = vunpack.c.l.b16 %v66
  %v620 = vunpack.c.h.b16 %v66
  %v621 = vunpack.c.l.b16 %v67
  %v622 = vunpack.c.h.b16 %v67
  %v623 = vunpack.c.l.b16 %v68
  %v624 = vunpack.c.h.b16 %v68
  %v625 = vunpack.c.l.b16 %v69
  %v626 = vunpack.c.h.b16 %v69
  %v627 = vunpack.c.l.b16 %v70
  %v628 = vunpack.c.l.b16 %v71
  %v629 = vunpack.c.h.b16 %v71
  %v630 = vunpack.c.l.b16 %v72
  %v631 = vunpack.c.h.b16 %v72
  %v632 = vunpack.c.l.b16 %v73
  %v633 = vunpack.c.h.b16 %v73
  %v634 = vunpack.c.l.b16 %v74
  %v635 = vunpack.c.h.b16 %v74
  %v636 = vunpack.c.l.b16 %v75
  %v637 = vunpack.c.h.b16 %v75
  %v638 = vunpack.c.l.b16 %v76
  %v639 = vunpack.c.h.b16 %v76
  %v640 = vunpack.c.l.b16 %v77
  %v641 = vunpack.c.l.b16 %v78
  %v642 = vunpack.c.h.b16 %v78
  %v643 = vunpack.c.l.b16 %v79
  %v644 = vunpack.c.h.b16 %v79
  %v645 = vunpack.c.l.b16 %v80
  %v646 = vunpack.c.h.b16 %v80
  %v647 = vunpack.c.l.b16 %v81
  %v648 = vunpack.c.h.b16 %v81
  %v649 = vunpack.c.l.b16 %v82
  %v650 = vunpack.c.h.b16 %v82
  %v651 = vunpack.c.l.b16 %v83
  %v652 = vunpack.c.h.b16 %v83
  %v653 = vunpack.c.l.b16 %v84
  %v654 = vunpack.c.l.b16 %v85
  %v655 = vunpack.c.h.b16 %v85
  %v656 = vunpack.c.l.b16 %v86
  %v657 = vunpack.c.h.b16 %v86
  %v658 = vunpack.c.l.b16 %v87
  %v659 = vunpack.c.h.b16 %v87
  %v660 = vunpack.c.l.b16 %v88
  %v661 = vunpack.c.h.b16 %v88
  %v662 = vunpack.c.l.b16 %v89
  %v663 = vunpack.c.h.b16 %v89
  %v664 = vunpack.c.l.b16 %v90
  %v665 = vunpack.c.h.b16 %v90
  %v666 = vunpack.c.l.b16 %v91
  %v667 = vunpack.c.l.b16 %v92
  %v668 = vunpack.c.h.b16 %v92
  %v669 = vunpack.c.l.b16 %v93
  %v670 = vunpack.c.h.b16 %v93
  %v671 = vunpack.c.l.b16 %v94
  %v672 = vunpack.c.h.b16 %v94
  %v673 = vunpack.c.l.b16 %v95
  %v674 = vunpack.c.h.b16 %v95
  %v675 = vunpack.c.l.b16 %v96
  %v676 = vunpack.c.h.b16 %v96
  %v677 = vunpack.c.l.b16 %v97
  %v678 = vunpack.c.h.b16 %v97
  %v679 = vunpack.c.l.b16 %v98
  %v680 = vunpack.c.l.b16 %v99
  %v681 = vunpack.c.h.b16 %v99
  %v682 = vunpack.c.l.b16 %v100
  %v683 = vunpack.c.h.b16 %v100
  %v684 = vunpack.c.l.b16 %v101
  %v685 = vunpack.c.h.b16 %v101
  %v686 = vunpack.c.l.b16 %v102
  %v687 = vunpack.c.h.b16 %v102
  %v688 = vunpack.c.l.b16 %v103
  %v689 = vunpack.c.h.b16 %v103
  %v690 = vunpack.c.l.b16 %v104
  %v691 = vunpack.c.h.b16 %v104
  %v692 = vunpack.c.l.b16 %v105
  %v693 = vunpack.c.l.b16 %v106
  %v694 = vunpack.c.h.b16 %v106
  %v695 = vunpack.c.l.b16 %v107
  %v696 = vunpack.c.h.b16 %v107
  %v697 = vunpack.c.l.b16 %v108
  %v698 = vunpack.c.h.b16 %v108
  %v699 = vunpack.c.l.b16 %v109
  %v700 = vunpack.c.h.b16 %v109
  %v701 = vunpack.c.l.b16 %v110
  %v702 = vunpack.c.h.b16 %v110
  %v703 = vunpack.c.l.b16 %v111
  %v704 = vunpack.c.h.b16 %v111
  %v705 = vunpack.c.l.b16 %v112
  %v706 = vunpack.c.l.b16 %v113
  %v707 = vunpack.c.h.b16 %v113
  %v708 = vunpack.c.l.b16 %v114
  %v709 = vunpack.c.h.b16 %v114
  %v710 = vunpack.c.l.b16 %v115
  %v711 = vunpack.c.h.b16 %v115
  %v712 = vunpack.c.l.b16 %v116
  %v713 = vunpack.c.h.b16 %v116
  %v714 = vunpack.c.l.b16 %v117
  %v715 = vunpack.c.h.b16 %v117
  %v716 = vunpack.c.l.b16 %v118
  %v717 = vunpack.c.h.b16 %v118
  %v718 = vunpack.c.l.b16 %v119
  %v719 = vunpack.c.l.b16 %v120
  %v720 = vunpack.c.h.b16 %v120
  %v721 = vunpack.c.l.b16 %v121
  %v722 = vunpack.c.h.b16 %v121
  %v723 = vunpack.c.l.b16 %v122
  %v724 = vunpack.c.h.b16 %v122
  %v725 = vunpack.c.l.b16 %v123
  %v726 = vunpack.c.h.b16 %v123
  %v727 = vunpack.c.l.b16 %v124
  %v728 = vunpack.c.h.b16 %v124
  %v729 = vunpack.c.l.b16 %v125
  %v730 = vunpack.c.h.b16 %v125
  %v731 = vunpack.c.l.b16 %v126
  %v732 = vunpack.c.l.b16 %v127
  %v733 = vunpack.c.h.b16 %v127
  %v734 = vunpack.c.l.b16 %v128
  %v735 = vunpack.c.h.b16 %v128
  %v736 = vunpack.c.l.b16 %v129
  %v737 = vunpack.c.h.b16 %v129
  %v738 = vunpack.c.l.b16 %v130
  %v739 = vunpack.c.h.b16 %v130
  %v740 = vunpack.c.l.b16 %v131
  %v741 = vunpack.c.h.b16 %v131
  %v742 = vunpack.c.l.b16 %v132
  %v743 = vunpack.c.h.b16 %v132
  %v744 = vunpack.c.l.b16 %v133
  %v745 = vunpack.c.l.b16 %v134
  %v746 = vunpack.c.h.b16 %v134
  %v747 = vunpack.c.l.b16 %v135
  %v748 = vunpack.c.h.b16 %v135
  %v749 = vunpack.c.l.b16 %v136
  %v750 = vunpack.c.h.b16 %v136
  %v751 = vunpack.c.l.b16 %v137
  %v752 = vunpack.c.h.b16 %v137
  %v753 = vunpack.c.l.b16 %v138
  %v754 = vunpack.c.h.b16 %v138
  %v755 = vunpack.c.l.b16 %v139
  %v756 = vunpack.c.h.b16 %v139
  %v757 = vunpack.c.l.b16 %v140
  %v758 = vunpack.c.l.b16 %v141
  %v759 = vunpack.c.h.b16 %v141
  %v760 = vunpack.c.l.b16 %v142
  %v761 = vunpack.c.h.b16 %v142
  %v762 = vunpack.c.l.b16 %v143
  %v763 = vunpack.c.h.b16 %v143
  %v764 = vunpack.c.l.b16 %v144
  %v765 = vunpack.c.h.b16 %v144
  %v766 = vunpack.c.l.b16 %v145
  %v767 = vunpack.c.h.b16 %v145
  %v768 = vunpack.c.l.b16 %v146
  %v769 = vunpack.c.h.b16 %v146
  %v770 = vunpack.c.l.b16 %v147
  %v771 = vunpack.c.l.b16 %v148
  %v772 = vunpack.c.h.b16 %v148
  %v773 = vunpack.c.l.b16 %v149
  %v774 = vunpack.c.h.b16 %v149
  %v775 = vunpack.c.l.b16 %v150
  %v776 = vunpack.c.h.b16 %v150
  %v777 = vunpack.c.l.b16 %v151
  %v778 = vunpack.c.h.b16 %v151
  %v779 = vunpack.c.l.b16 %v152
  %v780 = vunpack.c.h.b16 %v152
  %v781 = vunpack.c.l.b16 %v153
  %v782 = vunpack.c.h.b16 %v153
  %v783 = vunpack.c.l.b16 %v154
  %v784 = vunpack.c.l.b16 %v155
  %v785 = vunpack.c.h.b16 %v155
  %v786 = vunpack.c.l.b16 %v156
  %v787 = vunpack.c.h.b16 %v156
  %v788 = vunpack.c.l.b16 %v157
  %v789 = vunpack.c.h.b16 %v157
  %v790 = vunpack.c.l.b16 %v158
  %v791 = vunpack.c.h.b16 %v158
  %v792 = vunpack.c.l.b16 %v159
  %v793 = vunpack.c.h.b16 %v159
  %v794 = vunpack.c.l.b16 %v160
  %v795 = vunpack.c.h.b16 %v160
  %v796 = vunpack.c.l.b16 %v161
  %v797 = vpack.c.b16 %v537, %v524
  %v798 = vpack.c.b16 %v538, %v525
  %v799 = vpack.c.b16 %v539, %v526
  %v800 = vpack.c.b16 %v540, %v527
  %v801 = vpack.c.b16 %v541, %v528
  %v802 = vpack.c.b16 %v542, %v529
  %v803 = vpack.c.b16 %v543, %v530
  %v804 = vpack.c.b16 %v544, %v531
  %v805 = vpack.c.b16 %v545, %v532
  %v806 = vpack.c.b16 %v546, %v533
  %v807 = vpack.c.b16 %v547, %v534
  %v808 = vpack.c.b16 %v548, %v535
  %v809 = vpack.c.b16 %v549, %v536
  %v810 = vpack.c.b16 %v563, %v550
  %v811 = vpack.c.b16 %v564, %v551
  %v812 = vpack.c.b16 %v565, %v552
  %v813 = vpack.c.b16 %v566, %v553
  %v814 = vpack.c.b16 %v567, %v554
  %v815 = vpack.c.b16 %v568, %v555
  %v816 = vpack.c.b16 %v569, %v556
  %v817 = vpack.c.b16 %v570, %v557
  %v818 = vpack.c.b16 %v571, %v558
  %v819 = vpack.c.b16 %v572, %v559
  %v820 = vpack.c.b16 %v573, %v560
  %v821 = vpack.c.b16 %v574, %v561
  %v822 = vpack.c.b16 %v575, %v562
  %v823 = vpack.c.b16 %v589, %v576
  %v824 = vpack.c.b16 %v590, %v577
  %v825 = vpack.c.b16 %v591, %v578
  %v826 = vpack.c.b16 %v592, %v579
  %v827 = vpack.c.b16 %v593, %v580
  %v828 = vpack.c.b16 %v594, %v581
  %v829 = vpack.c.b16 %v595, %v582
  %v830 = vpack.c.b16 %v596, %v583
  %v831 = vpack.c.b16 %v597, %v584
  %v832 = vpack.c.b16 %v598, %v585
  %v833 = vpack.c.b16 %v599, %v586
  %v834 = vpack.c.b16 %v600, %v587
  %v835 = vpack.c.b16 %v601, %v588
  %v836 = vpack.c.b16 %v615, %v602
  %v837 = vpack.c.b16 %v616, %v603
  %v838 = vpack.c.b16 %v617, %v604
  %v839 = vpack.c.b16 %v618, %v605
  %v840 = vpack.c.b16 %v619, %v606
  %v841 = vpack.c.b16 %v620, %v607
  %v842 = vpack.c.b16 %v621, %v608
  %v843 = vpack.c.b16 %v622, %v609
  %v844 = vpack.c.b16 %v623, %v610
  %v845 = vpack.c.b16 %v624, %v611
  %v846 = vpack.c.b16 %v625, %v612
  %v847 = vpack.c.b16 %v626, %v613
  %v848 = vpack.c.b16 %v627, %v614
  %v849 = vpack.c.b16 %v641, %v628
  %v850 = vpack.c.b16 %v642, %v629
  %v851 = vpack.c.b16 %v643, %v630
  %v852 = vpack.c.b16 %v644, %v631
  %v853 = vpack.c.b16 %v645, %v632
  %v854 = vpack.c.b16 %v646, %v633
  %v855 = vpack.c.b16 %v647, %v634
  %v856 = vpack.c.b16 %v648, %v635
  %v857 = vpack.c.b16 %v649, %v636
  %v858 = vpack.c.b16 %v650, %v637
  %v859 = vpack.c.b16 %v651, %v638
  %v860 = vpack.c.b16 %v652, %v639
  %v861 = vpack.c.b16 %v653, %v640
  %v862 = vpack.c.b16 %v667, %v654
  %v863 = vpack.c.b16 %v668, %v655
  %v864 = vpack.c.b16 %v669, %v656
  %v865 = vpack.c.b16 %v670, %v657
  %v866 = vpack.c.b16 %v671, %v658
  %v867 = vpack.c.b16 %v672, %v659
  %v868 = vpack.c.b16 %v673, %v660
  %v869 = vpack.c.b16 %v674, %v661
  %v870 = vpack.c.b16 %v675, %v662
  %v871 = vpack.c.b16 %v676, %v663
  %v872 = vpack.c.b16 %v677, %v664
  %v873 = vpack.c.b16 %v678, %v665
  %v874 = vpack.c.b16 %v679, %v666
  %v875 = vpack.c.b16 %v693, %v680
  %v876 = vpack.c.b16 %v694, %v681
  %v877 = vpack.c.b16 %v695, %v682
  %v878 = vpack.c.b16 %v696, %v683
  %v879 = vpack.c.b16 %v697, %v684
  %v880 = vpack.c.b16 %v698, %v685
  %v881 = vpack.c.b16 %v699, %v686
  %v882 = vpack.c.b16 %v700, %v687
  %v883 = vpack.c.b16 %v701, %v688
  %v884 = vpack.c.b16 %v702, %v689
  %v885 = vpack.c.b16 %v703, %v690
  %v886 = vpack.c.b16 %v704, %v691
  %v887 = vpack.c.b16 %v705, %v692
  %v888 = vpack.c.b16 %v719, %v706
  %v889 = vpack.c.b16 %v720, %v707
  %v890 = vpack.c.b16 %v721, %v708
  %v891 = vpack.c.b16 %v722, %v709
  %v892 = vpack.c.b16 %v723, %v710
  %v893 = vpack.c.b16 %v724, %v711
  %v894 = vpack.c.b16 %v725, %v712
  %v895 = vpack.c.b16 %v726, %v713
  %v896 = vpack.c.b16 %v727, %v714
  %v897 = vpack.c.b16 %v728, %v715
  %v898 = vpack.c.b16 %v729, %v716
  %v899 = vpack.c.b16 %v730, %v717
  %v900 = vpack.c.b16 %v731, %v718
  %v901 = vpack.c.b16 %v745, %v732
  %v902 = vpack.c.b16 %v746, %v733
  %v903 = vpack.c.b16 %v747, %v734
  %v904 = vpack.c.b16 %v748, %v735
  %v905 = vpack.c.b16 %v749, %v736
  %v906 = vpack.c.b16 %v750, %v737
  %v907 = vpack.c.b16 %v751, %v738
  %v908 = vpack.c.b16 %v752, %v739
  %v909 = vpack.c.b16 %v753, %v740
  %v910 = vpack.c.b16 %v754, %v741
  %v911 = vpack.c.b16 %v755, %v742
  %v912 = vpack.c.b16 %v756, %v743
  %v913 = vpack.c.b16 %v757, %v744
  %v914 = vpack.c.b16 %v771, %v758
  %v915 = vpack.c.b16 %v772, %v759
  %v916 = vpack.c.b16 %v773, %v760
  %v917 = vpack.c.b16 %v774, %v761
  %v918 = vpack.c.b16 %v775, %v762
  %v919 = vpack.c.b16 %v776, %v763
  %v920 = vpack.c.b16 %v777, %v764
  %v921 = vpack.c.b16 %v778, %v765
  %v922 = vpack.c.b16 %v779, %v766
  %v923 = vpack.c.b16 %v780, %v767
  %v924 = vpack.c.b16 %v781, %v768
  %v925 = vpack.c.b16 %v782, %v769
  %v926 = vpack.c.b16 %v783, %v770
  %v927 = vpack.c.b16 %v784, %v784
  %v928 = vpack.c.b16 %v785, %v785
  %v929 = vpack.c.b16 %v786, %v786
  %v930 = vpack.c.b16 %v787, %v787
  %v931 = vpack.c.b16 %v788, %v788
  %v932 = vpack.c.b16 %v789, %v789
  %v933 = vpack.c.b16 %v790, %v790
  %v934 = vpack.c.b16 %v791, %v791
  %v935 = vpack.c.b16 %v792, %v792
  %v936 = vpack.c.b16 %v793, %v793
  %v937 = vpack.c.b16 %v794, %v794
  %v938 = vpack.c.b16 %v795, %v795
  %v939 = vpack.c.b16 %v796, %v796
  %v1291 = vunpack.c.l.b16 %v162
  %v1292 = vunpack.c.l.b16 %v163
  %v1293 = vunpack.c.l.b16 %v164
  %v1294 = vunpack.c.l.b16 %v165
  %v1295 = vunpack.c.l.b16 %v166
  %v1296 = vunpack.c.l.b16 %v167
  %v1297 = vunpack.c.l.b16 %v168
  %v1298 = vunpack.c.l.b16 %v169
  %v1299 = vunpack.c.l.b16 %v170
  %v1300 = vunpack.c.l.b16 %v171
  %v1301 = vunpack.c.l.b16 %v172
  %v1302 = vunpack.c.l.b16 %v173
  %v1303 = vunpack.c.l.b16 %v174
  %v1304 = vunpack.c.l.b16 %v175
  %v1305 = vunpack.c.l.b16 %v176
  %v1306 = vunpack.c.l.b16 %v177
  %v1307 = vunpack.c.l.b16 %v178
  %v1308 = vunpack.c.l.b16 %v179
  %v1309 = vunpack.c.l.b16 %v180
  %v1310 = vunpack.c.l.b16 %v181
  %v1311 = vunpack.c.l.b16 %v182
  %v1312 = vunpack.c.l.b16 %v183
  %v1313 = vunpack.c.l.b16 %v184
  %v1314 = vunpack.c.l.b16 %v185
  %v1315 = vunpack.c.l.b16 %v186
  %v1316 = vunpack.c.l.b16 %v187
  %v1317 = vunpack.c.l.b16 %v188
  %v1318 = vunpack.c.l.b16 %v189
  %v1319 = vunpack.c.l.b16 %v190
  %v1320 = vunpack.c.l.b16 %v191
  %v1321 = vunpack.c.l.b16 %v192
  %v1322 = vunpack.c.l.b16 %v193
  %v1323 = vunpack.c.l.b16 %v194
  %v1324 = vunpack.c.l.b16 %v195
  %v1325 = vunpack.c.l.b16 %v196
  %v1326 = vunpack.c.l.b16 %v197
  %v1327 = vunpack.c.l.b16 %v198
  %v1328 = vunpack.c.l.b16 %v199
  %v1329 = vunpack.c.l.b16 %v200
  %v1330 = vunpack.c.l.b16 %v201
  %v1331 = vunpack.c.l.b16 %v202
  %v1332 = vunpack.c.l.b16 %v203
  %v1333 = vunpack.c.l.b16 %v204
  %v1334 = vunpack.c.l.b16 %v205
  %v1335 = vunpack.c.l.b16 %v206
  %v1336 = vunpack.c.l.b16 %v207
  %v1337 = vunpack.c.l.b16 %v208
  %v1338 = vunpack.c.l.b16 %v209
  %v1339 = vunpack.c.l.b16 %v210
  %v1340 = vunpack.c.l.b16 %v211
  %v1341 = vunpack.c.l.b16 %v212
  %v1342 = vunpack.c.l.b16 %v213
  %v1343 = vunpack.c.l.b16 %v214
  %v1344 = vunpack.c.l.b16 %v215
  %v1345 = vunpack.c.l.b16 %v216
  %v1346 = vunpack.c.l.b16 %v217
  %v1347 = vunpack.c.l.b16 %v218
  %v1348 = vunpack.c.l.b16 %v219
  %v1349 = vunpack.c.l.b16 %v220
  %v1350 = vunpack.c.l.b16 %v221
  %v1351 = vunpack.c.l.b16 %v222
  %v1352 = vunpack.c.l.b16 %v223
  %v1353 = vunpack.c.l.b16 %v224
  %v1354 = vunpack.c.l.b16 %v225
  %v1355 = vunpack.c.l.b16 %v226
  %v1356 = vunpack.c.l.b16 %v227
  %v1357 = vunpack.c.l.b16 %v228
  %v1358 = vunpack.c.l.b16 %v229
  %v1359 = vunpack.c.l.b16 %v230
  %v1360 = vunpack.c.l.b16 %v231
  %v1361 = vunpack.c.l.b16 %v232
  %v1362 = vunpack.c.l.b16 %v233
  %v1363 = vunpack.c.l.b16 %v234
  %v1364 = vunpack.c.l.b16 %v235
  %v1365 = vunpack.c.l.b16 %v236
  %v1366 = vunpack.c.l.b16 %v237
  %v1367 = vunpack.c.l.b16 %v238
  %v1368 = vunpack.c.l.b16 %v239
  %v1369 = vunpack.c.l.b16 %v240
  %v1370 = vunpack.c.l.b16 %v241
  %v1371 = vunpack.c.l.b16 %v242
  %v1372 = vunpack.c.l.b16 %v243
  %v1373 = vunpack.c.l.b16 %v244
  %v1374 = vunpack.c.l.b16 %v245
  %v1375 = vunpack.c.l.b16 %v246
  %v1376 = vunpack.c.l.b16 %v247
  %v1377 = vunpack.c.l.b16 %v248
  %v1378 = vunpack.c.l.b16 %v249
  %v1379 = vunpack.c.l.b16 %v250
  %v1380 = vunpack.c.l.b16 %v251
  %v1381 = vunpack.c.l.b16 %v252
  %v1382 = vunpack.c.l.b16 %v253
  %v1383 = vunpack.c.l.b16 %v254
  %v1384 = vunpack.c.l.b16 %v255
  %v1385 = vunpack.c.l.b16 %v256
  %v1386 = vunpack.c.l.b16 %v257
  %v1387 = vunpack.c.l.b16 %v258
  %v1388 = vunpack.c.l.b16 %v259
  %v1389 = vunpack.c.l.b16 %v260
  %v1390 = vunpack.c.l.b16 %v261
  %v1391 = vunpack.c.l.b16 %v262
  %v1392 = vunpack.c.l.b16 %v263
  %v1393 = vunpack.c.l.b16 %v264
  %v1394 = vunpack.c.l.b16 %v265
  %v1395 = vunpack.c.l.b16 %v266
  %v1396 = vunpack.c.l.b16 %v267
  %v1397 = vunpack.c.l.b16 %v268
  %v1398 = vunpack.c.l.b16 %v269
  %v1399 = vunpack.c.l.b16 %v270
  %v1400 = vunpack.c.l.b16 %v271
  %v1401 = vunpack.c.l.b16 %v272
  %v1402 = vunpack.c.l.b16 %v273
  %v1403 = vunpack.c.l.b16 %v274
  %v1404 = vunpack.c.l.b16 %v275
  %v1405 = vunpack.c.l.b16 %v276
  %v1406 = vunpack.c.l.b16 %v277
  %v1407 = vunpack.c.l.b16 %v278
  %v1408 = vunpack.c.l.b16 %v279
  %v1409 = vunpack.c.l.b16 %v280
  %v1410 = vunpack.c.l.b16 %v281
  %v1411 = vunpack.c.l.b16 %v282
  %v1412 = vunpack.c.l.b16 %v283
  %v1413 = vunpack.c.l.b16 %v284
  %v1414 = vunpack.c.l.b16 %v285
  %v1415 = vunpack.c.l.b16 %v286
  %v1416 = vunpack.c.l.b16 %v287
  %v1417 = vunpack.c.l.b16 %v288
  %v1418 = vunpack.c.l.b16 %v289
  %v1419 = vunpack.c.l.b16 %v290
  %v1420 = vunpack.c.l.b16 %v291
  %v1421 = vunpack.c.l.b16 %v292
  %v1422 = vunpack.c.l.b16 %v293
  %v1423 = vunpack.c.l.b16 %v294
  %v1424 = vunpack.c.l.b16 %v295
  %v1425 = vunpack.c.l.b16 %v296
  %v1426 = vunpack.c.l.b16 %v297
  %v1427 = vunpack.c.l.b16 %v298
  %v1428 = vunpack.c.l.b16 %v299
  %v1429 = vunpack.c.l.b16 %v300
  %v1430 = vunpack.c.l.b16 %v301
  %v1431 = vunpack.c.l.b16 %v302
  %v1432 = vunpack.c.l.b16 %v303
  %v1433 = vunpack.c.l.b16 %v304
  %v1434 = vunpack.c.l.b16 %v305
  %v1435 = vunpack.c.l.b16 %v306
  %v1436 = vunpack.c.l.b16 %v307
  %v1437 = vunpack.c.l.b16 %v308
  %v1438 = vunpack.c.l.b16 %v309
  %v1439 = vunpack.c.l.b16 %v310
  %v1440 = vunpack.c.l.b16 %v311
  %v1441 = vunpack.c.l.b16 %v312
  %v1442 = vunpack.c.l.b16 %v313
  %v1443 = vunpack.c.l.b16 %v314
  %v1444 = vunpack.c.l.b16 %v315
  %v1445 = vunpack.c.l.b16 %v316
  %v1446 = vunpack.c.l.b16 %v317
  %v1447 = vunpack.c.l.b16 %v318
  %v1448 = vunpack.c.l.b16 %v319
  %v1449 = vunpack.c.l.b16 %v320
  %v1450 = vunpack.c.l.b16 %v321
  %v1451 = vunpack.c.l.b16 %v322
  %v1452 = vunpack.c.l.b16 %v323
  %v1453 = vunpack.c.l.b16 %v324
  %v1454 = vunpack.c.l.b16 %v325
  %v1455 = vunpack.c.l.b16 %v326
  %v1456 = vunpack.c.l.b16 %v327
  %v1457 = vunpack.c.l.b16 %v328
  %v1458 = vunpack.c.l.b16 %v329
  %v1459 = vunpack.c.l.b16 %v330
  %v1460 = vunpack.c.l.b16 %v331
  %v1461 = vunpack.c.l.b16 %v332
  %v1462 = vunpack.c.l.b16 %v333
  %v1463 = vunpack.c.l.b16 %v334
  %v1464 = vunpack.c.l.b16 %v335
  %v1465 = vunpack.c.l.b16 %v336
  %v1466 = vunpack.c.l.b16 %v337
  %v1467 = vunpack.c.l.b16 %v338
  %v1468 = vunpack.c.l.b16 %v339
  %v1469 = vunpack.c.l.b16 %v340
  %v1470 = vunpack.c.l.b16 %v341
  %v1471 = vunpack.c.l.b16 %v342
  %v1472 = vunpack.c.l.b16 %v343
  %v1473 = vunpack.c.l.b16 %v344
  %v1474 = vunpack.c.l.b16 %v345
  %v1475 = vunpack.c.l.b16 %v346
  %v1476 = vunpack.c.l.b16 %v347
  %v1477 = vunpack.c.l.b16 %v348
  %v1478 = vunpack.c.l.b16 %v349
  %v1479 = vunpack.c.l.b16 %v350
  %v1480 = vunpack.c.l.b16 %v351
  %v1481 = vunpack.c.l.b16 %v352
  %v1482 = vunpack.c.l.b16 %v353
  %v1483 = vunpack.c.l.b16 %v354
  %v1484 = vunpack.c.l.b16 %v355
  %v1485 = vunpack.c.l.b16 %v356
  %v1486 = vunpack.c.l.b16 %v357
  %v1487 = vunpack.c.l.b16 %v358
  %v1488 = vunpack.c.l.b16 %v359
  %v1489 = vunpack.c.l.b16 %v360
  %v1490 = vunpack.c.l.b16 %v361
  %v1491 = vunpack.c.l.b16 %v362
  %v1492 = vunpack.c.l.b16 %v363
  %v1493 = vunpack.c.l.b16 %v364
  %v1494 = vunpack.c.l.b16 %v365
  %v1495 = vunpack.c.l.b16 %v366
  %v1496 = vunpack.c.l.b16 %v367
  %v1497 = vunpack.c.l.b16 %v368
  %v1498 = vunpack.c.l.b16 %v369
  %v1499 = vpack.c.b16 %v1292, %v1291
  %v1500 = vpack.c.b16 %v1294, %v1293
  %v1501 = vpack.c.b16 %v1296, %v1295
  %v1502 = vpack.c.b16 %v1298, %v1297
  %v1503 = vpack.c.b16 %v1300, %v1299
  %v1504 = vpack.c.b16 %v1302, %v1301
  %v1505 = vpack.c.b16 %v1304, %v1303
  %v1506 = vpack.c.b16 %v1306, %v1305
  %v1507 = vpack.c.b16 %v1308, %v1307
  %v1508 = vpack.c.b16 %v1310, %v1309
  %v1509 = vpack.c.b16 %v1312, %v1311
  %v1510 = vpack.c.b16 %v1314, %v1313
  %v1511 = vpack.c.b16 %v1316, %v1315
  %v1512 = vpack.c.b16 %v1318, %v1317
  %v1513 = vpack.c.b16 %v1320, %v1319
  %v1514 = vpack.c.b16 %v1322, %v1321
  %v1515 = vpack.c.b16 %v1324, %v1323
  %v1516 = vpack.c.b16 %v1326, %v1325
  %v1517 = vpack.c.b16 %v1328, %v1327
  %v1518 = vpack.c.b16 %v1330, %v1329
  %v1519 = vpack.c.b16 %v1332, %v1331
  %v1520 = vpack.c.b16 %v1334, %v1333
  %v1521 = vpack.c.b16 %v1336, %v1335
  %v1522 = vpack.c.b16 %v1338, %v1337
  %v1523 = vpack.c.b16 %v1340, %v1339
  %v1524 = vpack.c.b16 %v1342, %v1341
  %v1525 = vpack.c.b16 %v1344, %v1343
  %v1526 = vpack.c.b16 %v1346, %v1345
  %v1527 = vpack.c.b16 %v1348, %v1347
  %v1528 = vpack.c.b16 %v1350, %v1349
  %v1529 = vpack.c.b16 %v1352, %v1351
  %v1530 = vpack.c.b16 %v1354, %v1353
  %v1531 = vpack.c.b16 %v1356, %v1355
  %v1532 = vpack.c.b16 %v1358, %v1357
  %v1533 = vpack.c.b16 %v1360, %v1359
  %v1534 = vpack.c.b16 %v1362, %v1361
  %v1535 = vpack.c.b16 %v1364, %v1363
  %v1536 = vpack.c.b16 %v1366, %v1365
  %v1537 = vpack.c.b16 %v1368, %v1367
  %v1538 = vpack.c.b16 %v1370, %v1369
  %v1539 = vpack.c.b16 %v1372, %v1371
  %v1540 = vpack.c.b16 %v1374, %v1373
  %v1541 = vpack.c.b16 %v1376, %v1375
  %v1542 = vpack.c.b16 %v1378, %v1377
  %v1543 = vpack.c.b16 %v1380, %v1379
  %v1544 = vpack.c.b16 %v1382, %v1381
  %v1545 = vpack.c.b16 %v1384, %v1383
  %v1546 = vpack.c.b16 %v1386, %v1385
  %v1547 = vpack.c.b16 %v1388, %v1387
  %v1548 = vpack.c.b16 %v1390, %v1389
  %v1549 = vpack.c.b16 %v1392, %v1391
  %v1550 = vpack.c.b16 %v1394, %v1393
  %v1551 = vpack.c.b16 %v1396, %v1395
  %v1552 = vpack.c.b16 %v1398, %v1397
  %v1553 = vpack.c.b16 %v1400, %v1399
  %v1554 = vpack.c.b16 %v1402, %v1401
  %v1555 = vpack.c.b16 %v1404, %v1403
  %v1556 = vpack.c.b16 %v1406, %v1405
  %v1557 = vpack.c.b16 %v1408, %v1407
  %v1558 = vpack.c.b16 %v1410, %v1409
  %v1559 = vpack.c.b16 %v1412, %v1411
  %v1560 = vpack.c.b16 %v1414, %v1413
  %v1561 = vpack.c.b16 %v1416, %v1415
  %v1562 = vpack.c.b16 %v1418, %v1417
  %v1563 = vpack.c.b16 %v1420, %v1419
  %v1564 = vpack.c.b16 %v1422, %v1421
  %v1565 = vpack.c.b16 %v1424, %v1423
  %v1566 = vpack.c.b16 %v1426, %v1425
  %v1567 = vpack.c.b16 %v1428, %v1427
  %v1568 = vpack.c.b16 %v1430, %v1429
  %v1569 = vpack.c.b16 %v1432, %v1431
  %v1570 = vpack.c.b16 %v1434, %v1433
  %v1571 = vpack.c.b16 %v1436, %v1435
  %v1572 = vpack.c.b16 %v1438, %v1437
  %v1573 = vpack.c.b16 %v1440, %v1439
  %v1574 = vpack.c.b16 %v1442, %v1441
  %v1575 = vpack.c.b16 %v1444, %v1443
  %v1576 = vpack.c.b16 %v1446, %v1445
  %v1577 = vpack.c.b16 %v1448, %v1447
  %v1578 = vpack.c.b16 %v1450, %v1449
  %v1579 = vpack.c.b16 %v1452, %v1451
  %v1580 = vpack.c.b16 %v1454, %v1453
  %v1581 = vpack.c.b16 %v1456, %v1455
  %v1582 = vpack.c.b16 %v1458, %v1457
  %v1583 = vpack.c.b16 %v1460, %v1459
  %v1584 = vpack.c.b16 %v1462, %v1461
  %v1585 = vpack.c.b16 %v1464, %v1463
  %v1586 = vpack.c.b16 %v1466, %v1465
  %v1587 = vpack.c.b16 %v1468, %v1467
  %v1588 = vpack.c.b16 %v1470, %v1469
  %v1589 = vpack.c.b16 %v1472, %v1471
  %v1590 = vpack.c.b16 %v1474, %v1473
  %v1591 = vpack.c.b16 %v1476, %v1475
  %v1592 = vpack.c.b16 %v1478, %v1477
  %v1593 = vpack.c.b16 %v1480, %v1479
  %v1594 = vpack.c.b16 %v1482, %v1481
  %v1595 = vpack.c.b16 %v1484, %v1483
  %v1596 = vpack.c.b16 %v1486, %v1485
  %v1597 = vpack.c.b16 %v1488, %v1487
  %v1598 = vpack.c.b16 %v1490, %v1489
  %v1599 = vpack.c.b16 %v1492, %v1491
  %v1600 = vpack.c.b16 %v1494, %v1493
  %v1601 = vpack.c.b16 %v1496, %v1495
  %v1602 = vpack.c.b16 %v1498, %v1497
  %1707 = vmatprep.subr.bf16.mxu0 0
  %1708 = vmatpush1.bf16.msra.mxu0 %v1499
  %1709 = vmatprep.subr.bf16.mxu0 0
  %1710 = vmatpush1.bf16.msra.mxu0 %v1500
  %1711 = vmatprep.subr.bf16.mxu0 0
  %1712 = vmatpush1.bf16.msra.mxu0 %v1501
  %1713 = vmatprep.subr.bf16.mxu0 0
  %1714 = vmatpush1.bf16.msra.mxu0 %v1502
  %1715 = vmatprep.subr.bf16.mxu0 0
  %1716 = vmatpush1.bf16.msra.mxu0 %v1503
  %1717 = vmatprep.subr.bf16.mxu0 0
  %1718 = vmatpush1.bf16.msra.mxu0 %v1504
  %1719 = vmatprep.subr.bf16.mxu0 0
  %1720 = vmatpush1.bf16.msra.mxu0 %v1505
  %1721 = vmatprep.subr.bf16.mxu0 0
  %1722 = vmatpush1.bf16.msra.mxu0 %v1506
  %1723 = vmatprep.subr.bf16.mxu0 0
  %1724 = vmatpush1.bf16.msra.mxu0 %v1507
  %1725 = vmatprep.subr.bf16.mxu0 0
  %1726 = vmatpush1.bf16.msra.mxu0 %v1508
  %1727 = vmatprep.subr.bf16.mxu0 0
  %1728 = vmatpush1.bf16.msra.mxu0 %v1509
  %1729 = vmatprep.subr.bf16.mxu0 0
  %1730 = vmatpush1.bf16.msra.mxu0 %v1510
  %1731 = vmatprep.subr.bf16.mxu0 0
  %1732 = vmatpush1.bf16.msra.mxu0 %v1511
  %1733 = vmatprep.subr.bf16.mxu0 0
  %1734 = vmatpush1.bf16.msra.mxu0 %v1512
  %1735 = vmatprep.subr.bf16.mxu0 0
  %1736 = vmatpush1.bf16.msra.mxu0 %v1513
  %1737 = vmatprep.subr.bf16.mxu0 0
  %1738 = vmatpush1.bf16.msra.mxu0 %v1514
  %1739 = vmatprep.mubr.bf16.mxu0 %v798
  %1740 = vmatmul.mubr.bf16.gmra.mrb[0].mxu0 %v797
  %v1741 = vpop.f32.mrb[0].mxu0
  %v1742 = vadd.f32 %v375, %v1741
  %v1743 = vpop.f32.mrb[0].mxu0
  %v1744 = vpop.f32.mrb[0].mxu0
  %v1745 = vadd.f32 %v375, %v1744
  %v1746 = vpop.f32.mrb[0].mxu0
  %1747 = vmatprep.mubr.bf16.mxu0 %v811
  %1748 = vmatmul.mubr.bf16.gmra.mrb[0].mxu0 %v810
  %v1749 = vpop.f32.mrb[0].mxu0
  %v1750 = vadd.f32 %v375, %v1749
  %v1751 = vpop.f32.mrb[0].mxu0
  %v1752 = vpop.f32.mrb[0].mxu0
  %v1753 = vadd.f32 %v375, %v1752
  %v1754 = vpop.f32.mrb[0].mxu0
  %1755 = vmatprep.mubr.bf16.mxu0 %v824
  %1756 = vmatmul.mubr.bf16.gmra.mrb[0].mxu0 %v823
  %v1757 = vpop.f32.mrb[0].mxu0
  %v1758 = vadd.f32 %v375, %v1757
  %v1759 = vpop.f32.mrb[0].mxu0
  %v1760 = vpop.f32.mrb[0].mxu0
  %v1761 = vadd.f32 %v375, %v1760
  %v1762 = vpop.f32.mrb[0].mxu0
  %1763 = vmatprep.mubr.bf16.mxu0 %v837
  %1764 = vmatmul.mubr.bf16.gmra.mrb[0].mxu0 %v836
  %v1765 = vpop.f32.mrb[0].mxu0
  %v1766 = vadd.f32 %v375, %v1765
  %v1767 = vpop.f32.mrb[0].mxu0
  %v1768 = vpop.f32.mrb[0].mxu0
  %v1769 = vadd.f32 %v375, %v1768
  %v1770 = vpop.f32.mrb[0].mxu0
  %1771 = vmatprep.mubr.bf16.mxu0 %v850
  %1772 = vmatmul.mubr.bf16.gmra.mrb[0].mxu0 %v849
  %v1773 = vpop.f32.mrb[0].mxu0
  %v1774 = vadd.f32 %v375, %v1773
  %v1775 = vpop.f32.mrb[0].mxu0
  %v1776 = vpop.f32.mrb[0].mxu0
  %v1777 = vadd.f32 %v375, %v1776
  %v1778 = vpop.f32.mrb[0].mxu0
  %1779 = vmatprep.mubr.bf16.mxu0 %v863
  %1780 = vmatmul.mubr.bf16.gmra.mrb[0].mxu0 %v862
  %v1781 = vpop.f32.mrb[0].mxu0
  %v1782 = vadd.f32 %v375, %v1781
  %v1783 = vpop.f32.mrb[0].mxu0
  %v1784 = vpop.f32.mrb[0].mxu0
  %v1785 = vadd.f32 %v375, %v1784
  %v1786 = vpop.f32.mrb[0].mxu0
  %1787 = vmatprep.mubr.bf16.mxu0 %v876
  %1788 = vmatmul.mubr.bf16.gmra.mrb[0].mxu0 %v875
  %v1789 = vpop.f32.mrb[0].mxu0
  %v1790 = vadd.f32 %v375, %v1789
  %v1791 = vpop.f32.mrb[0].mxu0
  %v1792 = vpop.f32.mrb[0].mxu0
  %v1793 = vadd.f32 %v375, %v1792
  %v1794 = vpop.f32.mrb[0].mxu0
  %1795 = vmatprep.mubr.bf16.mxu0 %v889
  %1796 = vmatmul.mubr.bf16.gmra.mrb[0].mxu0 %v888
  %v1797 = vpop.f32.mrb[0].mxu0
  %v1798 = vadd.f32 %v375, %v1797
  %v1799 = vpop.f32.mrb[0].mxu0
  %v1800 = vpop.f32.mrb[0].mxu0
  %v1801 = vadd.f32 %v375, %v1800
  %v1802 = vpop.f32.mrb[0].mxu0
  %1803 = vmatprep.mubr.bf16.mxu0 %v902
  %1804 = vmatmul.mubr.bf16.gmra.mrb[0].mxu0 %v901
  %v1805 = vpop.f32.mrb[0].mxu0
  %v1806 = vadd.f32 %v375, %v1805
  %v1807 = vpop.f32.mrb[0].mxu0
  %v1808 = vpop.f32.mrb[0].mxu0
  %v1809 = vadd.f32 %v375, %v1808
  %v1810 = vpop.f32.mrb[0].mxu0
  %1811 = vmatprep.mubr.bf16.mxu0 %v915
  %1812 = vmatmul.mubr.bf16.gmra.mrb[0].mxu0 %v914
  %v1813 = vpop.f32.mrb[0].mxu0
  %v1814 = vadd.f32 %v375, %v1813
  %v1815 = vpop.f32.mrb[0].mxu0
  %v1816 = vpop.f32.mrb[0].mxu0
  %v1817 = vadd.f32 %v375, %v1816
  %v1818 = vpop.f32.mrb[0].mxu0
  %1819 = vmatprep.mubr.bf16.mxu0 %v928
  %1820 = vmatmul.mubr.bf16.gmra.mrb[0].mxu0 %v927
  %v1821 = vpop.f32.mrb[0].mxu0
  %v1822 = vadd.f32 %v375, %v1821
  %v1823 = vpop.f32.mrb[0].mxu0
  %v1824 = vpop.f32.mrb[0].mxu0
  %v1825 = vpop.f32.mrb[0].mxu0
  %1826 = vdwg.mxu0
  %1827 = vmatprep.subr.bf16.mxu0 0
  %1828 = vmatpush1.bf16.msra.mxu0 %v1515
  %1829 = vmatprep.subr.bf16.mxu0 0
  %1830 = vmatpush1.bf16.msra.mxu0 %v1516
  %1831 = vmatprep.subr.bf16.mxu0 0
  %1832 = vmatpush1.bf16.msra.mxu0 %v1517
  %1833 = vmatprep.subr.bf16.mxu0 0
  %1834 = vmatpush1.bf16.msra.mxu0 %v1518
  %1835 = vmatprep.subr.bf16.mxu0 0
  %1836 = vmatpush1.bf16.msra.mxu0 %v1519
  %1837 = vmatprep.subr.bf16.mxu0 0
  %1838 = vmatpush1.bf16.msra.mxu0 %v1520
  %1839 = vmatprep.subr.bf16.mxu0 0
  %1840 = vmatpush1.bf16.msra.mxu0 %v1521
  %1841 = vmatprep.subr.bf16.mxu0 0
  %1842 = vmatpush1.bf16.msra.mxu0 %v1522
  %1843 = vmatprep.subr.bf16.mxu0 0
  %1844 = vmatpush1.bf16.msra.mxu0 %v1523
  %1845 = vmatprep.subr.bf16.mxu0 0
  %1846 = vmatpush1.bf16.msra.mxu0 %v1524
  %1847 = vmatprep.subr.bf16.mxu0 0
  %1848 = vmatpush1.bf16.msra.mxu0 %v1525
  %1849 = vmatprep.subr.bf16.mxu0 0
  %1850 = vmatpush1.bf16.msra.mxu0 %v1526
  %1851 = vmatprep.subr.bf16.mxu0 0
  %1852 = vmatpush1.bf16.msra.mxu0 %v1527
  %1853 = vmatprep.subr.bf16.mxu0 0
  %1854 = vmatpush1.bf16.msra.mxu0 %v1528
  %1855 = vmatprep.subr.bf16.mxu0 0
  %1856 = vmatpush1.bf16.msra.mxu0 %v1529
  %1857 = vmatprep.subr.bf16.mxu0 0
  %1858 = vmatpush1.bf16.msra.mxu0 %v1530
  %1859 = vmatprep.mubr.bf16.mxu0 %v800
  %1860 = vmatmul.mubr.bf16.gmra.mrb[0].mxu0 %v799
  %v1861 = vpop.f32.mrb[0].mxu0
  %v1862 = vadd.f32 %v1742, %v1861
  %v1863 = vpop.f32.mrb[0].mxu0
  %v1864 = vpop.f32.mrb[0].mxu0
  %v1865 = vadd.f32 %v1745, %v1864
  %v1866 = vpop.f32.mrb[0].mxu0
  %1867 = vmatprep.mubr.bf16.mxu0 %v813
  %1868 = vmatmul.mubr.bf16.gmra.mrb[0].mxu0 %v812
  %v1869 = vpop.f32.mrb[0].mxu0
  %v1870 = vadd.f32 %v1750, %v1869
  %v1871 = vpop.f32.mrb[0].mxu0
  %v1872 = vpop.f32.mrb[0].mxu0
  %v1873 = vadd.f32 %v1753, %v1872
  %v1874 = vpop.f32.mrb[0].mxu0
  %1875 = vmatprep.mubr.bf16.mxu0 %v826
  %1876 = vmatmul.mubr.bf16.gmra.mrb[0].mxu0 %v825
  %v1877 = vpop.f32.mrb[0].mxu0
  %v1878 = vadd.f32 %v1758, %v1877
  %v1879 = vpop.f32.mrb[0].mxu0
  %v1880 = vpop.f32.mrb[0].mxu0
  %v1881 = vadd.f32 %v1761, %v1880
  %v1882 = vpop.f32.mrb[0].mxu0
  %1883 = vmatprep.mubr.bf16.mxu0 %v839
  %1884 = vmatmul.mubr.bf16.gmra.mrb[0].mxu0 %v838
  %v1885 = vpop.f32.mrb[0].mxu0
  %v1886 = vadd.f32 %v1766, %v1885
  %v1887 = vpop.f32.mrb[0].mxu0
  %v1888 = vpop.f32.mrb[0].mxu0
  %v1889 = vadd.f32 %v1769, %v1888
  %v1890 = vpop.f32.mrb[0].mxu0
  %1891 = vmatprep.mubr.bf16.mxu0 %v852
  %1892 = vmatmul.mubr.bf16.gmra.mrb[0].mxu0 %v851
  %v1893 = vpop.f32.mrb[0].mxu0
  %v1894 = vadd.f32 %v1774, %v1893
  %v1895 = vpop.f32.mrb[0].mxu0
  %v1896 = vpop.f32.mrb[0].mxu0
  %v1897 = vadd.f32 %v1777, %v1896
  %v1898 = vpop.f32.mrb[0].mxu0
  %1899 = vmatprep.mubr.bf16.mxu0 %v865
  %1900 = vmatmul.mubr.bf16.gmra.mrb[0].mxu0 %v864
  %v1901 = vpop.f32.mrb[0].mxu0
  %v1902 = vadd.f32 %v1782, %v1901
  %v1903 = vpop.f32.mrb[0].mxu0
  %v1904 = vpop.f32.mrb[0].mxu0
  %v1905 = vadd.f32 %v1785, %v1904
  %v1906 = vpop.f32.mrb[0].mxu0
  %1907 = vmatprep.mubr.bf16.mxu0 %v878
  %1908 = vmatmul.mubr.bf16.gmra.mrb[0].mxu0 %v877
  %v1909 = vpop.f32.mrb[0].mxu0
  %v1910 = vadd.f32 %v1790, %v1909
  %v1911 = vpop.f32.mrb[0].mxu0
  %v1912 = vpop.f32.mrb[0].mxu0
  %v1913 = vadd.f32 %v1793, %v1912
  %v1914 = vpop.f32.mrb[0].mxu0
  %1915 = vmatprep.mubr.bf16.mxu0 %v891
  %1916 = vmatmul.mubr.bf16.gmra.mrb[0].mxu0 %v890
  %v1917 = vpop.f32.mrb[0].mxu0
  %v1918 = vadd.f32 %v1798, %v1917
  %v1919 = vpop.f32.mrb[0].mxu0
  %v1920 = vpop.f32.mrb[0].mxu0
  %v1921 = vadd.f32 %v1801, %v1920
  %v1922 = vpop.f32.mrb[0].mxu0
  %1923 = vmatprep.mubr.bf16.mxu0 %v904
  %1924 = vmatmul.mubr.bf16.gmra.mrb[0].mxu0 %v903
  %v1925 = vpop.f32.mrb[0].mxu0
  %v1926 = vadd.f32 %v1806, %v1925
  %v1927 = vpop.f32.mrb[0].mxu0
  %v1928 = vpop.f32.mrb[0].mxu0
  %v1929 = vadd.f32 %v1809, %v1928
  %v1930 = vpop.f32.mrb[0].mxu0
  %1931 = vmatprep.mubr.bf16.mxu0 %v917
  %1932 = vmatmul.mubr.bf16.gmra.mrb[0].mxu0 %v916
  %v1933 = vpop.f32.mrb[0].mxu0
  %v1934 = vadd.f32 %v1814, %v1933
  %v1935 = vpop.f32.mrb[0].mxu0
  %v1936 = vpop.f32.mrb[0].mxu0
  %v1937 = vadd.f32 %v1817, %v1936
  %v1938 = vpop.f32.mrb[0].mxu0
  %1939 = vmatprep.mubr.bf16.mxu0 %v930
  %1940 = vmatmul.mubr.bf16.gmra.mrb[0].mxu0 %v929
  %v1941 = vpop.f32.mrb[0].mxu0
  %v1942 = vadd.f32 %v1822, %v1941
  %v1943 = vpop.f32.mrb[0].mxu0
  %v1944 = vpop.f32.mrb[0].mxu0
  %v1945 = vpop.f32.mrb[0].mxu0
  %1946 = vdwg.mxu0
  %1947 = vmatprep.subr.bf16.mxu0 0
  %1948 = vmatpush1.bf16.msra.mxu0 %v1531
  %1949 = vmatprep.subr.bf16.mxu0 0
  %1950 = vmatpush1.bf16.msra.mxu0 %v1532
  %1951 = vmatprep.subr.bf16.mxu0 0
  %1952 = vmatpush1.bf16.msra.mxu0 %v1533
  %1953 = vmatprep.subr.bf16.mxu0 0
  %1954 = vmatpush1.bf16.msra.mxu0 %v1534
  %1955 = vmatprep.subr.bf16.mxu0 0
  %1956 = vmatpush1.bf16.msra.mxu0 %v1535
  %1957 = vmatprep.subr.bf16.mxu0 0
  %1958 = vmatpush1.bf16.msra.mxu0 %v1536
  %1959 = vmatprep.subr.bf16.mxu0 0
  %1960 = vmatpush1.bf16.msra.mxu0 %v1537
  %1961 = vmatprep.subr.bf16.mxu0 0
  %1962 = vmatpush1.bf16.msra.mxu0 %v1538
  %1963 = vmatprep.subr.bf16.mxu0 0
  %1964 = vmatpush1.bf16.msra.mxu0 %v1539
  %1965 = vmatprep.subr.bf16.mxu0 0
  %1966 = vmatpush1.bf16.msra.mxu0 %v1540
  %1967 = vmatprep.subr.bf16.mxu0 0
  %1968 = vmatpush1.bf16.msra.mxu0 %v1541
  %1969 = vmatprep.subr.bf16.mxu0 0
  %1970 = vmatpush1.bf16.msra.mxu0 %v1542
  %1971 = vmatprep.subr.bf16.mxu0 0
  %1972 = vmatpush1.bf16.msra.mxu0 %v1543
  %1973 = vmatprep.subr.bf16.mxu0 0
  %1974 = vmatpush1.bf16.msra.mxu0 %v1544
  %1975 = vmatprep.subr.bf16.mxu0 0
  %1976 = vmatpush1.bf16.msra.mxu0 %v1545
  %1977 = vmatprep.subr.bf16.mxu0 0
  %1978 = vmatpush1.bf16.msra.mxu0 %v1546
  %1979 = vmatprep.mubr.bf16.mxu0 %v802
  %1980 = vmatmul.mubr.bf16.gmra.mrb[0].mxu0 %v801
  %v1981 = vpop.f32.mrb[0].mxu0
  %v1982 = vadd.f32 %v1862, %v1981
  %v1983 = vpop.f32.mrb[0].mxu0
  %v1984 = vpop.f32.mrb[0].mxu0
  %v1985 = vadd.f32 %v1865, %v1984
  %v1986 = vpop.f32.mrb[0].mxu0
  %1987 = vmatprep.mubr.bf16.mxu0 %v815
  %1988 = vmatmul.mubr.bf16.gmra.mrb[0].mxu0 %v814
  %v1989 = vpop.f32.mrb[0].mxu0
  %v1990 = vadd.f32 %v1870, %v1989
  %v1991 = vpop.f32.mrb[0].mxu0
  %v1992 = vpop.f32.mrb[0].mxu0
  %v1993 = vadd.f32 %v1873, %v1992
  %v1994 = vpop.f32.mrb[0].mxu0
  %1995 = vmatprep.mubr.bf16.mxu0 %v828
  %1996 = vmatmul.mubr.bf16.gmra.mrb[0].mxu0 %v827
  %v1997 = vpop.f32.mrb[0].mxu0
  %v1998 = vadd.f32 %v1878, %v1997
  %v1999 = vpop.f32.mrb[0].mxu0
  %v2000 = vpop.f32.mrb[0].mxu0
  %v2001 = vadd.f32 %v1881, %v2000
  %v2002 = vpop.f32.mrb[0].mxu0
  %2003 = vmatprep.mubr.bf16.mxu0 %v841
  %2004 = vmatmul.mubr.bf16.gmra.mrb[0].mxu0 %v840
  %v2005 = vpop.f32.mrb[0].mxu0
  %v2006 = vadd.f32 %v1886, %v2005
  %v2007 = vpop.f32.mrb[0].mxu0
  %v2008 = vpop.f32.mrb[0].mxu0
  %v2009 = vadd.f32 %v1889, %v2008
  %v2010 = vpop.f32.mrb[0].mxu0
  %2011 = vmatprep.mubr.bf16.mxu0 %v854
  %2012 = vmatmul.mubr.bf16.gmra.mrb[0].mxu0 %v853
  %v2013 = vpop.f32.mrb[0].mxu0
  %v2014 = vadd.f32 %v1894, %v2013
  %v2015 = vpop.f32.mrb[0].mxu0
  %v2016 = vpop.f32.mrb[0].mxu0
  %v2017 = vadd.f32 %v1897, %v2016
  %v2018 = vpop.f32.mrb[0].mxu0
  %2019 = vmatprep.mubr.bf16.mxu0 %v867
  %2020 = vmatmul.mubr.bf16.gmra.mrb[0].mxu0 %v866
  %v2021 = vpop.f32.mrb[0].mxu0
  %v2022 = vadd.f32 %v1902, %v2021
  %v2023 = vpop.f32.mrb[0].mxu0
  %v2024 = vpop.f32.mrb[0].mxu0
  %v2025 = vadd.f32 %v1905, %v2024
  %v2026 = vpop.f32.mrb[0].mxu0
  %2027 = vmatprep.mubr.bf16.mxu0 %v880
  %2028 = vmatmul.mubr.bf16.gmra.mrb[0].mxu0 %v879
  %v2029 = vpop.f32.mrb[0].mxu0
  %v2030 = vadd.f32 %v1910, %v2029
  %v2031 = vpop.f32.mrb[0].mxu0
  %v2032 = vpop.f32.mrb[0].mxu0
  %v2033 = vadd.f32 %v1913, %v2032
  %v2034 = vpop.f32.mrb[0].mxu0
  %2035 = vmatprep.mubr.bf16.mxu0 %v893
  %2036 = vmatmul.mubr.bf16.gmra.mrb[0].mxu0 %v892
  %v2037 = vpop.f32.mrb[0].mxu0
  %v2038 = vadd.f32 %v1918, %v2037
  %v2039 = vpop.f32.mrb[0].mxu0
  %v2040 = vpop.f32.mrb[0].mxu0
  %v2041 = vadd.f32 %v1921, %v2040
  %v2042 = vpop.f32.mrb[0].mxu0
  %2043 = vmatprep.mubr.bf16.mxu0 %v906
  %2044 = vmatmul.mubr.bf16.gmra.mrb[0].mxu0 %v905
  %v2045 = vpop.f32.mrb[0].mxu0
  %v2046 = vadd.f32 %v1926, %v2045
  %v2047 = vpop.f32.mrb[0].mxu0
  %v2048 = vpop.f32.mrb[0].mxu0
  %v2049 = vadd.f32 %v1929, %v2048
  %v2050 = vpop.f32.mrb[0].mxu0
  %2051 = vmatprep.mubr.bf16.mxu0 %v919
  %2052 = vmatmul.mubr.bf16.gmra.mrb[0].mxu0 %v918
  %v2053 = vpop.f32.mrb[0].mxu0
  %v2054 = vadd.f32 %v1934, %v2053
  %v2055 = vpop.f32.mrb[0].mxu0
  %v2056 = vpop.f32.mrb[0].mxu0
  %v2057 = vadd.f32 %v1937, %v2056
  %v2058 = vpop.f32.mrb[0].mxu0
  %2059 = vmatprep.mubr.bf16.mxu0 %v932
  %2060 = vmatmul.mubr.bf16.gmra.mrb[0].mxu0 %v931
  %v2061 = vpop.f32.mrb[0].mxu0
  %v2062 = vadd.f32 %v1942, %v2061
  %v2063 = vpop.f32.mrb[0].mxu0
  %v2064 = vpop.f32.mrb[0].mxu0
  %v2065 = vpop.f32.mrb[0].mxu0
  %2066 = vdwg.mxu0
  %2067 = vmatprep.subr.bf16.mxu0 0
  %2068 = vmatpush1.bf16.msra.mxu0 %v1547
  %2069 = vmatprep.subr.bf16.mxu0 0
  %2070 = vmatpush1.bf16.msra.mxu0 %v1548
  %2071 = vmatprep.subr.bf16.mxu0 0
  %2072 = vmatpush1.bf16.msra.mxu0 %v1549
  %2073 = vmatprep.subr.bf16.mxu0 0
  %2074 = vmatpush1.bf16.msra.mxu0 %v1550
  %2075 = vmatprep.subr.bf16.mxu0 0
  %2076 = vmatpush1.bf16.msra.mxu0 %v1551
  %2077 = vmatprep.subr.bf16.mxu0 0
  %2078 = vmatpush1.bf16.msra.mxu0 %v1552
  %2079 = vmatprep.subr.bf16.mxu0 0
  %2080 = vmatpush1.bf16.msra.mxu0 %v1553
  %2081 = vmatprep.subr.bf16.mxu0 0
  %2082 = vmatpush1.bf16.msra.mxu0 %v1554
  %2083 = vmatprep.subr.bf16.mxu0 0
  %2084 = vmatpush1.bf16.msra.mxu0 %v1555
  %2085 = vmatprep.subr.bf16.mxu0 0
  %2086 = vmatpush1.bf16.msra.mxu0 %v1556
  %2087 = vmatprep.subr.bf16.mxu0 0
  %2088 = vmatpush1.bf16.msra.mxu0 %v1557
  %2089 = vmatprep.subr.bf16.mxu0 0
  %2090 = vmatpush1.bf16.msra.mxu0 %v1558
  %2091 = vmatprep.subr.bf16.mxu0 0
  %2092 = vmatpush1.bf16.msra.mxu0 %v1559
  %2093 = vmatprep.subr.bf16.mxu0 0
  %2094 = vmatpush1.bf16.msra.mxu0 %v1560
  %2095 = vmatprep.subr.bf16.mxu0 0
  %2096 = vmatpush1.bf16.msra.mxu0 %v1561
  %2097 = vmatprep.subr.bf16.mxu0 0
  %2098 = vmatpush1.bf16.msra.mxu0 %v1562
  %2099 = vmatprep.mubr.bf16.mxu0 %v804
  %2100 = vmatmul.mubr.bf16.gmra.mrb[0].mxu0 %v803
  %v2101 = vpop.f32.mrb[0].mxu0
  %v2102 = vadd.f32 %v1982, %v2101
  %v2103 = vpop.f32.mrb[0].mxu0
  %v2104 = vpop.f32.mrb[0].mxu0
  %v2105 = vadd.f32 %v1985, %v2104
  %v2106 = vpop.f32.mrb[0].mxu0
  %2107 = vmatprep.mubr.bf16.mxu0 %v817
  %2108 = vmatmul.mubr.bf16.gmra.mrb[0].mxu0 %v816
  %v2109 = vpop.f32.mrb[0].mxu0
  %v2110 = vadd.f32 %v1990, %v2109
  %v2111 = vpop.f32.mrb[0].mxu0
  %v2112 = vpop.f32.mrb[0].mxu0
  %v2113 = vadd.f32 %v1993, %v2112
  %v2114 = vpop.f32.mrb[0].mxu0
  %2115 = vmatprep.mubr.bf16.mxu0 %v830
  %2116 = vmatmul.mubr.bf16.gmra.mrb[0].mxu0 %v829
  %v2117 = vpop.f32.mrb[0].mxu0
  %v2118 = vadd.f32 %v1998, %v2117
  %v2119 = vpop.f32.mrb[0].mxu0
  %v2120 = vpop.f32.mrb[0].mxu0
  %v2121 = vadd.f32 %v2001, %v2120
  %v2122 = vpop.f32.mrb[0].mxu0
  %2123 = vmatprep.mubr.bf16.mxu0 %v843
  %2124 = vmatmul.mubr.bf16.gmra.mrb[0].mxu0 %v842
  %v2125 = vpop.f32.mrb[0].mxu0
  %v2126 = vadd.f32 %v2006, %v2125
  %v2127 = vpop.f32.mrb[0].mxu0
  %v2128 = vpop.f32.mrb[0].mxu0
  %v2129 = vadd.f32 %v2009, %v2128
  %v2130 = vpop.f32.mrb[0].mxu0
  %2131 = vmatprep.mubr.bf16.mxu0 %v856
  %2132 = vmatmul.mubr.bf16.gmra.mrb[0].mxu0 %v855
  %v2133 = vpop.f32.mrb[0].mxu0
  %v2134 = vadd.f32 %v2014, %v2133
  %v2135 = vpop.f32.mrb[0].mxu0
  %v2136 = vpop.f32.mrb[0].mxu0
  %v2137 = vadd.f32 %v2017, %v2136
  %v2138 = vpop.f32.mrb[0].mxu0
  %2139 = vmatprep.mubr.bf16.mxu0 %v869
  %2140 = vmatmul.mubr.bf16.gmra.mrb[0].mxu0 %v868
  %v2141 = vpop.f32.mrb[0].mxu0
  %v2142 = vadd.f32 %v2022, %v2141
  %v2143 = vpop.f32.mrb[0].mxu0
  %v2144 = vpop.f32.mrb[0].mxu0
  %v2145 = vadd.f32 %v2025, %v2144
  %v2146 = vpop.f32.mrb[0].mxu0
  %2147 = vmatprep.mubr.bf16.mxu0 %v882
  %2148 = vmatmul.mubr.bf16.gmra.mrb[0].mxu0 %v881
  %v2149 = vpop.f32.mrb[0].mxu0
  %v2150 = vadd.f32 %v2030, %v2149
  %v2151 = vpop.f32.mrb[0].mxu0
  %v2152 = vpop.f32.mrb[0].mxu0
  %v2153 = vadd.f32 %v2033, %v2152
  %v2154 = vpop.f32.mrb[0].mxu0
  %2155 = vmatprep.mubr.bf16.mxu0 %v895
  %2156 = vmatmul.mubr.bf16.gmra.mrb[0].mxu0 %v894
  %v2157 = vpop.f32.mrb[0].mxu0
  %v2158 = vadd.f32 %v2038, %v2157
  %v2159 = vpop.f32.mrb[0].mxu0
  %v2160 = vpop.f32.mrb[0].mxu0
  %v2161 = vadd.f32 %v2041, %v2160
  %v2162 = vpop.f32.mrb[0].mxu0
  %2163 = vmatprep.mubr.bf16.mxu0 %v908
  %2164 = vmatmul.mubr.bf16.gmra.mrb[0].mxu0 %v907
  %v2165 = vpop.f32.mrb[0].mxu0
  %v2166 = vadd.f32 %v2046, %v2165
  %v2167 = vpop.f32.mrb[0].mxu0
  %v2168 = vpop.f32.mrb[0].mxu0
  %v2169 = vadd.f32 %v2049, %v2168
  %v2170 = vpop.f32.mrb[0].mxu0
  %2171 = vmatprep.mubr.bf16.mxu0 %v921
  %2172 = vmatmul.mubr.bf16.gmra.mrb[0].mxu0 %v920
  %v2173 = vpop.f32.mrb[0].mxu0
  %v2174 = vadd.f32 %v2054, %v2173
  %v2175 = vpop.f32.mrb[0].mxu0
  %v2176 = vpop.f32.mrb[0].mxu0
  %v2177 = vadd.f32 %v2057, %v2176
  %v2178 = vpop.f32.mrb[0].mxu0
  %2179 = vmatprep.mubr.bf16.mxu0 %v934
  %2180 = vmatmul.mubr.bf16.gmra.mrb[0].mxu0 %v933
  %v2181 = vpop.f32.mrb[0].mxu0
  %v2182 = vadd.f32 %v2062, %v2181
  %v2183 = vpop.f32.mrb[0].mxu0
  %v2184 = vpop.f32.mrb[0].mxu0
  %v2185 = vpop.f32.mrb[0].mxu0
  %2186 = vdwg.mxu0
  %2187 = vmatprep.subr.bf16.mxu0 0
  %2188 = vmatpush1.bf16.msra.mxu0 %v1563
  %2189 = vmatprep.subr.bf16.mxu0 0
  %2190 = vmatpush1.bf16.msra.mxu0 %v1564
  %2191 = vmatprep.subr.bf16.mxu0 0
  %2192 = vmatpush1.bf16.msra.mxu0 %v1565
  %2193 = vmatprep.subr.bf16.mxu0 0
  %2194 = vmatpush1.bf16.msra.mxu0 %v1566
  %2195 = vmatprep.subr.bf16.mxu0 0
  %2196 = vmatpush1.bf16.msra.mxu0 %v1567
  %2197 = vmatprep.subr.bf16.mxu0 0
  %2198 = vmatpush1.bf16.msra.mxu0 %v1568
  %2199 = vmatprep.subr.bf16.mxu0 0
  %2200 = vmatpush1.bf16.msra.mxu0 %v1569
  %2201 = vmatprep.subr.bf16.mxu0 0
  %2202 = vmatpush1.bf16.msra.mxu0 %v1570
  %2203 = vmatprep.subr.bf16.mxu0 0
  %2204 = vmatpush1.bf16.msra.mxu0 %v1571
  %2205 = vmatprep.subr.bf16.mxu0 0
  %2206 = vmatpush1.bf16.msra.mxu0 %v1572
  %2207 = vmatprep.subr.bf16.mxu0 0
  %2208 = vmatpush1.bf16.msra.mxu0 %v1573
  %2209 = vmatprep.subr.bf16.mxu0 0
  %2210 = vmatpush1.bf16.msra.mxu0 %v1574
  %2211 = vmatprep.subr.bf16.mxu0 0
  %2212 = vmatpush1.bf16.msra.mxu0 %v1575
  %2213 = vmatprep.subr.bf16.mxu0 0
  %2214 = vmatpush1.bf16.msra.mxu0 %v1576
  %2215 = vmatprep.subr.bf16.mxu0 0
  %2216 = vmatpush1.bf16.msra.mxu0 %v1577
  %2217 = vmatprep.subr.bf16.mxu0 0
  %2218 = vmatpush1.bf16.msra.mxu0 %v1578
  %2219 = vmatprep.mubr.bf16.mxu0 %v806
  %2220 = vmatmul.mubr.bf16.gmra.mrb[0].mxu0 %v805
  %v2221 = vpop.f32.mrb[0].mxu0
  %v2222 = vadd.f32 %v2102, %v2221
  %v2223 = vpop.f32.mrb[0].mxu0
  %v2224 = vpop.f32.mrb[0].mxu0
  %v2225 = vadd.f32 %v2105, %v2224
  %v2226 = vpop.f32.mrb[0].mxu0
  %2227 = vmatprep.mubr.bf16.mxu0 %v819
  %2228 = vmatmul.mubr.bf16.gmra.mrb[0].mxu0 %v818
  %v2229 = vpop.f32.mrb[0].mxu0
  %v2230 = vadd.f32 %v2110, %v2229
  %v2231 = vpop.f32.mrb[0].mxu0
  %v2232 = vpop.f32.mrb[0].mxu0
  %v2233 = vadd.f32 %v2113, %v2232
  %v2234 = vpop.f32.mrb[0].mxu0
  %2235 = vmatprep.mubr.bf16.mxu0 %v832
  %2236 = vmatmul.mubr.bf16.gmra.mrb[0].mxu0 %v831
  %v2237 = vpop.f32.mrb[0].mxu0
  %v2238 = vadd.f32 %v2118, %v2237
  %v2239 = vpop.f32.mrb[0].mxu0
  %v2240 = vpop.f32.mrb[0].mxu0
  %v2241 = vadd.f32 %v2121, %v2240
  %v2242 = vpop.f32.mrb[0].mxu0
  %2243 = vmatprep.mubr.bf16.mxu0 %v845
  %2244 = vmatmul.mubr.bf16.gmra.mrb[0].mxu0 %v844
  %v2245 = vpop.f32.mrb[0].mxu0
  %v2246 = vadd.f32 %v2126, %v2245
  %v2247 = vpop.f32.mrb[0].mxu0
  %v2248 = vpop.f32.mrb[0].mxu0
  %v2249 = vadd.f32 %v2129, %v2248
  %v2250 = vpop.f32.mrb[0].mxu0
  %2251 = vmatprep.mubr.bf16.mxu0 %v858
  %2252 = vmatmul.mubr.bf16.gmra.mrb[0].mxu0 %v857
  %v2253 = vpop.f32.mrb[0].mxu0
  %v2254 = vadd.f32 %v2134, %v2253
  %v2255 = vpop.f32.mrb[0].mxu0
  %v2256 = vpop.f32.mrb[0].mxu0
  %v2257 = vadd.f32 %v2137, %v2256
  %v2258 = vpop.f32.mrb[0].mxu0
  %2259 = vmatprep.mubr.bf16.mxu0 %v871
  %2260 = vmatmul.mubr.bf16.gmra.mrb[0].mxu0 %v870
  %v2261 = vpop.f32.mrb[0].mxu0
  %v2262 = vadd.f32 %v2142, %v2261
  %v2263 = vpop.f32.mrb[0].mxu0
  %v2264 = vpop.f32.mrb[0].mxu0
  %v2265 = vadd.f32 %v2145, %v2264
  %v2266 = vpop.f32.mrb[0].mxu0
  %2267 = vmatprep.mubr.bf16.mxu0 %v884
  %2268 = vmatmul.mubr.bf16.gmra.mrb[0].mxu0 %v883
  %v2269 = vpop.f32.mrb[0].mxu0
  %v2270 = vadd.f32 %v2150, %v2269
  %v2271 = vpop.f32.mrb[0].mxu0
  %v2272 = vpop.f32.mrb[0].mxu0
  %v2273 = vadd.f32 %v2153, %v2272
  %v2274 = vpop.f32.mrb[0].mxu0
  %2275 = vmatprep.mubr.bf16.mxu0 %v897
  %2276 = vmatmul.mubr.bf16.gmra.mrb[0].mxu0 %v896
  %v2277 = vpop.f32.mrb[0].mxu0
  %v2278 = vadd.f32 %v2158, %v2277
  %v2279 = vpop.f32.mrb[0].mxu0
  %v2280 = vpop.f32.mrb[0].mxu0
  %v2281 = vadd.f32 %v2161, %v2280
  %v2282 = vpop.f32.mrb[0].mxu0
  %2283 = vmatprep.mubr.bf16.mxu0 %v910
  %2284 = vmatmul.mubr.bf16.gmra.mrb[0].mxu0 %v909
  %v2285 = vpop.f32.mrb[0].mxu0
  %v2286 = vadd.f32 %v2166, %v2285
  %v2287 = vpop.f32.mrb[0].mxu0
  %v2288 = vpop.f32.mrb[0].mxu0
  %v2289 = vadd.f32 %v2169, %v2288
  %v2290 = vpop.f32.mrb[0].mxu0
  %2291 = vmatprep.mubr.bf16.mxu0 %v923
  %2292 = vmatmul.mubr.bf16.gmra.mrb[0].mxu0 %v922
  %v2293 = vpop.f32.mrb[0].mxu0
  %v2294 = vadd.f32 %v2174, %v2293
  %v2295 = vpop.f32.mrb[0].mxu0
  %v2296 = vpop.f32.mrb[0].mxu0
  %v2297 = vadd.f32 %v2177, %v2296
  %v2298 = vpop.f32.mrb[0].mxu0
  %2299 = vmatprep.mubr.bf16.mxu0 %v936
  %2300 = vmatmul.mubr.bf16.gmra.mrb[0].mxu0 %v935
  %v2301 = vpop.f32.mrb[0].mxu0
  %v2302 = vadd.f32 %v2182, %v2301
  %v2303 = vpop.f32.mrb[0].mxu0
  %v2304 = vpop.f32.mrb[0].mxu0
  %v2305 = vpop.f32.mrb[0].mxu0
  %2306 = vdwg.mxu0
  %2307 = vmatprep.subr.bf16.mxu0 0
  %2308 = vmatpush1.bf16.msra.mxu0 %v1579
  %2309 = vmatprep.subr.bf16.mxu0 0
  %2310 = vmatpush1.bf16.msra.mxu0 %v1580
  %2311 = vmatprep.subr.bf16.mxu0 0
  %2312 = vmatpush1.bf16.msra.mxu0 %v1581
  %2313 = vmatprep.subr.bf16.mxu0 0
  %2314 = vmatpush1.bf16.msra.mxu0 %v1582
  %2315 = vmatprep.subr.bf16.mxu0 0
  %2316 = vmatpush1.bf16.msra.mxu0 %v1583
  %2317 = vmatprep.subr.bf16.mxu0 0
  %2318 = vmatpush1.bf16.msra.mxu0 %v1584
  %2319 = vmatprep.subr.bf16.mxu0 0
  %2320 = vmatpush1.bf16.msra.mxu0 %v1585
  %2321 = vmatprep.subr.bf16.mxu0 0
  %2322 = vmatpush1.bf16.msra.mxu0 %v1586
  %2323 = vmatprep.subr.bf16.mxu0 0
  %2324 = vmatpush1.bf16.msra.mxu0 %v1587
  %2325 = vmatprep.subr.bf16.mxu0 0
  %2326 = vmatpush1.bf16.msra.mxu0 %v1588
  %2327 = vmatprep.subr.bf16.mxu0 0
  %2328 = vmatpush1.bf16.msra.mxu0 %v1589
  %2329 = vmatprep.subr.bf16.mxu0 0
  %2330 = vmatpush1.bf16.msra.mxu0 %v1590
  %2331 = vmatprep.subr.bf16.mxu0 0
  %2332 = vmatpush1.bf16.msra.mxu0 %v1591
  %2333 = vmatprep.subr.bf16.mxu0 0
  %2334 = vmatpush1.bf16.msra.mxu0 %v1592
  %2335 = vmatprep.subr.bf16.mxu0 0
  %2336 = vmatpush1.bf16.msra.mxu0 %v1593
  %2337 = vmatprep.subr.bf16.mxu0 0
  %2338 = vmatpush1.bf16.msra.mxu0 %v1594
  %2339 = vmatprep.mubr.bf16.mxu0 %v808
  %2340 = vmatmul.mubr.bf16.gmra.mrb[0].mxu0 %v807
  %v2341 = vpop.f32.mrb[0].mxu0
  %v2342 = vadd.f32 %v2222, %v2341
  %v2343 = vpop.f32.mrb[0].mxu0
  %v2344 = vpop.f32.mrb[0].mxu0
  %v2345 = vadd.f32 %v2225, %v2344
  %v2346 = vpop.f32.mrb[0].mxu0
  %2347 = vmatprep.mubr.bf16.mxu0 %v821
  %2348 = vmatmul.mubr.bf16.gmra.mrb[0].mxu0 %v820
  %v2349 = vpop.f32.mrb[0].mxu0
  %v2350 = vadd.f32 %v2230, %v2349
  %v2351 = vpop.f32.mrb[0].mxu0
  %v2352 = vpop.f32.mrb[0].mxu0
  %v2353 = vadd.f32 %v2233, %v2352
  %v2354 = vpop.f32.mrb[0].mxu0
  %2355 = vmatprep.mubr.bf16.mxu0 %v834
  %2356 = vmatmul.mubr.bf16.gmra.mrb[0].mxu0 %v833
  %v2357 = vpop.f32.mrb[0].mxu0
  %v2358 = vadd.f32 %v2238, %v2357
  %v2359 = vpop.f32.mrb[0].mxu0
  %v2360 = vpop.f32.mrb[0].mxu0
  %v2361 = vadd.f32 %v2241, %v2360
  %v2362 = vpop.f32.mrb[0].mxu0
  %2363 = vmatprep.mubr.bf16.mxu0 %v847
  %2364 = vmatmul.mubr.bf16.gmra.mrb[0].mxu0 %v846
  %v2365 = vpop.f32.mrb[0].mxu0
  %v2366 = vadd.f32 %v2246, %v2365
  %v2367 = vpop.f32.mrb[0].mxu0
  %v2368 = vpop.f32.mrb[0].mxu0
  %v2369 = vadd.f32 %v2249, %v2368
  %v2370 = vpop.f32.mrb[0].mxu0
  %2371 = vmatprep.mubr.bf16.mxu0 %v860
  %2372 = vmatmul.mubr.bf16.gmra.mrb[0].mxu0 %v859
  %v2373 = vpop.f32.mrb[0].mxu0
  %v2374 = vadd.f32 %v2254, %v2373
  %v2375 = vpop.f32.mrb[0].mxu0
  %v2376 = vpop.f32.mrb[0].mxu0
  %v2377 = vadd.f32 %v2257, %v2376
  %v2378 = vpop.f32.mrb[0].mxu0
  %2379 = vmatprep.mubr.bf16.mxu0 %v873
  %2380 = vmatmul.mubr.bf16.gmra.mrb[0].mxu0 %v872
  %v2381 = vpop.f32.mrb[0].mxu0
  %v2382 = vadd.f32 %v2262, %v2381
  %v2383 = vpop.f32.mrb[0].mxu0
  %v2384 = vpop.f32.mrb[0].mxu0
  %v2385 = vadd.f32 %v2265, %v2384
  %v2386 = vpop.f32.mrb[0].mxu0
  %2387 = vmatprep.mubr.bf16.mxu0 %v886
  %2388 = vmatmul.mubr.bf16.gmra.mrb[0].mxu0 %v885
  %v2389 = vpop.f32.mrb[0].mxu0
  %v2390 = vadd.f32 %v2270, %v2389
  %v2391 = vpop.f32.mrb[0].mxu0
  %v2392 = vpop.f32.mrb[0].mxu0
  %v2393 = vadd.f32 %v2273, %v2392
  %v2394 = vpop.f32.mrb[0].mxu0
  %2395 = vmatprep.mubr.bf16.mxu0 %v899
  %2396 = vmatmul.mubr.bf16.gmra.mrb[0].mxu0 %v898
  %v2397 = vpop.f32.mrb[0].mxu0
  %v2398 = vadd.f32 %v2278, %v2397
  %v2399 = vpop.f32.mrb[0].mxu0
  %v2400 = vpop.f32.mrb[0].mxu0
  %v2401 = vadd.f32 %v2281, %v2400
  %v2402 = vpop.f32.mrb[0].mxu0
  %2403 = vmatprep.mubr.bf16.mxu0 %v912
  %2404 = vmatmul.mubr.bf16.gmra.mrb[0].mxu0 %v911
  %v2405 = vpop.f32.mrb[0].mxu0
  %v2406 = vadd.f32 %v2286, %v2405
  %v2407 = vpop.f32.mrb[0].mxu0
  %v2408 = vpop.f32.mrb[0].mxu0
  %v2409 = vadd.f32 %v2289, %v2408
  %v2410 = vpop.f32.mrb[0].mxu0
  %2411 = vmatprep.mubr.bf16.mxu0 %v925
  %2412 = vmatmul.mubr.bf16.gmra.mrb[0].mxu0 %v924
  %v2413 = vpop.f32.mrb[0].mxu0
  %v2414 = vadd.f32 %v2294, %v2413
  %v2415 = vpop.f32.mrb[0].mxu0
  %v2416 = vpop.f32.mrb[0].mxu0
  %v2417 = vadd.f32 %v2297, %v2416
  %v2418 = vpop.f32.mrb[0].mxu0
  %2419 = vmatprep.mubr.bf16.mxu0 %v938
  %2420 = vmatmul.mubr.bf16.gmra.mrb[0].mxu0 %v937
  %v2421 = vpop.f32.mrb[0].mxu0
  %v2422 = vadd.f32 %v2302, %v2421
  %v2423 = vpop.f32.mrb[0].mxu0
  %v2424 = vpop.f32.mrb[0].mxu0
  %v2425 = vpop.f32.mrb[0].mxu0
  %2426 = vdwg.mxu0
  %2427 = vmatprep.subr.bf16.mxu0 0
  %2428 = vmatpush1.bf16.msra.mxu0 %v1595
  %2429 = vmatprep.subr.bf16.mxu0 0
  %2430 = vmatpush1.bf16.msra.mxu0 %v1596
  %2431 = vmatprep.subr.bf16.mxu0 0
  %2432 = vmatpush1.bf16.msra.mxu0 %v1597
  %2433 = vmatprep.subr.bf16.mxu0 0
  %2434 = vmatpush1.bf16.msra.mxu0 %v1598
  %2435 = vmatprep.subr.bf16.mxu0 0
  %2436 = vmatpush1.bf16.msra.mxu0 %v1599
  %2437 = vmatprep.subr.bf16.mxu0 0
  %2438 = vmatpush1.bf16.msra.mxu0 %v1600
  %2439 = vmatprep.subr.bf16.mxu0 0
  %2440 = vmatpush1.bf16.msra.mxu0 %v1601
  %2441 = vmatprep.subr.bf16.mxu0 0
  %2442 = vmatpush1.bf16.msra.mxu0 %v1602
  %2443 = vmatprep.subr.bf16.mxu0 0
  %2444 = vmatpush1.bf16.msra.mxu0 0
  %2445 = vmatprep.subr.bf16.mxu0 0
  %2446 = vmatpush1.bf16.msra.mxu0 0
  %2447 = vmatprep.subr.bf16.mxu0 0
  %2448 = vmatpush1.bf16.msra.mxu0 0
  %2449 = vmatprep.subr.bf16.mxu0 0
  %2450 = vmatpush1.bf16.msra.mxu0 0
  %2451 = vmatprep.subr.bf16.mxu0 0
  %2452 = vmatpush1.bf16.msra.mxu0 0
  %2453 = vmatprep.subr.bf16.mxu0 0
  %2454 = vmatpush1.bf16.msra.mxu0 0
  %2455 = vmatprep.subr.bf16.mxu0 0
  %2456 = vmatpush1.bf16.msra.mxu0 0
  %2457 = vmatprep.subr.bf16.mxu0 0
  %2458 = vmatpush1.bf16.msra.mxu0 0
  %2459 = vmatprep.mubr.bf16.mxu0 0
  %2460 = vmatmul.mubr.bf16.gmra.mrb[0].mxu0 %v809
  %v2461 = vpop.f32.mrb[0].mxu0
  %v2462 = vadd.f32 %v2342, %v2461
  %v2463 = vpop.f32.mrb[0].mxu0
  %v2464 = vpop.f32.mrb[0].mxu0
  %v2465 = vadd.f32 %v2345, %v2464
  %v2466 = vpop.f32.mrb[0].mxu0
  %2467 = vmatprep.mubr.bf16.mxu0 0
  %2468 = vmatmul.mubr.bf16.gmra.mrb[0].mxu0 %v822
  %v2469 = vpop.f32.mrb[0].mxu0
  %v2470 = vadd.f32 %v2350, %v2469
  %v2471 = vpop.f32.mrb[0].mxu0
  %v2472 = vpop.f32.mrb[0].mxu0
  %v2473 = vadd.f32 %v2353, %v2472
  %v2474 = vpop.f32.mrb[0].mxu0
  %2475 = vmatprep.mubr.bf16.mxu0 0
  %2476 = vmatmul.mubr.bf16.gmra.mrb[0].mxu0 %v835
  %v2477 = vpop.f32.mrb[0].mxu0
  %v2478 = vadd.f32 %v2358, %v2477
  %v2479 = vpop.f32.mrb[0].mxu0
  %v2480 = vpop.f32.mrb[0].mxu0
  %v2481 = vadd.f32 %v2361, %v2480
  %v2482 = vpop.f32.mrb[0].mxu0
  %2483 = vmatprep.mubr.bf16.mxu0 0
  %2484 = vmatmul.mubr.bf16.gmra.mrb[0].mxu0 %v848
  %v2485 = vpop.f32.mrb[0].mxu0
  %v2486 = vadd.f32 %v2366, %v2485
  %v2487 = vpop.f32.mrb[0].mxu0
  %v2488 = vpop.f32.mrb[0].mxu0
  %v2489 = vadd.f32 %v2369, %v2488
  %v2490 = vpop.f32.mrb[0].mxu0
  %2491 = vmatprep.mubr.bf16.mxu0 0
  %2492 = vmatmul.mubr.bf16.gmra.mrb[0].mxu0 %v861
  %v2493 = vpop.f32.mrb[0].mxu0
  %v2494 = vadd.f32 %v2374, %v2493
  %v2495 = vpop.f32.mrb[0].mxu0
  %v2496 = vpop.f32.mrb[0].mxu0
  %v2497 = vadd.f32 %v2377, %v2496
  %v2498 = vpop.f32.mrb[0].mxu0
  %2499 = vmatprep.mubr.bf16.mxu0 0
  %2500 = vmatmul.mubr.bf16.gmra.mrb[0].mxu0 %v874
  %v2501 = vpop.f32.mrb[0].mxu0
  %v2502 = vadd.f32 %v2382, %v2501
  %v2503 = vpop.f32.mrb[0].mxu0
  %v2504 = vpop.f32.mrb[0].mxu0
  %v2505 = vadd.f32 %v2385, %v2504
  %v2506 = vpop.f32.mrb[0].mxu0
  %2507 = vmatprep.mubr.bf16.mxu0 0
  %2508 = vmatmul.mubr.bf16.gmra.mrb[0].mxu0 %v887
  %v2509 = vpop.f32.mrb[0].mxu0
  %v2510 = vadd.f32 %v2390, %v2509
  %v2511 = vpop.f32.mrb[0].mxu0
  %v2512 = vpop.f32.mrb[0].mxu0
  %v2513 = vadd.f32 %v2393, %v2512
  %v2514 = vpop.f32.mrb[0].mxu0
  %2515 = vmatprep.mubr.bf16.mxu0 0
  %2516 = vmatmul.mubr.bf16.gmra.mrb[0].mxu0 %v900
  %v2517 = vpop.f32.mrb[0].mxu0
  %v2518 = vadd.f32 %v2398, %v2517
  %v2519 = vpop.f32.mrb[0].mxu0
  %v2520 = vpop.f32.mrb[0].mxu0
  %v2521 = vadd.f32 %v2401, %v2520
  %v2522 = vpop.f32.mrb[0].mxu0
  %2523 = vmatprep.mubr.bf16.mxu0 0
  %2524 = vmatmul.mubr.bf16.gmra.mrb[0].mxu0 %v913
  %v2525 = vpop.f32.mrb[0].mxu0
  %v2526 = vadd.f32 %v2406, %v2525
  %v2527 = vpop.f32.mrb[0].mxu0
  %v2528 = vpop.f32.mrb[0].mxu0
  %v2529 = vadd.f32 %v2409, %v2528
  %v2530 = vpop.f32.mrb[0].mxu0
  %2531 = vmatprep.mubr.bf16.mxu0 0
  %2532 = vmatmul.mubr.bf16.gmra.mrb[0].mxu0 %v926
  %v2533 = vpop.f32.mrb[0].mxu0
  %v2534 = vadd.f32 %v2414, %v2533
  %v2535 = vpop.f32.mrb[0].mxu0
  %v2536 = vpop.f32.mrb[0].mxu0
  %v2537 = vadd.f32 %v2417, %v2536
  %v2538 = vpop.f32.mrb[0].mxu0
  %2539 = vmatprep.mubr.bf16.mxu0 0
  %2540 = vmatmul.mubr.bf16.gmra.mrb[0].mxu0 %v939
  %v2541 = vpop.f32.mrb[0].mxu0
  %v2542 = vadd.f32 %v2422, %v2541
  %v2543 = vpop.f32.mrb[0].mxu0
  %v2544 = vpop.f32.mrb[0].mxu0
  %v2545 = vpop.f32.mrb[0].mxu0
  %2546 = vdwg.mxu0
  %2547 = vst [vmem:[%s3] sm:$0xff] %v2462
  %2548 = vst [vmem:[%s3 + $0x8] sm:$0xff] %v2465
  %2549 = vst [vmem:[%s3 + $0x10] sm:$0xff] %v2470
  %2550 = vst [vmem:[%s3 + $0x18] sm:$0xff] %v2473
  %2551 = vst [vmem:[%s3 + $0x20] sm:$0xff] %v2478
  %2552 = vst [vmem:[%s3 + $0x28] sm:$0xff] %v2481
  %2553 = vst [vmem:[%s3 + $0x30] sm:$0xff] %v2486
  %2554 = vst [vmem:[%s3 + $0x38] sm:$0xff] %v2489
  %2555 = vst [vmem:[%s3 + $0x40] sm:$0xff] %v2494
  %2556 = vst [vmem:[%s3 + $0x48] sm:$0xff] %v2497
  %2557 = vst [vmem:[%s3 + $0x50] sm:$0xff] %v2502
  %2558 = vst [vmem:[%s3 + $0x58] sm:$0xff] %v2505
  %2559 = vst [vmem:[%s3 + $0x60] sm:$0xff] %v2510
  %2560 = vst [vmem:[%s3 + $0x68] sm:$0xff] %v2513
  %2561 = vst [vmem:[%s3 + $0x70] sm:$0xff] %v2518
  %2562 = vst [vmem:[%s3 + $0x78] sm:$0xff] %v2521
  %2563 = vst [vmem:[%s3 + $0x80] sm:$0xff] %v2526
  %2564 = vst [vmem:[%s3 + $0x88] sm:$0xff] %v2529
  %2565 = vst [vmem:[%s3 + $0x90] sm:$0xff] %v2534
  %2566 = vst [vmem:[%s3 + $0x98] sm:$0xff] %v2537
  %2567 = vst [vmem:[%s3 + $0xa0] sm:$0x3] %v2542
  // Predicated region
  $region14: #{_lambda_.2} parent=0 // pred_check
    _
  $region15: #{_lambda_.2} parent=0 // pred_check_branch
    %2569 = sbr.rel (0) target = $region17
  $region16: #{_lambda_.2} parent=0 // pred_region
    _
  $region17: #{_lambda_.2} parent=0 // pred_fallthru
    _
  // Predicated region
  $region18: #{_lambda_.2} parent=0 // pred_check
    _
  $region19: #{_lambda_.2} parent=0 // pred_check_branch
    %2571 = sbr.rel (0) target = $region21
  $region20: #{_lambda_.2} parent=0 // pred_region
    _
  $region21: #{_lambda_.2} parent=0 // pred_fallthru
    _

// kernel: _lambda_.3
$region0: #{_lambda_.3}
  #allocation0 [shape = 'u32[]', space=smem, size = 0x4, offset = 0x4, fixed_abs, tag = 'smem constant byte address 0x4 - core index']
  #allocation1 [shape = 'u32[144,128]{1,0:T(1,128)}', space=vmem, size = 0x12000, scoped, tag = 'internal scratch']
  %s0 = inlined_call_operand.vmem [shape: f32[2,88,128], index: 0, kind: input, shape index: {}]
  %s1 = inlined_call_operand.vmem [shape: bf16[32,1152], index: 1, kind: input, shape index: {}]
  %s2 = inlined_call_operand.vmem [shape: bf16[1152,128], index: 2, kind: input, shape index: {}]
  %s3 = inlined_call_operand.vmem [shape: f32[1,128], index: 3, kind: input, shape index: {}]
  %s4 = inlined_call_operand.vmem [shape: f32[88,16], index: 4, kind: input, shape index: {}]
  %s5 = inlined_call_operand.vmem [shape: f32[1,128], index: 5, kind: input, shape index: {}]
  %s6 = inlined_call_operand.vmem [shape: f32[1,128], index: 6, kind: input, shape index: {}]
  %s7 = inlined_call_operand.vmem [shape: f32[2,88,128], index: 7, kind: output, shape index: {}]
  %s8 = sld [smem:[#allocation0]]
  $region38: #{_lambda_.3} parent=0
    _
  %s10 = ssub.s32 1, %s8
  %s11 = scalar_select 0, %s10, %s8
  // Predicated region
  $region2: #{_lambda_.3} parent=0 // pred_check
    _
  $region3: #{_lambda_.3} parent=0 // pred_check_branch
    %13 = sbr.rel (0) target = $region5
  $region4: #{_lambda_.3} parent=0 // pred_region
    _
  $region5: #{_lambda_.3} parent=0 // pred_fallthru
    _
  // Predicated region
  $region6: #{_lambda_.3} parent=0 // pred_check
    _
  $region7: #{_lambda_.3} parent=0 // pred_check_branch
    %15 = sbr.rel (0) target = $region9
  $region8: #{_lambda_.3} parent=0 // pred_region
    _
  $region9: #{_lambda_.3} parent=0 // pred_fallthru
    _
  // Predicated region
  $region10: #{_lambda_.3} parent=0 // pred_check
    _
  $region11: #{_lambda_.3} parent=0 // pred_check_branch
    %17 = sbr.rel (0) target = $region13
  $region12: #{_lambda_.3} parent=0 // pred_region
    _
  $region13: #{_lambda_.3} parent=0 // pred_fallthru
    _
  // Predicated region
  $region14: #{_lambda_.3} parent=0 // pred_check
    _
  $region15: #{_lambda_.3} parent=0 // pred_check_branch
    %19 = sbr.rel (0) target = $region17
  $region16: #{_lambda_.3} parent=0 // pred_region
    _
  $region17: #{_lambda_.3} parent=0 // pred_fallthru
    _
  // Predicated region
  $region18: #{_lambda_.3} parent=0 // pred_check
    _
  $region19: #{_lambda_.3} parent=0 // pred_check_branch
    %21 = sbr.rel (0) target = $region21
  $region20: #{_lambda_.3} parent=0 // pred_region
    _
  $region21: #{_lambda_.3} parent=0 // pred_fallthru
    _
  // Predicated region
  $region22: #{_lambda_.3} parent=0 // pred_check
    _
  $region23: #{_lambda_.3} parent=0 // pred_check_branch
    %23 = sbr.rel (0) target = $region25
  $region24: #{_lambda_.3} parent=0 // pred_region
    _
  $region25: #{_lambda_.3} parent=0 // pred_fallthru
    _
  // Predicated region
  $region26: #{_lambda_.3} parent=0 // pred_check
    _
  $region27: #{_lambda_.3} parent=0 // pred_check_branch
    %25 = sbr.rel (0) target = $region29
  $region28: #{_lambda_.3} parent=0 // pred_region
    _
  $region29: #{_lambda_.3} parent=0 // pred_fallthru
    _
  %v27 = vld [vmem:[%s1] sm:$0xff]
  %v28 = vld [vmem:[%s1 + $0x8] sm:$0xff]
  %v29 = vld [vmem:[%s1 + $0x10] sm:$0xff]
  %v30 = vld [vmem:[%s1 + $0x18] sm:$0xff]
  %v31 = vld [vmem:[%s1 + $0x20] sm:$0xf]
  %v32 = vld [vmem:[%s1 + $0x24] sm:$0xff]
  %v33 = vld [vmem:[%s1 + $0x2c] sm:$0xff]
  %v34 = vld [vmem:[%s1 + $0x34] sm:$0xff]
  %v35 = vld [vmem:[%s1 + $0x3c] sm:$0xff]
  %v36 = vld [vmem:[%s1 + $0x44] sm:$0xf]
  %v37 = vld [vmem:[%s1 + $0x48] sm:$0xff]
  %v38 = vld [vmem:[%s1 + $0x50] sm:$0xff]
  %v39 = vld [vmem:[%s1 + $0x58] sm:$0xff]
  %v40 = vld [vmem:[%s1 + $0x60] sm:$0xff]
  %v41 = vld [vmem:[%s1 + $0x68] sm:$0xf]
  %v42 = vld [vmem:[%s1 + $0x6c] sm:$0xff]
  %v43 = vld [vmem:[%s1 + $0x74] sm:$0xff]
  %v44 = vld [vmem:[%s1 + $0x7c] sm:$0xff]
  %v45 = vld [vmem:[%s1 + $0x84] sm:$0xff]
  %v46 = vld [vmem:[%s1 + $0x8c] sm:$0xf]
  %v47 = vld [vmem:[%s2] sm:$0xf]
  %v48 = vld [vmem:[%s2 + $0x4] sm:$0xf]
  %v49 = vld [vmem:[%s2 + $0x8] sm:$0xf]
  %v50 = vld [vmem:[%s2 + $0xc] sm:$0xf]
  %v51 = vld [vmem:[%s2 + $0x10] sm:$0xf]
  %v52 = vld [vmem:[%s2 + $0x14] sm:$0xf]
  %v53 = vld [vmem:[%s2 + $0x18] sm:$0xf]
  %v54 = vld [vmem:[%s2 + $0x1c] sm:$0xf]
  %v55 = vld [vmem:[%s2 + $0x20] sm:$0xf]
  %v56 = vld [vmem:[%s2 + $0x24] sm:$0xf]
  %v57 = vld [vmem:[%s2 + $0x28] sm:$0xf]
  %v58 = vld [vmem:[%s2 + $0x2c] sm:$0xf]
  %v59 = vld [vmem:[%s2 + $0x30] sm:$0xf]
  %v60 = vld [vmem:[%s2 + $0x34] sm:$0xf]
  %v61 = vld [vmem:[%s2 + $0x38] sm:$0xf]
  %v62 = vld [vmem:[%s2 + $0x3c] sm:$0xf]
  %v63 = vld [vmem:[%s2 + $0x40] sm:$0xf]
  %v64 = vld [vmem:[%s2 + $0x44] sm:$0xf]
  %v65 = vld [vmem:[%s2 + $0x48] sm:$0xf]
  %v66 = vld [vmem:[%s2 + $0x4c] sm:$0xf]
  %v67 = vld [vmem:[%s2 + $0x50] sm:$0xf]
  %v68 = vld [vmem:[%s2 + $0x54] sm:$0xf]
  %v69 = vld [vmem:[%s2 + $0x58] sm:$0xf]
  %v70 = vld [vmem:[%s2 + $0x5c] sm:$0xf]
  %v71 = vld [vmem:[%s2 + $0x60] sm:$0xf]
  %v72 = vld [vmem:[%s2 + $0x64] sm:$0xf]
  %v73 = vld [vmem:[%s2 + $0x68] sm:$0xf]
  %v74 = vld [vmem:[%s2 + $0x6c] sm:$0xf]
  %v75 = vld [vmem:[%s2 + $0x70] sm:$0xf]
  %v76 = vld [vmem:[%s2 + $0x74] sm:$0xf]
  %v77 = vld [vmem:[%s2 + $0x78] sm:$0xf]
  %v78 = vld [vmem:[%s2 + $0x7c] sm:$0xf]
  %v79 = vld [vmem:[%s2 + $0x80] sm:$0xf]
  %v80 = vld [vmem:[%s2 + $0x84] sm:$0xf]
  %v81 = vld [vmem:[%s2 + $0x88] sm:$0xf]
  %v82 = vld [vmem:[%s2 + $0x8c] sm:$0xf]
  %v83 = vld [vmem:[%s2 + $0x90] sm:$0xf]
  %v84 = vld [vmem:[%s2 + $0x94] sm:$0xf]
  %v85 = vld [vmem:[%s2 + $0x98] sm:$0xf]
  %v86 = vld [vmem:[%s2 + $0x9c] sm:$0xf]
  %v87 = vld [vmem:[%s2 + $0xa0] sm:$0xf]
  %v88 = vld [vmem:[%s2 + $0xa4] sm:$0xf]
  %v89 = vld [vmem:[%s2 + $0xa8] sm:$0xf]
  %v90 = vld [vmem:[%s2 + $0xac] sm:$0xf]
  %v91 = vld [vmem:[%s2 + $0xb0] sm:$0xf]
  %v92 = vld [vmem:[%s2 + $0xb4] sm:$0xf]
  %v93 = vld [vmem:[%s2 + $0xb8] sm:$0xf]
  %v94 = vld [vmem:[%s2 + $0xbc] sm:$0xf]
  %v95 = vld [vmem:[%s2 + $0xc0] sm:$0xf]
  %v96 = vld [vmem:[%s2 + $0xc4] sm:$0xf]
  %v97 = vld [vmem:[%s2 + $0xc8] sm:$0xf]
  %v98 = vld [vmem:[%s2 + $0xcc] sm:$0xf]
  %v99 = vld [vmem:[%s2 + $0xd0] sm:$0xf]
  %v100 = vld [vmem:[%s2 + $0xd4] sm:$0xf]
  %v101 = vld [vmem:[%s2 + $0xd8] sm:$0xf]
  %v102 = vld [vmem:[%s2 + $0xdc] sm:$0xf]
  %v103 = vld [vmem:[%s2 + $0xe0] sm:$0xf]
  %v104 = vld [vmem:[%s2 + $0xe4] sm:$0xf]
  %v105 = vld [vmem:[%s2 + $0xe8] sm:$0xf]
  %v106 = vld [vmem:[%s2 + $0xec] sm:$0xf]
  %v107 = vld [vmem:[%s2 + $0xf0] sm:$0xf]
  %v108 = vld [vmem:[%s2 + $0xf4] sm:$0xf]
  %v109 = vld [vmem:[%s2 + $0xf8] sm:$0xf]
  %v110 = vld [vmem:[%s2 + $0xfc] sm:$0xf]
  %v111 = vld [vmem:[%s2 + $0x100] sm:$0xf]
  %v112 = vld [vmem:[%s2 + $0x104] sm:$0xf]
  %v113 = vld [vmem:[%s2 + $0x108] sm:$0xf]
  %v114 = vld [vmem:[%s2 + $0x10c] sm:$0xf]
  %v115 = vld [vmem:[%s2 + $0x110] sm:$0xf]
  %v116 = vld [vmem:[%s2 + $0x114] sm:$0xf]
  %v117 = vld [vmem:[%s2 + $0x118] sm:$0xf]
  %v118 = vld [vmem:[%s2 + $0x11c] sm:$0xf]
  %v119 = vld [vmem:[%s2 + $0x120] sm:$0xf]
  %v120 = vld [vmem:[%s2 + $0x124] sm:$0xf]
  %v121 = vld [vmem:[%s2 + $0x128] sm:$0xf]
  %v122 = vld [vmem:[%s2 + $0x12c] sm:$0xf]
  %v123 = vld [vmem:[%s2 + $0x130] sm:$0xf]
  %v124 = vld [vmem:[%s2 + $0x134] sm:$0xf]
  %v125 = vld [vmem:[%s2 + $0x138] sm:$0xf]
  %v126 = vld [vmem:[%s2 + $0x13c] sm:$0xf]
  %v127 = vld [vmem:[%s2 + $0x140] sm:$0xf]
  %v128 = vld [vmem:[%s2 + $0x144] sm:$0xf]
  %v129 = vld [vmem:[%s2 + $0x148] sm:$0xf]
  %v130 = vld [vmem:[%s2 + $0x14c] sm:$0xf]
  %v131 = vld [vmem:[%s2 + $0x150] sm:$0xf]
  %v132 = vld [vmem:[%s2 + $0x154] sm:$0xf]
  %v133 = vld [vmem:[%s2 + $0x158] sm:$0xf]
  %v134 = vld [vmem:[%s2 + $0x15c] sm:$0xf]
  %v135 = vld [vmem:[%s2 + $0x160] sm:$0xf]
  %v136 = vld [vmem:[%s2 + $0x164] sm:$0xf]
  %v137 = vld [vmem:[%s2 + $0x168] sm:$0xf]
  %v138 = vld [vmem:[%s2 + $0x16c] sm:$0xf]
  %v139 = vld [vmem:[%s2 + $0x170] sm:$0xf]
  %v140 = vld [vmem:[%s2 + $0x174] sm:$0xf]
  %v141 = vld [vmem:[%s2 + $0x178] sm:$0xf]
  %v142 = vld [vmem:[%s2 + $0x17c] sm:$0xf]
  %v143 = vld [vmem:[%s2 + $0x180] sm:$0xf]
  %v144 = vld [vmem:[%s2 + $0x184] sm:$0xf]
  %v145 = vld [vmem:[%s2 + $0x188] sm:$0xf]
  %v146 = vld [vmem:[%s2 + $0x18c] sm:$0xf]
  %v147 = vld [vmem:[%s2 + $0x190] sm:$0xf]
  %v148 = vld [vmem:[%s2 + $0x194] sm:$0xf]
  %v149 = vld [vmem:[%s2 + $0x198] sm:$0xf]
  %v150 = vld [vmem:[%s2 + $0x19c] sm:$0xf]
  %v151 = vld [vmem:[%s2 + $0x1a0] sm:$0xf]
  %v152 = vld [vmem:[%s2 + $0x1a4] sm:$0xf]
  %v153 = vld [vmem:[%s2 + $0x1a8] sm:$0xf]
  %v154 = vld [vmem:[%s2 + $0x1ac] sm:$0xf]
  %v155 = vld [vmem:[%s2 + $0x1b0] sm:$0xf]
  %v156 = vld [vmem:[%s2 + $0x1b4] sm:$0xf]
  %v157 = vld [vmem:[%s2 + $0x1b8] sm:$0xf]
  %v158 = vld [vmem:[%s2 + $0x1bc] sm:$0xf]
  %v159 = vld [vmem:[%s2 + $0x1c0] sm:$0xf]
  %v160 = vld [vmem:[%s2 + $0x1c4] sm:$0xf]
  %v161 = vld [vmem:[%s2 + $0x1c8] sm:$0xf]
  %v162 = vld [vmem:[%s2 + $0x1cc] sm:$0xf]
  %v163 = vld [vmem:[%s2 + $0x1d0] sm:$0xf]
  %v164 = vld [vmem:[%s2 + $0x1d4] sm:$0xf]
  %v165 = vld [vmem:[%s2 + $0x1d8] sm:$0xf]
  %v166 = vld [vmem:[%s2 + $0x1dc] sm:$0xf]
  %v167 = vld [vmem:[%s2 + $0x1e0] sm:$0xf]
  %v168 = vld [vmem:[%s2 + $0x1e4] sm:$0xf]
  %v169 = vld [vmem:[%s2 + $0x1e8] sm:$0xf]
  %v170 = vld [vmem:[%s2 + $0x1ec] sm:$0xf]
  %v171 = vld [vmem:[%s2 + $0x1f0] sm:$0xf]
  %v172 = vld [vmem:[%s2 + $0x1f4] sm:$0xf]
  %v173 = vld [vmem:[%s2 + $0x1f8] sm:$0xf]
  %v174 = vld [vmem:[%s2 + $0x1fc] sm:$0xf]
  %v175 = vld [vmem:[%s2 + $0x200] sm:$0xf]
  %v176 = vld [vmem:[%s2 + $0x204] sm:$0xf]
  %v177 = vld [vmem:[%s2 + $0x208] sm:$0xf]
  %v178 = vld [vmem:[%s2 + $0x20c] sm:$0xf]
  %v179 = vld [vmem:[%s2 + $0x210] sm:$0xf]
  %v180 = vld [vmem:[%s2 + $0x214] sm:$0xf]
  %v181 = vld [vmem:[%s2 + $0x218] sm:$0xf]
  %v182 = vld [vmem:[%s2 + $0x21c] sm:$0xf]
  %v183 = vld [vmem:[%s2 + $0x220] sm:$0xf]
  %v184 = vld [vmem:[%s2 + $0x224] sm:$0xf]
  %v185 = vld [vmem:[%s2 + $0x228] sm:$0xf]
  %v186 = vld [vmem:[%s2 + $0x22c] sm:$0xf]
  %v187 = vld [vmem:[%s2 + $0x230] sm:$0xf]
  %v188 = vld [vmem:[%s2 + $0x234] sm:$0xf]
  %v189 = vld [vmem:[%s2 + $0x238] sm:$0xf]
  %v190 = vld [vmem:[%s2 + $0x23c] sm:$0xf]
  %v191 = vld [vmem:[%s3] sm:$0x1]
  %v193 = vlaneseq
  %v194 = vshrl.u32 %v193, 7
  %v195 = vsub.s32 0, %v194
  %v196 = vrot.slane %v191, %v195
  %v218 = vunpack.c.l.b16 %v27
  %v219 = vunpack.c.h.b16 %v27
  %v220 = vunpack.c.l.b16 %v28
  %v221 = vunpack.c.h.b16 %v28
  %v222 = vunpack.c.l.b16 %v29
  %v223 = vunpack.c.h.b16 %v29
  %v224 = vunpack.c.l.b16 %v30
  %v225 = vunpack.c.h.b16 %v30
  %v226 = vunpack.c.l.b16 %v31
  %v227 = vunpack.c.l.b16 %v32
  %v228 = vunpack.c.h.b16 %v32
  %v229 = vunpack.c.l.b16 %v33
  %v230 = vunpack.c.h.b16 %v33
  %v231 = vunpack.c.l.b16 %v34
  %v232 = vunpack.c.h.b16 %v34
  %v233 = vunpack.c.l.b16 %v35
  %v234 = vunpack.c.h.b16 %v35
  %v235 = vunpack.c.l.b16 %v36
  %v236 = vunpack.c.l.b16 %v37
  %v237 = vunpack.c.h.b16 %v37
  %v238 = vunpack.c.l.b16 %v38
  %v239 = vunpack.c.h.b16 %v38
  %v240 = vunpack.c.l.b16 %v39
  %v241 = vunpack.c.h.b16 %v39
  %v242 = vunpack.c.l.b16 %v40
  %v243 = vunpack.c.h.b16 %v40
  %v244 = vunpack.c.l.b16 %v41
  %v245 = vunpack.c.l.b16 %v42
  %v246 = vunpack.c.h.b16 %v42
  %v247 = vunpack.c.l.b16 %v43
  %v248 = vunpack.c.h.b16 %v43
  %v249 = vunpack.c.l.b16 %v44
  %v250 = vunpack.c.h.b16 %v44
  %v251 = vunpack.c.l.b16 %v45
  %v252 = vunpack.c.h.b16 %v45
  %v253 = vunpack.c.l.b16 %v46
  %v254 = vpack.c.b16 %v227, %v218
  %v255 = vpack.c.b16 %v228, %v219
  %v256 = vpack.c.b16 %v229, %v220
  %v257 = vpack.c.b16 %v230, %v221
  %v258 = vpack.c.b16 %v231, %v222
  %v259 = vpack.c.b16 %v232, %v223
  %v260 = vpack.c.b16 %v233, %v224
  %v261 = vpack.c.b16 %v234, %v225
  %v262 = vpack.c.b16 %v235, %v226
  %v263 = vpack.c.b16 %v245, %v236
  %v264 = vpack.c.b16 %v246, %v237
  %v265 = vpack.c.b16 %v247, %v238
  %v266 = vpack.c.b16 %v248, %v239
  %v267 = vpack.c.b16 %v249, %v240
  %v268 = vpack.c.b16 %v250, %v241
  %v269 = vpack.c.b16 %v251, %v242
  %v270 = vpack.c.b16 %v252, %v243
  %v271 = vpack.c.b16 %v253, %v244
  %v434 = vunpack.c.l.b16 %v47
  %v435 = vunpack.c.l.b16 %v48
  %v436 = vunpack.c.l.b16 %v49
  %v437 = vunpack.c.l.b16 %v50
  %v438 = vunpack.c.l.b16 %v51
  %v439 = vunpack.c.l.b16 %v52
  %v440 = vunpack.c.l.b16 %v53
  %v441 = vunpack.c.l.b16 %v54
  %v442 = vunpack.c.l.b16 %v55
  %v443 = vunpack.c.l.b16 %v56
  %v444 = vunpack.c.l.b16 %v57
  %v445 = vunpack.c.l.b16 %v58
  %v446 = vunpack.c.l.b16 %v59
  %v447 = vunpack.c.l.b16 %v60
  %v448 = vunpack.c.l.b16 %v61
  %v449 = vunpack.c.l.b16 %v62
  %v450 = vunpack.c.l.b16 %v63
  %v451 = vunpack.c.l.b16 %v64
  %v452 = vunpack.c.l.b16 %v65
  %v453 = vunpack.c.l.b16 %v66
  %v454 = vunpack.c.l.b16 %v67
  %v455 = vunpack.c.l.b16 %v68
  %v456 = vunpack.c.l.b16 %v69
  %v457 = vunpack.c.l.b16 %v70
  %v458 = vunpack.c.l.b16 %v71
  %v459 = vunpack.c.l.b16 %v72
  %v460 = vunpack.c.l.b16 %v73
  %v461 = vunpack.c.l.b16 %v74
  %v462 = vunpack.c.l.b16 %v75
  %v463 = vunpack.c.l.b16 %v76
  %v464 = vunpack.c.l.b16 %v77
  %v465 = vunpack.c.l.b16 %v78
  %v466 = vunpack.c.l.b16 %v79
  %v467 = vunpack.c.l.b16 %v80
  %v468 = vunpack.c.l.b16 %v81
  %v469 = vunpack.c.l.b16 %v82
  %v470 = vunpack.c.l.b16 %v83
  %v471 = vunpack.c.l.b16 %v84
  %v472 = vunpack.c.l.b16 %v85
  %v473 = vunpack.c.l.b16 %v86
  %v474 = vunpack.c.l.b16 %v87
  %v475 = vunpack.c.l.b16 %v88
  %v476 = vunpack.c.l.b16 %v89
  %v477 = vunpack.c.l.b16 %v90
  %v478 = vunpack.c.l.b16 %v91
  %v479 = vunpack.c.l.b16 %v92
  %v480 = vunpack.c.l.b16 %v93
  %v481 = vunpack.c.l.b16 %v94
  %v482 = vunpack.c.l.b16 %v95
  %v483 = vunpack.c.l.b16 %v96
  %v484 = vunpack.c.l.b16 %v97
  %v485 = vunpack.c.l.b16 %v98
  %v486 = vunpack.c.l.b16 %v99
  %v487 = vunpack.c.l.b16 %v100
  %v488 = vunpack.c.l.b16 %v101
  %v489 = vunpack.c.l.b16 %v102
  %v490 = vunpack.c.l.b16 %v103
  %v491 = vunpack.c.l.b16 %v104
  %v492 = vunpack.c.l.b16 %v105
  %v493 = vunpack.c.l.b16 %v106
  %v494 = vunpack.c.l.b16 %v107
  %v495 = vunpack.c.l.b16 %v108
  %v496 = vunpack.c.l.b16 %v109
  %v497 = vunpack.c.l.b16 %v110
  %v498 = vunpack.c.l.b16 %v111
  %v499 = vunpack.c.l.b16 %v112
  %v500 = vunpack.c.l.b16 %v113
  %v501 = vunpack.c.l.b16 %v114
  %v502 = vunpack.c.l.b16 %v115
  %v503 = vunpack.c.l.b16 %v116
  %v504 = vunpack.c.l.b16 %v117
  %v505 = vunpack.c.l.b16 %v118
  %v506 = vunpack.c.l.b16 %v119
  %v507 = vunpack.c.l.b16 %v120
  %v508 = vunpack.c.l.b16 %v121
  %v509 = vunpack.c.l.b16 %v122
  %v510 = vunpack.c.l.b16 %v123
  %v511 = vunpack.c.l.b16 %v124
  %v512 = vunpack.c.l.b16 %v125
  %v513 = vunpack.c.l.b16 %v126
  %v514 = vunpack.c.l.b16 %v127
  %v515 = vunpack.c.l.b16 %v128
  %v516 = vunpack.c.l.b16 %v129
  %v517 = vunpack.c.l.b16 %v130
  %v518 = vunpack.c.l.b16 %v131
  %v519 = vunpack.c.l.b16 %v132
  %v520 = vunpack.c.l.b16 %v133
  %v521 = vunpack.c.l.b16 %v134
  %v522 = vunpack.c.l.b16 %v135
  %v523 = vunpack.c.l.b16 %v136
  %v524 = vunpack.c.l.b16 %v137
  %v525 = vunpack.c.l.b16 %v138
  %v526 = vunpack.c.l.b16 %v139
  %v527 = vunpack.c.l.b16 %v140
  %v528 = vunpack.c.l.b16 %v141
  %v529 = vunpack.c.l.b16 %v142
  %v530 = vunpack.c.l.b16 %v143
  %v531 = vunpack.c.l.b16 %v144
  %v532 = vunpack.c.l.b16 %v145
  %v533 = vunpack.c.l.b16 %v146
  %v534 = vunpack.c.l.b16 %v147
  %v535 = vunpack.c.l.b16 %v148
  %v536 = vunpack.c.l.b16 %v149
  %v537 = vunpack.c.l.b16 %v150
  %v538 = vunpack.c.l.b16 %v151
  %v539 = vunpack.c.l.b16 %v152
  %v540 = vunpack.c.l.b16 %v153
  %v541 = vunpack.c.l.b16 %v154
  %v542 = vunpack.c.l.b16 %v155
  %v543 = vunpack.c.l.b16 %v156
  %v544 = vunpack.c.l.b16 %v157
  %v545 = vunpack.c.l.b16 %v158
  %v546 = vunpack.c.l.b16 %v159
  %v547 = vunpack.c.l.b16 %v160
  %v548 = vunpack.c.l.b16 %v161
  %v549 = vunpack.c.l.b16 %v162
  %v550 = vunpack.c.l.b16 %v163
  %v551 = vunpack.c.l.b16 %v164
  %v552 = vunpack.c.l.b16 %v165
  %v553 = vunpack.c.l.b16 %v166
  %v554 = vunpack.c.l.b16 %v167
  %v555 = vunpack.c.l.b16 %v168
  %v556 = vunpack.c.l.b16 %v169
  %v557 = vunpack.c.l.b16 %v170
  %v558 = vunpack.c.l.b16 %v171
  %v559 = vunpack.c.l.b16 %v172
  %v560 = vunpack.c.l.b16 %v173
  %v561 = vunpack.c.l.b16 %v174
  %v562 = vunpack.c.l.b16 %v175
  %v563 = vunpack.c.l.b16 %v176
  %v564 = vunpack.c.l.b16 %v177
  %v565 = vunpack.c.l.b16 %v178
  %v566 = vunpack.c.l.b16 %v179
  %v567 = vunpack.c.l.b16 %v180
  %v568 = vunpack.c.l.b16 %v181
  %v569 = vunpack.c.l.b16 %v182
  %v570 = vunpack.c.l.b16 %v183
  %v571 = vunpack.c.l.b16 %v184
  %v572 = vunpack.c.l.b16 %v185
  %v573 = vunpack.c.l.b16 %v186
  %v574 = vunpack.c.l.b16 %v187
  %v575 = vunpack.c.l.b16 %v188
  %v576 = vunpack.c.l.b16 %v189
  %v577 = vunpack.c.l.b16 %v190
  %v578 = vpack.c.b16 %v435, %v434
  %v579 = vpack.c.b16 %v437, %v436
  %v580 = vpack.c.b16 %v439, %v438
  %v581 = vpack.c.b16 %v441, %v440
  %v582 = vpack.c.b16 %v443, %v442
  %v583 = vpack.c.b16 %v445, %v444
  %v584 = vpack.c.b16 %v447, %v446
  %v585 = vpack.c.b16 %v449, %v448
  %v586 = vpack.c.b16 %v451, %v450
  %v587 = vpack.c.b16 %v453, %v452
  %v588 = vpack.c.b16 %v455, %v454
  %v589 = vpack.c.b16 %v457, %v456
  %v590 = vpack.c.b16 %v459, %v458
  %v591 = vpack.c.b16 %v461, %v460
  %v592 = vpack.c.b16 %v463, %v462
  %v593 = vpack.c.b16 %v465, %v464
  %v594 = vpack.c.b16 %v467, %v466
  %v595 = vpack.c.b16 %v469, %v468
  %v596 = vpack.c.b16 %v471, %v470
  %v597 = vpack.c.b16 %v473, %v472
  %v598 = vpack.c.b16 %v475, %v474
  %v599 = vpack.c.b16 %v477, %v476
  %v600 = vpack.c.b16 %v479, %v478
  %v601 = vpack.c.b16 %v481, %v480
  %v602 = vpack.c.b16 %v483, %v482
  %v603 = vpack.c.b16 %v485, %v484
  %v604 = vpack.c.b16 %v487, %v486
  %v605 = vpack.c.b16 %v489, %v488
  %v606 = vpack.c.b16 %v491, %v490
  %v607 = vpack.c.b16 %v493, %v492
  %v608 = vpack.c.b16 %v495, %v494
  %v609 = vpack.c.b16 %v497, %v496
  %v610 = vpack.c.b16 %v499, %v498
  %v611 = vpack.c.b16 %v501, %v500
  %v612 = vpack.c.b16 %v503, %v502
  %v613 = vpack.c.b16 %v505, %v504
  %v614 = vpack.c.b16 %v507, %v506
  %v615 = vpack.c.b16 %v509, %v508
  %v616 = vpack.c.b16 %v511, %v510
  %v617 = vpack.c.b16 %v513, %v512
  %v618 = vpack.c.b16 %v515, %v514
  %v619 = vpack.c.b16 %v517, %v516
  %v620 = vpack.c.b16 %v519, %v518
  %v621 = vpack.c.b16 %v521, %v520
  %v622 = vpack.c.b16 %v523, %v522
  %v623 = vpack.c.b16 %v525, %v524
  %v624 = vpack.c.b16 %v527, %v526
  %v625 = vpack.c.b16 %v529, %v528
  %v626 = vpack.c.b16 %v531, %v530
  %v627 = vpack.c.b16 %v533, %v532
  %v628 = vpack.c.b16 %v535, %v534
  %v629 = vpack.c.b16 %v537, %v536
  %v630 = vpack.c.b16 %v539, %v538
  %v631 = vpack.c.b16 %v541, %v540
  %v632 = vpack.c.b16 %v543, %v542
  %v633 = vpack.c.b16 %v545, %v544
  %v634 = vpack.c.b16 %v547, %v546
  %v635 = vpack.c.b16 %v549, %v548
  %v636 = vpack.c.b16 %v551, %v550
  %v637 = vpack.c.b16 %v553, %v552
  %v638 = vpack.c.b16 %v555, %v554
  %v639 = vpack.c.b16 %v557, %v556
  %v640 = vpack.c.b16 %v559, %v558
  %v641 = vpack.c.b16 %v561, %v560
  %v642 = vpack.c.b16 %v563, %v562
  %v643 = vpack.c.b16 %v565, %v564
  %v644 = vpack.c.b16 %v567, %v566
  %v645 = vpack.c.b16 %v569, %v568
  %v646 = vpack.c.b16 %v571, %v570
  %v647 = vpack.c.b16 %v573, %v572
  %v648 = vpack.c.b16 %v575, %v574
  %v649 = vpack.c.b16 %v577, %v576
  %722 = vmatprep.subr.bf16.mxu0 0
  %723 = vmatpush1.bf16.msra.mxu0 %v578
  %724 = vmatprep.subr.bf16.mxu0 0
  %725 = vmatpush1.bf16.msra.mxu0 %v579
  %726 = vmatprep.subr.bf16.mxu0 0
  %727 = vmatpush1.bf16.msra.mxu0 %v580
  %728 = vmatprep.subr.bf16.mxu0 0
  %729 = vmatpush1.bf16.msra.mxu0 %v581
  %730 = vmatprep.subr.bf16.mxu0 0
  %731 = vmatpush1.bf16.msra.mxu0 %v582
  %732 = vmatprep.subr.bf16.mxu0 0
  %733 = vmatpush1.bf16.msra.mxu0 %v583
  %734 = vmatprep.subr.bf16.mxu0 0
  %735 = vmatpush1.bf16.msra.mxu0 %v584
  %736 = vmatprep.subr.bf16.mxu0 0
  %737 = vmatpush1.bf16.msra.mxu0 %v585
  %738 = vmatprep.subr.bf16.mxu0 0
  %739 = vmatpush1.bf16.msra.mxu0 %v586
  %740 = vmatprep.subr.bf16.mxu0 0
  %741 = vmatpush1.bf16.msra.mxu0 %v587
  %742 = vmatprep.subr.bf16.mxu0 0
  %743 = vmatpush1.bf16.msra.mxu0 %v588
  %744 = vmatprep.subr.bf16.mxu0 0
  %745 = vmatpush1.bf16.msra.mxu0 %v589
  %746 = vmatprep.subr.bf16.mxu0 0
  %747 = vmatpush1.bf16.msra.mxu0 %v590
  %748 = vmatprep.subr.bf16.mxu0 0
  %749 = vmatpush1.bf16.msra.mxu0 %v591
  %750 = vmatprep.subr.bf16.mxu0 0
  %751 = vmatpush1.bf16.msra.mxu0 %v592
  %752 = vmatprep.subr.bf16.mxu0 0
  %753 = vmatpush1.bf16.msra.mxu0 %v593
  %754 = vmatprep.mubr.bf16.mxu0 %v255
  %755 = vmatmul.mubr.bf16.gmra.mrb[0].mxu0 %v254
  %v756 = vpop.f32.mrb[0].mxu0
  %v757 = vadd.f32 %v196, %v756
  %v758 = vpop.f32.mrb[0].mxu0
  %v759 = vpop.f32.mrb[0].mxu0
  %v760 = vadd.f32 %v196, %v759
  %v761 = vpop.f32.mrb[0].mxu0
  %762 = vmatprep.mubr.bf16.mxu0 %v264
  %763 = vmatmul.mubr.bf16.gmra.mrb[0].mxu0 %v263
  %v764 = vpop.f32.mrb[0].mxu0
  %v765 = vadd.f32 %v196, %v764
  %v766 = vpop.f32.mrb[0].mxu0
  %v767 = vpop.f32.mrb[0].mxu0
  %v768 = vadd.f32 %v196, %v767
  %v769 = vpop.f32.mrb[0].mxu0
  %770 = vdwg.mxu0
  %771 = vmatprep.subr.bf16.mxu0 0
  %772 = vmatpush1.bf16.msra.mxu0 %v594
  %773 = vmatprep.subr.bf16.mxu0 0
  %774 = vmatpush1.bf16.msra.mxu0 %v595
  %775 = vmatprep.subr.bf16.mxu0 0
  %776 = vmatpush1.bf16.msra.mxu0 %v596
  %777 = vmatprep.subr.bf16.mxu0 0
  %778 = vmatpush1.bf16.msra.mxu0 %v597
  %779 = vmatprep.subr.bf16.mxu0 0
  %780 = vmatpush1.bf16.msra.mxu0 %v598
  %781 = vmatprep.subr.bf16.mxu0 0
  %782 = vmatpush1.bf16.msra.mxu0 %v599
  %783 = vmatprep.subr.bf16.mxu0 0
  %784 = vmatpush1.bf16.msra.mxu0 %v600
  %785 = vmatprep.subr.bf16.mxu0 0
  %786 = vmatpush1.bf16.msra.mxu0 %v601
  %787 = vmatprep.subr.bf16.mxu0 0
  %788 = vmatpush1.bf16.msra.mxu0 %v602
  %789 = vmatprep.subr.bf16.mxu0 0
  %790 = vmatpush1.bf16.msra.mxu0 %v603
  %791 = vmatprep.subr.bf16.mxu0 0
  %792 = vmatpush1.bf16.msra.mxu0 %v604
  %793 = vmatprep.subr.bf16.mxu0 0
  %794 = vmatpush1.bf16.msra.mxu0 %v605
  %795 = vmatprep.subr.bf16.mxu0 0
  %796 = vmatpush1.bf16.msra.mxu0 %v606
  %797 = vmatprep.subr.bf16.mxu0 0
  %798 = vmatpush1.bf16.msra.mxu0 %v607
  %799 = vmatprep.subr.bf16.mxu0 0
  %800 = vmatpush1.bf16.msra.mxu0 %v608
  %801 = vmatprep.subr.bf16.mxu0 0
  %802 = vmatpush1.bf16.msra.mxu0 %v609
  %803 = vmatprep.mubr.bf16.mxu0 %v257
  %804 = vmatmul.mubr.bf16.gmra.mrb[0].mxu0 %v256
  %v805 = vpop.f32.mrb[0].mxu0
  %v806 = vadd.f32 %v757, %v805
  %v807 = vpop.f32.mrb[0].mxu0
  %v808 = vpop.f32.mrb[0].mxu0
  %v809 = vadd.f32 %v760, %v808
  %v810 = vpop.f32.mrb[0].mxu0
  %811 = vmatprep.mubr.bf16.mxu0 %v266
  %812 = vmatmul.mubr.bf16.gmra.mrb[0].mxu0 %v265
  %v813 = vpop.f32.mrb[0].mxu0
  %v814 = vadd.f32 %v765, %v813
  %v815 = vpop.f32.mrb[0].mxu0
  %v816 = vpop.f32.mrb[0].mxu0
  %v817 = vadd.f32 %v768, %v816
  %v818 = vpop.f32.mrb[0].mxu0
  %819 = vdwg.mxu0
  %820 = vmatprep.subr.bf16.mxu0 0
  %821 = vmatpush1.bf16.msra.mxu0 %v610
  %822 = vmatprep.subr.bf16.mxu0 0
  %823 = vmatpush1.bf16.msra.mxu0 %v611
  %824 = vmatprep.subr.bf16.mxu0 0
  %825 = vmatpush1.bf16.msra.mxu0 %v612
  %826 = vmatprep.subr.bf16.mxu0 0
  %827 = vmatpush1.bf16.msra.mxu0 %v613
  %828 = vmatprep.subr.bf16.mxu0 0
  %829 = vmatpush1.bf16.msra.mxu0 %v614
  %830 = vmatprep.subr.bf16.mxu0 0
  %831 = vmatpush1.bf16.msra.mxu0 %v615
  %832 = vmatprep.subr.bf16.mxu0 0
  %833 = vmatpush1.bf16.msra.mxu0 %v616
  %834 = vmatprep.subr.bf16.mxu0 0
  %835 = vmatpush1.bf16.msra.mxu0 %v617
  %836 = vmatprep.subr.bf16.mxu0 0
  %837 = vmatpush1.bf16.msra.mxu0 %v618
  %838 = vmatprep.subr.bf16.mxu0 0
  %839 = vmatpush1.bf16.msra.mxu0 %v619
  %840 = vmatprep.subr.bf16.mxu0 0
  %841 = vmatpush1.bf16.msra.mxu0 %v620
  %842 = vmatprep.subr.bf16.mxu0 0
  %843 = vmatpush1.bf16.msra.mxu0 %v621
  %844 = vmatprep.subr.bf16.mxu0 0
  %845 = vmatpush1.bf16.msra.mxu0 %v622
  %846 = vmatprep.subr.bf16.mxu0 0
  %847 = vmatpush1.bf16.msra.mxu0 %v623
  %848 = vmatprep.subr.bf16.mxu0 0
  %849 = vmatpush1.bf16.msra.mxu0 %v624
  %850 = vmatprep.subr.bf16.mxu0 0
  %851 = vmatpush1.bf16.msra.mxu0 %v625
  %852 = vmatprep.mubr.bf16.mxu0 %v259
  %853 = vmatmul.mubr.bf16.gmra.mrb[0].mxu0 %v258
  %v854 = vpop.f32.mrb[0].mxu0
  %v855 = vadd.f32 %v806, %v854
  %v856 = vpop.f32.mrb[0].mxu0
  %v857 = vpop.f32.mrb[0].mxu0
  %v858 = vadd.f32 %v809, %v857
  %v859 = vpop.f32.mrb[0].mxu0
  %860 = vmatprep.mubr.bf16.mxu0 %v268
  %861 = vmatmul.mubr.bf16.gmra.mrb[0].mxu0 %v267
  %v862 = vpop.f32.mrb[0].mxu0
  %v863 = vadd.f32 %v814, %v862
  %v864 = vpop.f32.mrb[0].mxu0
  %v865 = vpop.f32.mrb[0].mxu0
  %v866 = vadd.f32 %v817, %v865
  %v867 = vpop.f32.mrb[0].mxu0
  %868 = vdwg.mxu0
  %869 = vmatprep.subr.bf16.mxu0 0
  %870 = vmatpush1.bf16.msra.mxu0 %v626
  %871 = vmatprep.subr.bf16.mxu0 0
  %872 = vmatpush1.bf16.msra.mxu0 %v627
  %873 = vmatprep.subr.bf16.mxu0 0
  %874 = vmatpush1.bf16.msra.mxu0 %v628
  %875 = vmatprep.subr.bf16.mxu0 0
  %876 = vmatpush1.bf16.msra.mxu0 %v629
  %877 = vmatprep.subr.bf16.mxu0 0
  %878 = vmatpush1.bf16.msra.mxu0 %v630
  %879 = vmatprep.subr.bf16.mxu0 0
  %880 = vmatpush1.bf16.msra.mxu0 %v631
  %881 = vmatprep.subr.bf16.mxu0 0
  %882 = vmatpush1.bf16.msra.mxu0 %v632
  %883 = vmatprep.subr.bf16.mxu0 0
  %884 = vmatpush1.bf16.msra.mxu0 %v633
  %885 = vmatprep.subr.bf16.mxu0 0
  %886 = vmatpush1.bf16.msra.mxu0 %v634
  %887 = vmatprep.subr.bf16.mxu0 0
  %888 = vmatpush1.bf16.msra.mxu0 %v635
  %889 = vmatprep.subr.bf16.mxu0 0
  %890 = vmatpush1.bf16.msra.mxu0 %v636
  %891 = vmatprep.subr.bf16.mxu0 0
  %892 = vmatpush1.bf16.msra.mxu0 %v637
  %893 = vmatprep.subr.bf16.mxu0 0
  %894 = vmatpush1.bf16.msra.mxu0 %v638
  %895 = vmatprep.subr.bf16.mxu0 0
  %896 = vmatpush1.bf16.msra.mxu0 %v639
  %897 = vmatprep.subr.bf16.mxu0 0
  %898 = vmatpush1.bf16.msra.mxu0 %v640
  %899 = vmatprep.subr.bf16.mxu0 0
  %900 = vmatpush1.bf16.msra.mxu0 %v641
  %901 = vmatprep.mubr.bf16.mxu0 %v261
  %902 = vmatmul.mubr.bf16.gmra.mrb[0].mxu0 %v260
  %v903 = vpop.f32.mrb[0].mxu0
  %v904 = vadd.f32 %v855, %v903
  %v905 = vpop.f32.mrb[0].mxu0
  %v906 = vpop.f32.mrb[0].mxu0
  %v907 = vadd.f32 %v858, %v906
  %v908 = vpop.f32.mrb[0].mxu0
  %909 = vmatprep.mubr.bf16.mxu0 %v270
  %910 = vmatmul.mubr.bf16.gmra.mrb[0].mxu0 %v269
  %v911 = vpop.f32.mrb[0].mxu0
  %v912 = vadd.f32 %v863, %v911
  %v913 = vpop.f32.mrb[0].mxu0
  %v914 = vpop.f32.mrb[0].mxu0
  %v915 = vadd.f32 %v866, %v914
  %v916 = vpop.f32.mrb[0].mxu0
  %917 = vdwg.mxu0
  %918 = vmatprep.subr.bf16.mxu0 0
  %919 = vmatpush1.bf16.msra.mxu0 %v642
  %920 = vmatprep.subr.bf16.mxu0 0
  %921 = vmatpush1.bf16.msra.mxu0 %v643
  %922 = vmatprep.subr.bf16.mxu0 0
  %923 = vmatpush1.bf16.msra.mxu0 %v644
  %924 = vmatprep.subr.bf16.mxu0 0
  %925 = vmatpush1.bf16.msra.mxu0 %v645
  %926 = vmatprep.subr.bf16.mxu0 0
  %927 = vmatpush1.bf16.msra.mxu0 %v646
  %928 = vmatprep.subr.bf16.mxu0 0
  %929 = vmatpush1.bf16.msra.mxu0 %v647
  %930 = vmatprep.subr.bf16.mxu0 0
  %931 = vmatpush1.bf16.msra.mxu0 %v648
  %932 = vmatprep.subr.bf16.mxu0 0
  %933 = vmatpush1.bf16.msra.mxu0 %v649
  %934 = vmatprep.subr.bf16.mxu0 0
  %935 = vmatpush1.bf16.msra.mxu0 0
  %936 = vmatprep.subr.bf16.mxu0 0
  %937 = vmatpush1.bf16.msra.mxu0 0
  %938 = vmatprep.subr.bf16.mxu0 0
  %939 = vmatpush1.bf16.msra.mxu0 0
  %940 = vmatprep.subr.bf16.mxu0 0
  %941 = vmatpush1.bf16.msra.mxu0 0
  %942 = vmatprep.subr.bf16.mxu0 0
  %943 = vmatpush1.bf16.msra.mxu0 0
  %944 = vmatprep.subr.bf16.mxu0 0
  %945 = vmatpush1.bf16.msra.mxu0 0
  %946 = vmatprep.subr.bf16.mxu0 0
  %947 = vmatpush1.bf16.msra.mxu0 0
  %948 = vmatprep.subr.bf16.mxu0 0
  %949 = vmatpush1.bf16.msra.mxu0 0
  %950 = vmatprep.mubr.bf16.mxu0 0
  %951 = vmatmul.mubr.bf16.gmra.mrb[0].mxu0 %v262
  %v952 = vpop.f32.mrb[0].mxu0
  %v953 = vadd.f32 %v904, %v952
  %v954 = vpop.f32.mrb[0].mxu0
  %v955 = vpop.f32.mrb[0].mxu0
  %v956 = vadd.f32 %v907, %v955
  %v957 = vpop.f32.mrb[0].mxu0
  %958 = vmatprep.mubr.bf16.mxu0 0
  %959 = vmatmul.mubr.bf16.gmra.mrb[0].mxu0 %v271
  %v960 = vpop.f32.mrb[0].mxu0
  %v961 = vadd.f32 %v912, %v960
  %v962 = vpop.f32.mrb[0].mxu0
  %v963 = vpop.f32.mrb[0].mxu0
  %v964 = vadd.f32 %v915, %v963
  %v965 = vpop.f32.mrb[0].mxu0
  %966 = vdwg.mxu0
  %v967 = vld [vmem:[%s4] sm:$0xff]
  %v968 = vld [vmem:[%s4 + $0x8] sm:$0xff]
  %v969 = vld [vmem:[%s4 + $0x10] sm:$0xff]
  %v970 = vld [vmem:[%s4 + $0x18] sm:$0xff]
  %v971 = vld [vmem:[%s4 + $0x20] sm:$0xff]
  %v972 = vld [vmem:[%s4 + $0x28] sm:$0xff]
  %v973 = vld [vmem:[%s4 + $0x30] sm:$0xff]
  %v974 = vld [vmem:[%s4 + $0x38] sm:$0xff]
  %v975 = vld [vmem:[%s4 + $0x40] sm:$0xff]
  %v976 = vld [vmem:[%s4 + $0x48] sm:$0xff]
  %v977 = vld [vmem:[%s4 + $0x50] sm:$0xff]
  %vm978 = vcmask 130048
  %v980 = vsel %vm978, %v967, 0
  %v983 = vsel %vm978, %v968, 0
  %v986 = vsel %vm978, %v969, 0
  %v989 = vsel %vm978, %v970, 0
  %v992 = vsel %vm978, %v971, 0
  %v995 = vsel %vm978, %v972, 0
  %v998 = vsel %vm978, %v973, 0
  %v1001 = vsel %vm978, %v974, 0
  %v1004 = vsel %vm978, %v975, 0
  %v1007 = vsel %vm978, %v976, 0
  %v1010 = vsel %vm978, %v977, 0
  %1012 = vmatprep.subr.mxu0 0.0
  %1013 = vmatpush1.msra.mxu0 %v953
  %1014 = vmatprep.subr.mxu0 0.0
  %1015 = vmatpush1.msra.mxu0 %v956
  %1016 = vmatprep.subr.mxu0 0.0
  %1017 = vmatpush1.msra.mxu0 0.0
  %1018 = vmatprep.subr.mxu0 0.0
  %1019 = vmatpush1.msra.mxu0 0.0
  %1020 = vmatprep.subr.mxu0 0.0
  %1021 = vmatpush1.msra.mxu0 0.0
  %1022 = vmatprep.subr.mxu0 0.0
  %1023 = vmatpush1.msra.mxu0 0.0
  %1024 = vmatprep.subr.mxu0 0.0
  %1025 = vmatpush1.msra.mxu0 0.0
  %1026 = vmatprep.subr.mxu0 0.0
  %1027 = vmatpush1.msra.mxu0 0.0
  %1028 = vmatprep.subr.mxu0 0.0
  %1029 = vmatpush1.msra.mxu0 0.0
  %1030 = vmatprep.subr.mxu0 0.0
  %1031 = vmatpush1.msra.mxu0 0.0
  %1032 = vmatprep.subr.mxu0 0.0
  %1033 = vmatpush1.msra.mxu0 0.0
  %1034 = vmatprep.subr.mxu0 0.0
  %1035 = vmatpush1.msra.mxu0 0.0
  %1036 = vmatprep.subr.mxu0 0.0
  %1037 = vmatpush1.msra.mxu0 0.0
  %1038 = vmatprep.subr.mxu0 0.0
  %1039 = vmatpush1.msra.mxu0 0.0
  %1040 = vmatprep.subr.mxu0 0.0
  %1041 = vmatpush1.msra.mxu0 0.0
  %1042 = vmatprep.subr.mxu0 0.0
  %1043 = vmatpush1.msra.mxu0 0.0
  %1044 = vmatprep.subr.mxu0 0.0
  %1045 = vmatpush1.msra.mxu0 0.0
  %1046 = vmatprep.subr.mxu0 0.0
  %1047 = vmatpush1.msra.mxu0 0.0
  %1048 = vmatprep.subr.mxu0 0.0
  %1049 = vmatpush1.msra.mxu0 0.0
  %1050 = vmatprep.subr.mxu0 0.0
  %1051 = vmatpush1.msra.mxu0 0.0
  %1052 = vmatprep.subr.mxu0 0.0
  %1053 = vmatpush1.msra.mxu0 0.0
  %1054 = vmatprep.subr.mxu0 0.0
  %1055 = vmatpush1.msra.mxu0 0.0
  %1056 = vmatprep.subr.mxu0 0.0
  %1057 = vmatpush1.msra.mxu0 0.0
  %1058 = vmatprep.subr.mxu0 0.0
  %1059 = vmatpush1.msra.mxu0 0.0
  %1060 = vmatprep.subr.mxu0 0.0
  %1061 = vmatpush1.msra.mxu0 0.0
  %1062 = vmatprep.subr.mxu0 0.0
  %1063 = vmatpush1.msra.mxu0 0.0
  %1064 = vmatprep.subr.mxu0 0.0
  %1065 = vmatpush1.msra.mxu0 0.0
  %1066 = vmatprep.subr.mxu0 0.0
  %1067 = vmatpush1.msra.mxu0 0.0
  %1068 = vmatprep.subr.mxu0 0.0
  %1069 = vmatpush1.msra.mxu0 0.0
  %1070 = vmatprep.subr.mxu0 0.0
  %1071 = vmatpush1.msra.mxu0 0.0
  %1072 = vmatprep.subr.mxu0 0.0
  %1073 = vmatpush1.msra.mxu0 0.0
  %1074 = vmatprep.subr.mxu0 0.0
  %1075 = vmatpush1.msra.mxu0 0.0
  %1076 = vmatprep.mubr.f32.mxu0 0.0
  %1077 = vmatmul.mubr.f32.gmra.mrb[0].mxu0 %v980
  %v1078 = vpop.f32.mrb[0].mxu0
  %v1079 = vadd.f32 0.0, %v1078
  %v1080 = vpop.f32.mrb[0].mxu0
  %1081 = vmatprep.mubr.f32.mxu0 0.0
  %1082 = vmatmul.mubr.f32.gmra.mrb[0].mxu0 %v983
  %v1083 = vpop.f32.mrb[0].mxu0
  %v1084 = vadd.f32 0.0, %v1083
  %v1085 = vpop.f32.mrb[0].mxu0
  %1086 = vmatprep.mubr.f32.mxu0 0.0
  %1087 = vmatmul.mubr.f32.gmra.mrb[0].mxu0 %v986
  %v1088 = vpop.f32.mrb[0].mxu0
  %v1089 = vadd.f32 0.0, %v1088
  %v1090 = vpop.f32.mrb[0].mxu0
  %1091 = vmatprep.mubr.f32.mxu0 0.0
  %1092 = vmatmul.mubr.f32.gmra.mrb[0].mxu0 %v989
  %v1093 = vpop.f32.mrb[0].mxu0
  %v1094 = vadd.f32 0.0, %v1093
  %v1095 = vpop.f32.mrb[0].mxu0
  %1096 = vmatprep.mubr.f32.mxu0 0.0
  %1097 = vmatmul.mubr.f32.gmra.mrb[0].mxu0 %v992
  %v1098 = vpop.f32.mrb[0].mxu0
  %v1099 = vadd.f32 0.0, %v1098
  %v1100 = vpop.f32.mrb[0].mxu0
  %1101 = vmatprep.mubr.f32.mxu0 0.0
  %1102 = vmatmul.mubr.f32.gmra.mrb[0].mxu0 %v995
  %v1103 = vpop.f32.mrb[0].mxu0
  %v1104 = vadd.f32 0.0, %v1103
  %v1105 = vpop.f32.mrb[0].mxu0
  %1106 = vmatprep.mubr.f32.mxu0 0.0
  %1107 = vmatmul.mubr.f32.gmra.mrb[0].mxu0 %v998
  %v1108 = vpop.f32.mrb[0].mxu0
  %v1109 = vadd.f32 0.0, %v1108
  %v1110 = vpop.f32.mrb[0].mxu0
  %1111 = vmatprep.mubr.f32.mxu0 0.0
  %1112 = vmatmul.mubr.f32.gmra.mrb[0].mxu0 %v1001
  %v1113 = vpop.f32.mrb[0].mxu0
  %v1114 = vadd.f32 0.0, %v1113
  %v1115 = vpop.f32.mrb[0].mxu0
  %1116 = vmatprep.mubr.f32.mxu0 0.0
  %1117 = vmatmul.mubr.f32.gmra.mrb[0].mxu0 %v1004
  %v1118 = vpop.f32.mrb[0].mxu0
  %v1119 = vadd.f32 0.0, %v1118
  %v1120 = vpop.f32.mrb[0].mxu0
  %1121 = vmatprep.mubr.f32.mxu0 0.0
  %1122 = vmatmul.mubr.f32.gmra.mrb[0].mxu0 %v1007
  %v1123 = vpop.f32.mrb[0].mxu0
  %v1124 = vadd.f32 0.0, %v1123
  %v1125 = vpop.f32.mrb[0].mxu0
  %1126 = vmatprep.mubr.f32.mxu0 0.0
  %1127 = vmatmul.mubr.f32.gmra.mrb[0].mxu0 %v1010
  %v1128 = vpop.f32.mrb[0].mxu0
  %v1129 = vadd.f32 0.0, %v1128
  %v1130 = vpop.f32.mrb[0].mxu0
  %1131 = vdwg.mxu0
  %v1132 = vsub.f32 0.0, %v1079
  %v1133 = vsub.f32 0.0, %v1084
  %v1134 = vsub.f32 0.0, %v1089
  %v1135 = vsub.f32 0.0, %v1094
  %v1136 = vsub.f32 0.0, %v1099
  %v1137 = vsub.f32 0.0, %v1104
  %v1138 = vsub.f32 0.0, %v1109
  %v1139 = vsub.f32 0.0, %v1114
  %v1140 = vsub.f32 0.0, %v1119
  %v1141 = vsub.f32 0.0, %v1124
  %v1142 = vsub.f32 0.0, %v1129
  %v1143 = vmul.f32 %v1132, 1.442695
  %v1144 = vpow.pop %v1143
  %v1145 = vmul.f32 %v1133, 1.442695
  %v1146 = vpow.pop %v1145
  %v1147 = vmul.f32 %v1134, 1.442695
  %v1148 = vpow.pop %v1147
  %v1149 = vmul.f32 %v1135, 1.442695
  %v1150 = vpow.pop %v1149
  %v1151 = vmul.f32 %v1136, 1.442695
  %v1152 = vpow.pop %v1151
  %v1153 = vmul.f32 %v1137, 1.442695
  %v1154 = vpow.pop %v1153
  %v1155 = vmul.f32 %v1138, 1.442695
  %v1156 = vpow.pop %v1155
  %v1157 = vmul.f32 %v1139, 1.442695
  %v1158 = vpow.pop %v1157
  %v1159 = vmul.f32 %v1140, 1.442695
  %v1160 = vpow.pop %v1159
  %v1161 = vmul.f32 %v1141, 1.442695
  %v1162 = vpow.pop %v1161
  %v1163 = vmul.f32 %v1142, 1.442695
  %v1164 = vpow.pop %v1163
  %v1165 = vadd.f32 %v1144, 1.0
  %v1166 = vadd.f32 %v1146, 1.0
  %v1167 = vadd.f32 %v1148, 1.0
  %v1168 = vadd.f32 %v1150, 1.0
  %v1169 = vadd.f32 %v1152, 1.0
  %v1170 = vadd.f32 %v1154, 1.0
  %v1171 = vadd.f32 %v1156, 1.0
  %v1172 = vadd.f32 %v1158, 1.0
  %v1173 = vadd.f32 %v1160, 1.0
  %v1174 = vadd.f32 %v1162, 1.0
  %v1175 = vadd.f32 %v1164, 1.0
  %v1176 = vrcp.pop %v1165
  %v1177 = vrcp.pop %v1166
  %v1178 = vrcp.pop %v1167
  %v1179 = vrcp.pop %v1168
  %v1180 = vrcp.pop %v1169
  %v1181 = vrcp.pop %v1170
  %v1182 = vrcp.pop %v1171
  %v1183 = vrcp.pop %v1172
  %v1184 = vrcp.pop %v1173
  %v1185 = vrcp.pop %v1174
  %v1186 = vrcp.pop %v1175
  %v1187 = vld [vmem:[%s0] sm:$0xff]
  %v1188 = vld [vmem:[%s0 + $0x8] sm:$0xff]
  %v1189 = vld [vmem:[%s0 + $0x10] sm:$0xff]
  %v1190 = vld [vmem:[%s0 + $0x18] sm:$0xff]
  %v1191 = vld [vmem:[%s0 + $0x20] sm:$0xff]
  %v1192 = vld [vmem:[%s0 + $0x28] sm:$0xff]
  %v1193 = vld [vmem:[%s0 + $0x30] sm:$0xff]
  %v1194 = vld [vmem:[%s0 + $0x38] sm:$0xff]
  %v1195 = vld [vmem:[%s0 + $0x40] sm:$0xff]
  %v1196 = vld [vmem:[%s0 + $0x48] sm:$0xff]
  %v1197 = vld [vmem:[%s0 + $0x50] sm:$0xff]
  %v1198 = vadd.f32 %v1176, 1.0
  %v1199 = vadd.f32 %v1177, 1.0
  %v1200 = vadd.f32 %v1178, 1.0
  %v1201 = vadd.f32 %v1179, 1.0
  %v1202 = vadd.f32 %v1180, 1.0
  %v1203 = vadd.f32 %v1181, 1.0
  %v1204 = vadd.f32 %v1182, 1.0
  %v1205 = vadd.f32 %v1183, 1.0
  %v1206 = vadd.f32 %v1184, 1.0
  %v1207 = vadd.f32 %v1185, 1.0
  %v1208 = vadd.f32 %v1186, 1.0
  %v1209 = vmul.f32 %v1187, %v1198
  %v1210 = vmul.f32 %v1188, %v1199
  %v1211 = vmul.f32 %v1189, %v1200
  %v1212 = vmul.f32 %v1190, %v1201
  %v1213 = vmul.f32 %v1191, %v1202
  %v1214 = vmul.f32 %v1192, %v1203
  %v1215 = vmul.f32 %v1193, %v1204
  %v1216 = vmul.f32 %v1194, %v1205
  %v1217 = vmul.f32 %v1195, %v1206
  %v1218 = vmul.f32 %v1196, %v1207
  %v1219 = vmul.f32 %v1197, %v1208
  %v1220 = vadd.f32 %v1209, %v1210
  %v1221 = vadd.f32 %v1220, %v1211
  %v1222 = vadd.f32 %v1221, %v1212
  %v1223 = vadd.f32 %v1222, %v1213
  %v1224 = vadd.f32 %v1223, %v1214
  %v1225 = vadd.f32 %v1224, %v1215
  %v1226 = vadd.f32 %v1225, %v1216
  %v1227 = vadd.f32 %v1226, %v1217
  %v1228 = vadd.f32 %v1227, %v1218
  %v1229 = vadd.f32 %v1228, %v1219
  %v1230 = vrot.slane %v1229, 4
  %v1231 = vadd.f32 %v1229, %v1230
  %v1232 = vrot.slane %v1231, 2
  %v1233 = vadd.f32 %v1231, %v1232
  %v1234 = vrot.slane %v1233, 1
  %v1235 = vadd.f32 %v1233, %v1234
  %v1236 = vadd.f32 %v1235, 0.0
  %v1237 = vmul.f32 %v1209, %v1209
  %v1238 = vmul.f32 %v1210, %v1210
  %v1239 = vmul.f32 %v1211, %v1211
  %v1240 = vmul.f32 %v1212, %v1212
  %v1241 = vmul.f32 %v1213, %v1213
  %v1242 = vmul.f32 %v1214, %v1214
  %v1243 = vmul.f32 %v1215, %v1215
  %v1244 = vmul.f32 %v1216, %v1216
  %v1245 = vmul.f32 %v1217, %v1217
  %v1246 = vmul.f32 %v1218, %v1218
  %v1247 = vmul.f32 %v1219, %v1219
  %v1248 = vadd.f32 %v1237, %v1238
  %v1249 = vadd.f32 %v1248, %v1239
  %v1250 = vadd.f32 %v1249, %v1240
  %v1251 = vadd.f32 %v1250, %v1241
  %v1252 = vadd.f32 %v1251, %v1242
  %v1253 = vadd.f32 %v1252, %v1243
  %v1254 = vadd.f32 %v1253, %v1244
  %v1255 = vadd.f32 %v1254, %v1245
  %v1256 = vadd.f32 %v1255, %v1246
  %v1257 = vadd.f32 %v1256, %v1247
  %v1258 = vrot.slane %v1257, 4
  %v1259 = vadd.f32 %v1257, %v1258
  %v1260 = vrot.slane %v1259, 2
  %v1261 = vadd.f32 %v1259, %v1260
  %v1262 = vrot.slane %v1261, 1
  %v1263 = vadd.f32 %v1261, %v1262
  %v1264 = vadd.f32 %v1263, 0.0
  %1265 = vmatprep.subr.mxu0 0.0
  %1266 = vmatpush1.msra.mxu0 %v961
  %1267 = vmatprep.subr.mxu0 0.0
  %1268 = vmatpush1.msra.mxu0 %v964
  %1269 = vmatprep.subr.mxu0 0.0
  %1270 = vmatpush1.msra.mxu0 0.0
  %1271 = vmatprep.subr.mxu0 0.0
  %1272 = vmatpush1.msra.mxu0 0.0
  %1273 = vmatprep.subr.mxu0 0.0
  %1274 = vmatpush1.msra.mxu0 0.0
  %1275 = vmatprep.subr.mxu0 0.0
  %1276 = vmatpush1.msra.mxu0 0.0
  %1277 = vmatprep.subr.mxu0 0.0
  %1278 = vmatpush1.msra.mxu0 0.0
  %1279 = vmatprep.subr.mxu0 0.0
  %1280 = vmatpush1.msra.mxu0 0.0
  %1281 = vmatprep.subr.mxu0 0.0
  %1282 = vmatpush1.msra.mxu0 0.0
  %1283 = vmatprep.subr.mxu0 0.0
  %1284 = vmatpush1.msra.mxu0 0.0
  %1285 = vmatprep.subr.mxu0 0.0
  %1286 = vmatpush1.msra.mxu0 0.0
  %1287 = vmatprep.subr.mxu0 0.0
  %1288 = vmatpush1.msra.mxu0 0.0
  %1289 = vmatprep.subr.mxu0 0.0
  %1290 = vmatpush1.msra.mxu0 0.0
  %1291 = vmatprep.subr.mxu0 0.0
  %1292 = vmatpush1.msra.mxu0 0.0
  %1293 = vmatprep.subr.mxu0 0.0
  %1294 = vmatpush1.msra.mxu0 0.0
  %1295 = vmatprep.subr.mxu0 0.0
  %1296 = vmatpush1.msra.mxu0 0.0
  %1297 = vmatprep.subr.mxu0 0.0
  %1298 = vmatpush1.msra.mxu0 0.0
  %1299 = vmatprep.subr.mxu0 0.0
  %1300 = vmatpush1.msra.mxu0 0.0
  %1301 = vmatprep.subr.mxu0 0.0
  %1302 = vmatpush1.msra.mxu0 0.0
  %1303 = vmatprep.subr.mxu0 0.0
  %1304 = vmatpush1.msra.mxu0 0.0
  %1305 = vmatprep.subr.mxu0 0.0
  %1306 = vmatpush1.msra.mxu0 0.0
  %1307 = vmatprep.subr.mxu0 0.0
  %1308 = vmatpush1.msra.mxu0 0.0
  %1309 = vmatprep.subr.mxu0 0.0
  %1310 = vmatpush1.msra.mxu0 0.0
  %1311 = vmatprep.subr.mxu0 0.0
  %1312 = vmatpush1.msra.mxu0 0.0
  %1313 = vmatprep.subr.mxu0 0.0
  %1314 = vmatpush1.msra.mxu0 0.0
  %1315 = vmatprep.subr.mxu0 0.0
  %1316 = vmatpush1.msra.mxu0 0.0
  %1317 = vmatprep.subr.mxu0 0.0
  %1318 = vmatpush1.msra.mxu0 0.0
  %1319 = vmatprep.subr.mxu0 0.0
  %1320 = vmatpush1.msra.mxu0 0.0
  %1321 = vmatprep.subr.mxu0 0.0
  %1322 = vmatpush1.msra.mxu0 0.0
  %1323 = vmatprep.subr.mxu0 0.0
  %1324 = vmatpush1.msra.mxu0 0.0
  %1325 = vmatprep.subr.mxu0 0.0
  %1326 = vmatpush1.msra.mxu0 0.0
  %1327 = vmatprep.subr.mxu0 0.0
  %1328 = vmatpush1.msra.mxu0 0.0
  %1329 = vmatprep.mubr.f32.mxu0 0.0
  %1330 = vmatmul.mubr.f32.gmra.mrb[0].mxu0 %v980
  %v1331 = vpop.f32.mrb[0].mxu0
  %v1332 = vadd.f32 0.0, %v1331
  %v1333 = vpop.f32.mrb[0].mxu0
  %1334 = vmatprep.mubr.f32.mxu0 0.0
  %1335 = vmatmul.mubr.f32.gmra.mrb[0].mxu0 %v983
  %v1336 = vpop.f32.mrb[0].mxu0
  %v1337 = vadd.f32 0.0, %v1336
  %v1338 = vpop.f32.mrb[0].mxu0
  %1339 = vmatprep.mubr.f32.mxu0 0.0
  %1340 = vmatmul.mubr.f32.gmra.mrb[0].mxu0 %v986
  %v1341 = vpop.f32.mrb[0].mxu0
  %v1342 = vadd.f32 0.0, %v1341
  %v1343 = vpop.f32.mrb[0].mxu0
  %1344 = vmatprep.mubr.f32.mxu0 0.0
  %1345 = vmatmul.mubr.f32.gmra.mrb[0].mxu0 %v989
  %v1346 = vpop.f32.mrb[0].mxu0
  %v1347 = vadd.f32 0.0, %v1346
  %v1348 = vpop.f32.mrb[0].mxu0
  %1349 = vmatprep.mubr.f32.mxu0 0.0
  %1350 = vmatmul.mubr.f32.gmra.mrb[0].mxu0 %v992
  %v1351 = vpop.f32.mrb[0].mxu0
  %v1352 = vadd.f32 0.0, %v1351
  %v1353 = vpop.f32.mrb[0].mxu0
  %1354 = vmatprep.mubr.f32.mxu0 0.0
  %1355 = vmatmul.mubr.f32.gmra.mrb[0].mxu0 %v995
  %v1356 = vpop.f32.mrb[0].mxu0
  %v1357 = vadd.f32 0.0, %v1356
  %v1358 = vpop.f32.mrb[0].mxu0
  %1359 = vmatprep.mubr.f32.mxu0 0.0
  %1360 = vmatmul.mubr.f32.gmra.mrb[0].mxu0 %v998
  %v1361 = vpop.f32.mrb[0].mxu0
  %v1362 = vadd.f32 0.0, %v1361
  %v1363 = vpop.f32.mrb[0].mxu0
  %1364 = vmatprep.mubr.f32.mxu0 0.0
  %1365 = vmatmul.mubr.f32.gmra.mrb[0].mxu0 %v1001
  %v1366 = vpop.f32.mrb[0].mxu0
  %v1367 = vadd.f32 0.0, %v1366
  %v1368 = vpop.f32.mrb[0].mxu0
  %1369 = vmatprep.mubr.f32.mxu0 0.0
  %1370 = vmatmul.mubr.f32.gmra.mrb[0].mxu0 %v1004
  %v1371 = vpop.f32.mrb[0].mxu0
  %v1372 = vadd.f32 0.0, %v1371
  %v1373 = vpop.f32.mrb[0].mxu0
  %1374 = vmatprep.mubr.f32.mxu0 0.0
  %1375 = vmatmul.mubr.f32.gmra.mrb[0].mxu0 %v1007
  %v1376 = vpop.f32.mrb[0].mxu0
  %v1377 = vadd.f32 0.0, %v1376
  %v1378 = vpop.f32.mrb[0].mxu0
  %1379 = vmatprep.mubr.f32.mxu0 0.0
  %1380 = vmatmul.mubr.f32.gmra.mrb[0].mxu0 %v1010
  %v1381 = vpop.f32.mrb[0].mxu0
  %v1382 = vadd.f32 0.0, %v1381
  %v1383 = vpop.f32.mrb[0].mxu0
  %1384 = vdwg.mxu0
  %v1385 = vsub.f32 0.0, %v1332
  %v1386 = vsub.f32 0.0, %v1337
  %v1387 = vsub.f32 0.0, %v1342
  %v1388 = vsub.f32 0.0, %v1347
  %v1389 = vsub.f32 0.0, %v1352
  %v1390 = vsub.f32 0.0, %v1357
  %v1391 = vsub.f32 0.0, %v1362
  %v1392 = vsub.f32 0.0, %v1367
  %v1393 = vsub.f32 0.0, %v1372
  %v1394 = vsub.f32 0.0, %v1377
  %v1395 = vsub.f32 0.0, %v1382
  %v1396 = vmul.f32 %v1385, 1.442695
  %v1397 = vpow.pop %v1396
  %v1398 = vmul.f32 %v1386, 1.442695
  %v1399 = vpow.pop %v1398
  %v1400 = vmul.f32 %v1387, 1.442695
  %v1401 = vpow.pop %v1400
  %v1402 = vmul.f32 %v1388, 1.442695
  %v1403 = vpow.pop %v1402
  %v1404 = vmul.f32 %v1389, 1.442695
  %v1405 = vpow.pop %v1404
  %v1406 = vmul.f32 %v1390, 1.442695
  %v1407 = vpow.pop %v1406
  %v1408 = vmul.f32 %v1391, 1.442695
  %v1409 = vpow.pop %v1408
  %v1410 = vmul.f32 %v1392, 1.442695
  %v1411 = vpow.pop %v1410
  %v1412 = vmul.f32 %v1393, 1.442695
  %v1413 = vpow.pop %v1412
  %v1414 = vmul.f32 %v1394, 1.442695
  %v1415 = vpow.pop %v1414
  %v1416 = vmul.f32 %v1395, 1.442695
  %v1417 = vpow.pop %v1416
  %v1418 = vadd.f32 %v1397, 1.0
  %v1419 = vadd.f32 %v1399, 1.0
  %v1420 = vadd.f32 %v1401, 1.0
  %v1421 = vadd.f32 %v1403, 1.0
  %v1422 = vadd.f32 %v1405, 1.0
  %v1423 = vadd.f32 %v1407, 1.0
  %v1424 = vadd.f32 %v1409, 1.0
  %v1425 = vadd.f32 %v1411, 1.0
  %v1426 = vadd.f32 %v1413, 1.0
  %v1427 = vadd.f32 %v1415, 1.0
  %v1428 = vadd.f32 %v1417, 1.0
  %v1429 = vrcp.pop %v1418
  %v1430 = vrcp.pop %v1419
  %v1431 = vrcp.pop %v1420
  %v1432 = vrcp.pop %v1421
  %v1433 = vrcp.pop %v1422
  %v1434 = vrcp.pop %v1423
  %v1435 = vrcp.pop %v1424
  %v1436 = vrcp.pop %v1425
  %v1437 = vrcp.pop %v1426
  %v1438 = vrcp.pop %v1427
  %v1439 = vrcp.pop %v1428
  %s1440 = scalar_lea.vmem %s0, 88
  %v1441 = vld [vmem:[%s1440] sm:$0xff]
  %v1442 = vld [vmem:[%s1440 + $0x8] sm:$0xff]
  %v1443 = vld [vmem:[%s1440 + $0x10] sm:$0xff]
  %v1444 = vld [vmem:[%s1440 + $0x18] sm:$0xff]
  %v1445 = vld [vmem:[%s1440 + $0x20] sm:$0xff]
  %v1446 = vld [vmem:[%s1440 + $0x28] sm:$0xff]
  %v1447 = vld [vmem:[%s1440 + $0x30] sm:$0xff]
  %v1448 = vld [vmem:[%s1440 + $0x38] sm:$0xff]
  %v1449 = vld [vmem:[%s1440 + $0x40] sm:$0xff]
  %v1450 = vld [vmem:[%s1440 + $0x48] sm:$0xff]
  %v1451 = vld [vmem:[%s1440 + $0x50] sm:$0xff]
  %v1452 = vadd.f32 %v1429, 1.0
  %v1453 = vadd.f32 %v1430, 1.0
  %v1454 = vadd.f32 %v1431, 1.0
  %v1455 = vadd.f32 %v1432, 1.0
  %v1456 = vadd.f32 %v1433, 1.0
  %v1457 = vadd.f32 %v1434, 1.0
  %v1458 = vadd.f32 %v1435, 1.0
  %v1459 = vadd.f32 %v1436, 1.0
  %v1460 = vadd.f32 %v1437, 1.0
  %v1461 = vadd.f32 %v1438, 1.0
  %v1462 = vadd.f32 %v1439, 1.0
  %v1463 = vmul.f32 %v1441, %v1452
  %v1464 = vmul.f32 %v1442, %v1453
  %v1465 = vmul.f32 %v1443, %v1454
  %v1466 = vmul.f32 %v1444, %v1455
  %v1467 = vmul.f32 %v1445, %v1456
  %v1468 = vmul.f32 %v1446, %v1457
  %v1469 = vmul.f32 %v1447, %v1458
  %v1470 = vmul.f32 %v1448, %v1459
  %v1471 = vmul.f32 %v1449, %v1460
  %v1472 = vmul.f32 %v1450, %v1461
  %v1473 = vmul.f32 %v1451, %v1462
  %v1474 = vadd.f32 %v1463, %v1464
  %v1475 = vadd.f32 %v1474, %v1465
  %v1476 = vadd.f32 %v1475, %v1466
  %v1477 = vadd.f32 %v1476, %v1467
  %v1478 = vadd.f32 %v1477, %v1468
  %v1479 = vadd.f32 %v1478, %v1469
  %v1480 = vadd.f32 %v1479, %v1470
  %v1481 = vadd.f32 %v1480, %v1471
  %v1482 = vadd.f32 %v1481, %v1472
  %v1483 = vadd.f32 %v1482, %v1473
  %v1484 = vrot.slane %v1483, 4
  %v1485 = vadd.f32 %v1483, %v1484
  %v1486 = vrot.slane %v1485, 2
  %v1487 = vadd.f32 %v1485, %v1486
  %v1488 = vrot.slane %v1487, 1
  %v1489 = vadd.f32 %v1487, %v1488
  %v1490 = vadd.f32 %v1236, %v1489
  %v1491 = vmul.f32 %v1463, %v1463
  %v1492 = vmul.f32 %v1464, %v1464
  %v1493 = vmul.f32 %v1465, %v1465
  %v1494 = vmul.f32 %v1466, %v1466
  %v1495 = vmul.f32 %v1467, %v1467
  %v1496 = vmul.f32 %v1468, %v1468
  %v1497 = vmul.f32 %v1469, %v1469
  %v1498 = vmul.f32 %v1470, %v1470
  %v1499 = vmul.f32 %v1471, %v1471
  %v1500 = vmul.f32 %v1472, %v1472
  %v1501 = vmul.f32 %v1473, %v1473
  %v1502 = vadd.f32 %v1491, %v1492
  %v1503 = vadd.f32 %v1502, %v1493
  %v1504 = vadd.f32 %v1503, %v1494
  %v1505 = vadd.f32 %v1504, %v1495
  %v1506 = vadd.f32 %v1505, %v1496
  %v1507 = vadd.f32 %v1506, %v1497
  %v1508 = vadd.f32 %v1507, %v1498
  %v1509 = vadd.f32 %v1508, %v1499
  %v1510 = vadd.f32 %v1509, %v1500
  %v1511 = vadd.f32 %v1510, %v1501
  %v1512 = vrot.slane %v1511, 4
  %v1513 = vadd.f32 %v1511, %v1512
  %v1514 = vrot.slane %v1513, 2
  %v1515 = vadd.f32 %v1513, %v1514
  %v1516 = vrot.slane %v1515, 1
  %v1517 = vadd.f32 %v1515, %v1516
  %v1518 = vadd.f32 %v1264, %v1517
  %v1519 = vmul.f32 %v1490, 0.0061728396
  %v1520 = vmul.f32 %v1518, 0.0061728396
  %v1521 = vmul.f32 %v1519, %v1519
  %v1522 = vsub.f32 %v1520, %v1521
  %v1523 = vld [vmem:[%s5] sm:$0x1]
  %v1524 = vadd.f32 %v1522, 1e-05
  %v1525 = vrsqrt.pop %v1524
  %v1526 = vmul.f32 %v1523, %v1525
  %v1527 = vld [vmem:[%s6] sm:$0x1]
  %v1528 = vmul.f32 %v1519, %v1526
  %v1529 = vsub.f32 %v1527, %v1528
  %v1531 = vlaneseq
  %v1532 = vshrl.u32 %v1531, 7
  %v1533 = vsub.s32 0, %v1532
  %v1534 = vrot.slane %v1526, %v1533
  %v1536 = vmul.f32 %v1209, %v1534
  %v1537 = vmul.f32 %v1210, %v1534
  %v1538 = vmul.f32 %v1211, %v1534
  %v1539 = vmul.f32 %v1212, %v1534
  %v1540 = vmul.f32 %v1213, %v1534
  %v1541 = vmul.f32 %v1214, %v1534
  %v1542 = vmul.f32 %v1215, %v1534
  %v1543 = vmul.f32 %v1216, %v1534
  %v1544 = vmul.f32 %v1217, %v1534
  %v1545 = vmul.f32 %v1218, %v1534
  %v1546 = vmul.f32 %v1219, %v1534
  %v1548 = vlaneseq
  %v1549 = vshrl.u32 %v1548, 7
  %v1550 = vsub.s32 0, %v1549
  %v1551 = vrot.slane %v1529, %v1550
  %v1553 = vadd.f32 %v1536, %v1551
  %v1554 = vadd.f32 %v1537, %v1551
  %v1555 = vadd.f32 %v1538, %v1551
  %v1556 = vadd.f32 %v1539, %v1551
  %v1557 = vadd.f32 %v1540, %v1551
  %v1558 = vadd.f32 %v1541, %v1551
  %v1559 = vadd.f32 %v1542, %v1551
  %v1560 = vadd.f32 %v1543, %v1551
  %v1561 = vadd.f32 %v1544, %v1551
  %v1562 = vadd.f32 %v1545, %v1551
  %v1563 = vadd.f32 %v1546, %v1551
  %v1564 = vmax.f32 %v1553, 0.0
  %v1565 = vmax.f32 %v1554, 0.0
  %v1566 = vmax.f32 %v1555, 0.0
  %v1567 = vmax.f32 %v1556, 0.0
  %v1568 = vmax.f32 %v1557, 0.0
  %v1569 = vmax.f32 %v1558, 0.0
  %v1570 = vmax.f32 %v1559, 0.0
  %v1571 = vmax.f32 %v1560, 0.0
  %v1572 = vmax.f32 %v1561, 0.0
  %v1573 = vmax.f32 %v1562, 0.0
  %v1574 = vmax.f32 %v1563, 0.0
  %1575 = vst [vmem:[%s7] sm:$0xff] %v1564
  %1576 = vst [vmem:[%s7 + $0x8] sm:$0xff] %v1565
  %1577 = vst [vmem:[%s7 + $0x10] sm:$0xff] %v1566
  %1578 = vst [vmem:[%s7 + $0x18] sm:$0xff] %v1567
  %1579 = vst [vmem:[%s7 + $0x20] sm:$0xff] %v1568
  %1580 = vst [vmem:[%s7 + $0x28] sm:$0xff] %v1569
  %1581 = vst [vmem:[%s7 + $0x30] sm:$0xff] %v1570
  %1582 = vst [vmem:[%s7 + $0x38] sm:$0xff] %v1571
  %1583 = vst [vmem:[%s7 + $0x40] sm:$0xff] %v1572
  %1584 = vst [vmem:[%s7 + $0x48] sm:$0xff] %v1573
  %1585 = vst [vmem:[%s7 + $0x50] sm:$0xff] %v1574
  %v1586 = vmul.f32 %v1463, %v1534
  %v1587 = vmul.f32 %v1464, %v1534
  %v1588 = vmul.f32 %v1465, %v1534
  %v1589 = vmul.f32 %v1466, %v1534
  %v1590 = vmul.f32 %v1467, %v1534
  %v1591 = vmul.f32 %v1468, %v1534
  %v1592 = vmul.f32 %v1469, %v1534
  %v1593 = vmul.f32 %v1470, %v1534
  %v1594 = vmul.f32 %v1471, %v1534
  %v1595 = vmul.f32 %v1472, %v1534
  %v1596 = vmul.f32 %v1473, %v1534
  %v1597 = vadd.f32 %v1586, %v1551
  %v1598 = vadd.f32 %v1587, %v1551
  %v1599 = vadd.f32 %v1588, %v1551
  %v1600 = vadd.f32 %v1589, %v1551
  %v1601 = vadd.f32 %v1590, %v1551
  %v1602 = vadd.f32 %v1591, %v1551
  %v1603 = vadd.f32 %v1592, %v1551
  %v1604 = vadd.f32 %v1593, %v1551
  %v1605 = vadd.f32 %v1594, %v1551
  %v1606 = vadd.f32 %v1595, %v1551
  %v1607 = vadd.f32 %v1596, %v1551
  %v1608 = vmax.f32 %v1597, 0.0
  %v1609 = vmax.f32 %v1598, 0.0
  %v1610 = vmax.f32 %v1599, 0.0
  %v1611 = vmax.f32 %v1600, 0.0
  %v1612 = vmax.f32 %v1601, 0.0
  %v1613 = vmax.f32 %v1602, 0.0
  %v1614 = vmax.f32 %v1603, 0.0
  %v1615 = vmax.f32 %v1604, 0.0
  %v1616 = vmax.f32 %v1605, 0.0
  %v1617 = vmax.f32 %v1606, 0.0
  %v1618 = vmax.f32 %v1607, 0.0
  %s1619 = scalar_lea.vmem %s7, 88
  %1620 = vst [vmem:[%s1619] sm:$0xff] %v1608
  %1621 = vst [vmem:[%s1619 + $0x8] sm:$0xff] %v1609
  %1622 = vst [vmem:[%s1619 + $0x10] sm:$0xff] %v1610
  %1623 = vst [vmem:[%s1619 + $0x18] sm:$0xff] %v1611
  %1624 = vst [vmem:[%s1619 + $0x20] sm:$0xff] %v1612
  %1625 = vst [vmem:[%s1619 + $0x28] sm:$0xff] %v1613
  %1626 = vst [vmem:[%s1619 + $0x30] sm:$0xff] %v1614
  %1627 = vst [vmem:[%s1619 + $0x38] sm:$0xff] %v1615
  %1628 = vst [vmem:[%s1619 + $0x40] sm:$0xff] %v1616
  %1629 = vst [vmem:[%s1619 + $0x48] sm:$0xff] %v1617
  %1630 = vst [vmem:[%s1619 + $0x50] sm:$0xff] %v1618
  // Predicated region
  $region30: #{_lambda_.3} parent=0 // pred_check
    _
  $region31: #{_lambda_.3} parent=0 // pred_check_branch
    %1632 = sbr.rel (0) target = $region33
  $region32: #{_lambda_.3} parent=0 // pred_region
    _
  $region33: #{_lambda_.3} parent=0 // pred_fallthru
    _
  // Predicated region
  $region34: #{_lambda_.3} parent=0 // pred_check
    _
  $region35: #{_lambda_.3} parent=0 // pred_check_branch
    %1634 = sbr.rel (0) target = $region37
  $region36: #{_lambda_.3} parent=0 // pred_region
    _
  $region37: #{_lambda_.3} parent=0 // pred_fallthru
    _

</llo_original>
